<compile_context>
chip_gen: v5e
topology: v5e:2x2
jax: 0.10.0
libtpu: 0.0.40
codegen_flags: <defaults>
</compile_context>

<pallas_src>
import math

import jax
import jax.numpy as jnp
from jax.experimental import pallas as pl
from jax.experimental.pallas import tpu as pltpu

LANE = 128
SUBLANE = 8


def _round_up(x, m):
    return ((x + m - 1) // m) * m


# ---------------------------------------------------------------------------
# Kernel: whole MLP fused; weights are bf16, accumulation is f32 on the MXU.
# ---------------------------------------------------------------------------
def dqn_kernel(x_ref, w1_ref, b1_ref, w2_ref, b2_ref,
               w3_ref, b3_ref, w4_ref, b4_ref, o_ref):
    # layer1 + ReLU   (x is bf16, w1 is bf16, acc f32)
    h = jnp.dot(x_ref[...], w1_ref[...], preferred_element_type=jnp.float32)
    h = jnp.maximum(h + b1_ref[...], 0.0)
    # layer2 + ReLU
    h = jnp.dot(h.astype(jnp.bfloat16), w2_ref[...],
                preferred_element_type=jnp.float32)
    h = jnp.maximum(h + b2_ref[...], 0.0)
    # layer3 + ReLU
    h = jnp.dot(h.astype(jnp.bfloat16), w3_ref[...],
                preferred_element_type=jnp.float32)
    h = jnp.maximum(h + b3_ref[...], 0.0)
    # head (no activation); output is lane-dense (padded to 128)
    h = jnp.dot(h.astype(jnp.bfloat16), w4_ref[...],
                preferred_element_type=jnp.float32)
    o_ref[...] = h + b4_ref[...]


# ---------------------------------------------------------------------------
# Parameter construction (PyTorch-style init) and one-time kernel-layout prep.
# ---------------------------------------------------------------------------
def init_linear(key, in_features, out_features):
    """PyTorch default nn.Linear init: U(-1/sqrt(in), 1/sqrt(in))."""
    kw, kb = jax.random.split(key)
    bound = 1.0 / math.sqrt(in_features)
    w = jax.random.uniform(kw, (out_features, in_features), jnp.float32,
                           minval=-bound, maxval=bound)
    b = jax.random.uniform(kb, (out_features,), jnp.float32,
                           minval=-bound, maxval=bound)
    return w, b


def make_dqn_params(n_space, n_action, seed=0):
    key = jax.random.PRNGKey(seed)
    k1, k2, k3, k4 = jax.random.split(key, 4)
    return {
        "layer1": init_linear(k1, n_space, 2048),
        "layer2": init_linear(k2, 2048, 512),
        "layer3": init_linear(k3, 512, 128),
        "head":   init_linear(k4, 128, n_action),
    }


def prep_params(raw, n_space, n_action):
    """One-time: transpose to (in, out), zero-pad to lane multiples, bf16."""
    n_space_p = _round_up(max(n_space, LANE), LANE)
    n_act_p = _round_up(max(n_action, LANE), LANE)

    def prep_w(w, in_p=None, out_p=None):
        wt = w.T                                  # (in, out)
        in_dim, out_dim = wt.shape
        in_p = in_p if in_p is not None else in_dim
        out_p = out_p if out_p is not None else out_dim
        wt = jnp.pad(wt, ((0, in_p - in_dim), (0, out_p - out_dim)))
        return wt.astype(jnp.bfloat16)

    def prep_b(b, out_p=None):
        out_p = out_p if out_p is not None else b.shape[0]
        return jnp.pad(b, (0, out_p - b.shape[0])).reshape(1, -1).astype(jnp.float32)

    w1, b1 = raw["layer1"]
    w2, b2 = raw["layer2"]
    w3, b3 = raw["layer3"]
    w4, b4 = raw["head"]
    return {
        "w1": prep_w(w1, in_p=n_space_p), "b1": prep_b(b1),
        "w2": prep_w(w2),                 "b2": prep_b(b2),
        "w3": prep_w(w3),                 "b3": prep_b(b3),
        "w4": prep_w(w4, out_p=n_act_p),  "b4": prep_b(b4, out_p=n_act_p),
        "n_space": n_space,
        "n_action": n_action,
    }


# ---------------------------------------------------------------------------
# Forward wrapper.
# ---------------------------------------------------------------------------
def dqn_forward(prepped, x):
    """x: (batch, n_space) float32 -> (batch, n_action) float32."""
    batch, n_space = x.shape
    n_space_p = prepped["w1"].shape[0]
    out_p = prepped["w4"].shape[1]
    n_action = prepped["n_action"]

    # Batch tiling: small batches -> single tile padded to a sublane multiple;
    # large batches -> 256-row tiles over a parallel grid (MXU-matched on
    # v6e/v7x; still fine on v5e).
    if batch <= 256:
        tm = max(SUBLANE, _round_up(batch, SUBLANE))
        grid_m = 1
    else:
        tm = 256
        grid_m = pl.cdiv(batch, tm)
    pad_batch = tm * grid_m

    xp = jnp.pad(x.astype(jnp.bfloat16),
                 ((0, pad_batch - batch), (0, n_space_p - n_space)))

    def const_spec(shape):
        # Weights/biases: same block every grid step -> stay VMEM-resident.
        return pl.BlockSpec(shape, lambda i: (0, 0))

    out = pl.pallas_call(
        dqn_kernel,
        out_shape=jax.ShapeDtypeStruct((pad_batch, out_p), jnp.float32),
        grid=(grid_m,),
        in_specs=[
            pl.BlockSpec((tm, n_space_p), lambda i: (i, 0)),   # x tile
            const_spec(prepped["w1"].shape), const_spec(prepped["b1"].shape),
            const_spec(prepped["w2"].shape), const_spec(prepped["b2"].shape),
            const_spec(prepped["w3"].shape), const_spec(prepped["b3"].shape),
            const_spec(prepped["w4"].shape), const_spec(prepped["b4"].shape),
        ],
        out_specs=pl.BlockSpec((tm, out_p), lambda i: (i, 0)),
        compiler_params=pltpu.CompilerParams(
            dimension_semantics=("parallel",),
            vmem_limit_bytes=16 << 20,
        ),
    )(xp,
      prepped["w1"], prepped["b1"],
      prepped["w2"], prepped["b2"],
      prepped["w3"], prepped["b3"],
      prepped["w4"], prepped["b4"])

    return out[:batch, :n_action]


# ---------------------------------------------------------------------------
# References.
# ---------------------------------------------------------------------------
def dqn_forward_ref_bf16(prepped, x):
    """Pure-JAX reference matching the kernel's bf16-weight numerics."""
    n_space_p = prepped["w1"].shape[0]
    h = jnp.pad(x, ((0, 0), (0, n_space_p - x.shape[1]))).astype(jnp.bfloat16)
    for i in (1, 2, 3):
        w, b = prepped[f"w{i}"], prepped[f"b{i}"]
        h = jnp.dot(h, w, preferred_element_type=jnp.float32) + b
        h = jnp.maximum(h, 0.0).astype(jnp.bfloat16)
    h = jnp.dot(h, prepped["w4"], preferred_element_type=jnp.float32) + prepped["b4"]
    return h[:, :prepped["n_action"]]


def dqn_forward_ref_f32(raw, x):
    """Full-precision reference of the original PyTorch module semantics."""
    h = x
    for name in ("layer1", "layer2", "layer3"):
        w, b = raw[name]
        h = jnp.maximum(h @ w.T + b, 0.0)
    w, b = raw["head"]
    return h @ w.T + b


if __name__ == "__main__":
    n_space, n_action = 32, 8
    batch = 2

    raw = make_dqn_params(n_space, n_action, seed=0)
    prepped = prep_params(raw, n_space, n_action)

    x = jax.random.normal(jax.random.PRNGKey(0), (batch, n_space), jnp.float32)

    out = dqn_forward(prepped, x)
    out = jax.block_until_ready(out)
    assert out.shape == (batch, n_action)

    # Exactness vs. bf16-matched reference (isolates kernel correctness).
    ref_bf16 = dqn_forward_ref_bf16(prepped, x)
    assert jnp.allclose(out, ref_bf16, atol=2e-3, rtol=2e-3), \
        "mismatch vs bf16-matched reference"

    # Sanity check vs. the original f32 module semantics (bf16 weight
    # quantization introduces small error, hence the loose tolerance).
    ref_f32 = dqn_forward_ref_f32(raw, x)
    assert jnp.allclose(out, ref_f32, atol=5e-2, rtol=5e-2), \
        "drifted too far from f32 reference"

    print("KERNEL_OK")
</pallas_src>

<mosaic_0001>
module attributes {stable_mosaic.version = 11 : i64} {
  func.func @dqn_kernel(%arg0: i32, %arg1: memref<8x128xbf16, #tpu.memory_space<vmem>>, %arg2: memref<128x2048xbf16, #tpu.memory_space<vmem>>, %arg3: memref<1x2048xf32, #tpu.memory_space<vmem>>, %arg4: memref<2048x512xbf16, #tpu.memory_space<vmem>>, %arg5: memref<1x512xf32, #tpu.memory_space<vmem>>, %arg6: memref<512x128xbf16, #tpu.memory_space<vmem>>, %arg7: memref<1x128xf32, #tpu.memory_space<vmem>>, %arg8: memref<128x128xbf16, #tpu.memory_space<vmem>>, %arg9: memref<1x128xf32, #tpu.memory_space<vmem>>, %arg10: memref<8x128xf32, #tpu.memory_space<vmem>>) attributes {dimension_semantics = [#tpu.dimension_semantics<parallel>], iteration_bounds = array<i64: 1>, scalar_prefetch = 0 : i64, scratch_operands = 0 : i64, tpu.core_type = #tpu.core_type<tc>, window_params = [{transform_indices = @transform_0, window_bounds = array<i64: 8, 128>}, {pipeline_mode = #tpu.pipeline_mode<synchronous>, transform_indices = @transform_1, window_bounds = array<i64: 128, 2048>}, {pipeline_mode = #tpu.pipeline_mode<synchronous>, transform_indices = @transform_2, window_bounds = array<i64: 1, 2048>}, {pipeline_mode = #tpu.pipeline_mode<synchronous>, transform_indices = @transform_3, window_bounds = array<i64: 2048, 512>}, {pipeline_mode = #tpu.pipeline_mode<synchronous>, transform_indices = @transform_4, window_bounds = array<i64: 1, 512>}, {pipeline_mode = #tpu.pipeline_mode<synchronous>, transform_indices = @transform_5, window_bounds = array<i64: 512, 128>}, {pipeline_mode = #tpu.pipeline_mode<synchronous>, transform_indices = @transform_6, window_bounds = array<i64: 1, 128>}, {pipeline_mode = #tpu.pipeline_mode<synchronous>, transform_indices = @transform_7, window_bounds = array<i64: 128, 128>}, {pipeline_mode = #tpu.pipeline_mode<synchronous>, transform_indices = @transform_8, window_bounds = array<i64: 1, 128>}, {transform_indices = @transform_9, window_bounds = array<i64: 8, 128>}]} {
    %c0 = arith.constant 0 : index
    %c0_0 = arith.constant 0 : index
    %0 = vector.load %arg1[%c0, %c0_0] : memref<8x128xbf16, #tpu.memory_space<vmem>>, vector<8x128xbf16>
    %c0_1 = arith.constant 0 : index
    %c0_2 = arith.constant 0 : index
    %1 = vector.load %arg2[%c0_1, %c0_2] : memref<128x2048xbf16, #tpu.memory_space<vmem>>, vector<128x2048xbf16>
    %cst = arith.constant dense<0.000000e+00> : vector<8x2048xf32>
    %2 = tpu.matmul %0, %1, %cst {dimension_numbers = #tpu.dot_dimension_numbers<[1], [0], [0], [1], [0, 0, 1, 1], [], []>} : vector<8x128xbf16>, vector<128x2048xbf16>, vector<8x2048xf32> -> vector<8x2048xf32>
    %c0_3 = arith.constant 0 : index
    %c0_4 = arith.constant 0 : index
    %3 = vector.load %arg3[%c0_3, %c0_4] : memref<1x2048xf32, #tpu.memory_space<vmem>>, vector<1x2048xf32>
    %4 = vector.broadcast %3 : vector<1x2048xf32> to vector<8x2048xf32>
    %5 = arith.addf %2, %4 : vector<8x2048xf32>
    %cst_5 = arith.constant 0.000000e+00 : f32
    %6 = vector.broadcast %cst_5 : f32 to vector<8x2048xf32>
    %7 = arith.maximumf %5, %6 : vector<8x2048xf32>
    %8 = arith.truncf %7 : vector<8x2048xf32> to vector<8x2048xbf16>
    %c0_6 = arith.constant 0 : index
    %c0_7 = arith.constant 0 : index
    %9 = vector.load %arg4[%c0_6, %c0_7] : memref<2048x512xbf16, #tpu.memory_space<vmem>>, vector<2048x512xbf16>
    %cst_8 = arith.constant dense<0.000000e+00> : vector<8x512xf32>
    %10 = tpu.matmul %8, %9, %cst_8 {dimension_numbers = #tpu.dot_dimension_numbers<[1], [0], [0], [1], [0, 0, 1, 1], [], []>} : vector<8x2048xbf16>, vector<2048x512xbf16>, vector<8x512xf32> -> vector<8x512xf32>
    %c0_9 = arith.constant 0 : index
    %c0_10 = arith.constant 0 : index
    %11 = vector.load %arg5[%c0_9, %c0_10] : memref<1x512xf32, #tpu.memory_space<vmem>>, vector<1x512xf32>
    %12 = vector.broadcast %11 : vector<1x512xf32> to vector<8x512xf32>
    %13 = arith.addf %10, %12 : vector<8x512xf32>
    %cst_11 = arith.constant 0.000000e+00 : f32
    %14 = vector.broadcast %cst_11 : f32 to vector<8x512xf32>
    %15 = arith.maximumf %13, %14 : vector<8x512xf32>
    %16 = arith.truncf %15 : vector<8x512xf32> to vector<8x512xbf16>
    %c0_12 = arith.constant 0 : index
    %c0_13 = arith.constant 0 : index
    %17 = vector.load %arg6[%c0_12, %c0_13] : memref<512x128xbf16, #tpu.memory_space<vmem>>, vector<512x128xbf16>
    %cst_14 = arith.constant dense<0.000000e+00> : vector<8x128xf32>
    %18 = tpu.matmul %16, %17, %cst_14 {dimension_numbers = #tpu.dot_dimension_numbers<[1], [0], [0], [1], [0, 0, 1, 1], [], []>} : vector<8x512xbf16>, vector<512x128xbf16>, vector<8x128xf32> -> vector<8x128xf32>
    %c0_15 = arith.constant 0 : index
    %c0_16 = arith.constant 0 : index
    %19 = vector.load %arg7[%c0_15, %c0_16] : memref<1x128xf32, #tpu.memory_space<vmem>>, vector<1x128xf32>
    %20 = vector.broadcast %19 : vector<1x128xf32> to vector<8x128xf32>
    %21 = arith.addf %18, %20 : vector<8x128xf32>
    %cst_17 = arith.constant 0.000000e+00 : f32
    %22 = vector.broadcast %cst_17 : f32 to vector<8x128xf32>
    %23 = arith.maximumf %21, %22 : vector<8x128xf32>
    %24 = arith.truncf %23 : vector<8x128xf32> to vector<8x128xbf16>
    %c0_18 = arith.constant 0 : index
    %c0_19 = arith.constant 0 : index
    %25 = vector.load %arg8[%c0_18, %c0_19] : memref<128x128xbf16, #tpu.memory_space<vmem>>, vector<128x128xbf16>
    %cst_20 = arith.constant dense<0.000000e+00> : vector<8x128xf32>
    %26 = tpu.matmul %24, %25, %cst_20 {dimension_numbers = #tpu.dot_dimension_numbers<[1], [0], [0], [1], [0, 0, 1, 1], [], []>} : vector<8x128xbf16>, vector<128x128xbf16>, vector<8x128xf32> -> vector<8x128xf32>
    %c0_21 = arith.constant 0 : index
    %c0_22 = arith.constant 0 : index
    %27 = vector.load %arg9[%c0_21, %c0_22] : memref<1x128xf32, #tpu.memory_space<vmem>>, vector<1x128xf32>
    %28 = vector.broadcast %27 : vector<1x128xf32> to vector<8x128xf32>
    %29 = arith.addf %26, %28 : vector<8x128xf32>
    %c0_23 = arith.constant 0 : index
    %c0_24 = arith.constant 0 : index
    %30 = vector.load %arg10[%c0_23, %c0_24] : memref<8x128xf32, #tpu.memory_space<vmem>>, vector<8x128xf32>
    tpu.vector_store %arg10[%c0_23, %c0_24], %29 {strides = array<i32>} : memref<8x128xf32, #tpu.memory_space<vmem>>, vector<8x128xf32>,
    return
  }
  func.func @transform_0(%arg0: i32) -> (i32, i32) {
    %c0_i32 = arith.constant 0 : i32
    %c0_i32_0 = arith.constant 0 : i32
    return %arg0, %c0_i32 : i32, i32
  }
  func.func @transform_1(%arg0: i32) -> (i32, i32) {
    %c0_i32 = arith.constant 0 : i32
    %c0_i32_0 = arith.constant 0 : i32
    %c0_i32_1 = arith.constant 0 : i32
    return %c0_i32, %c0_i32_0 : i32, i32
  }
  func.func @transform_2(%arg0: i32) -> (i32, i32) {
    %c0_i32 = arith.constant 0 : i32
    %c0_i32_0 = arith.constant 0 : i32
    %c0_i32_1 = arith.constant 0 : i32
    return %c0_i32, %c0_i32_0 : i32, i32
  }
  func.func @transform_3(%arg0: i32) -> (i32, i32) {
    %c0_i32 = arith.constant 0 : i32
    %c0_i32_0 = arith.constant 0 : i32
    %c0_i32_1 = arith.constant 0 : i32
    return %c0_i32, %c0_i32_0 : i32, i32
  }
  func.func @transform_4(%arg0: i32) -> (i32, i32) {
    %c0_i32 = arith.constant 0 : i32
    %c0_i32_0 = arith.constant 0 : i32
    %c0_i32_1 = arith.constant 0 : i32
    return %c0_i32, %c0_i32_0 : i32, i32
  }
  func.func @transform_5(%arg0: i32) -> (i32, i32) {
    %c0_i32 = arith.constant 0 : i32
    %c0_i32_0 = arith.constant 0 : i32
    %c0_i32_1 = arith.constant 0 : i32
    return %c0_i32, %c0_i32_0 : i32, i32
  }
  func.func @transform_6(%arg0: i32) -> (i32, i32) {
    %c0_i32 = arith.constant 0 : i32
    %c0_i32_0 = arith.constant 0 : i32
    %c0_i32_1 = arith.constant 0 : i32
    return %c0_i32, %c0_i32_0 : i32, i32
  }
  func.func @transform_7(%arg0: i32) -> (i32, i32) {
    %c0_i32 = arith.constant 0 : i32
    %c0_i32_0 = arith.constant 0 : i32
    %c0_i32_1 = arith.constant 0 : i32
    return %c0_i32, %c0_i32_0 : i32, i32
  }
  func.func @transform_8(%arg0: i32) -> (i32, i32) {
    %c0_i32 = arith.constant 0 : i32
    %c0_i32_0 = arith.constant 0 : i32
    %c0_i32_1 = arith.constant 0 : i32
    return %c0_i32, %c0_i32_0 : i32, i32
  }
  func.func @transform_9(%arg0: i32) -> (i32, i32) {
    %c0_i32 = arith.constant 0 : i32
    %c0_i32_0 = arith.constant 0 : i32
    return %arg0, %c0_i32 : i32, i32
  }
}

</mosaic_0001>

<llo_original>
// kernel: tpu_custom_call.1
$region0: #{tpu_custom_call.1}
  #allocation0 [shape = 'u32[]', space=smem, size = 0x4, offset = 0x4, fixed_abs, tag = 'smem constant byte address 0x4 - core index']
  #allocation1 [shape = 'u32[72,128]{1,0:T(1,128)}', space=vmem, size = 0x9000, scoped, tag = 'internal scratch']
  %s0 = inlined_call_operand.hbm [shape: bf16[8,128], index: 0, kind: input, shape index: {}]
  %s1 = inlined_call_operand.hbm [shape: bf16[128,2048], index: 1, kind: input, shape index: {}]
  %s2 = inlined_call_operand.hbm [shape: f32[1,2048], index: 2, kind: input, shape index: {}]
  %s3 = inlined_call_operand.hbm [shape: bf16[2048,512], index: 3, kind: input, shape index: {}]
  %s4 = inlined_call_operand.hbm [shape: f32[1,512], index: 4, kind: input, shape index: {}]
  %s5 = inlined_call_operand.hbm [shape: bf16[512,128], index: 5, kind: input, shape index: {}]
  %s6 = inlined_call_operand.hbm [shape: f32[1,128], index: 6, kind: input, shape index: {}]
  %s7 = inlined_call_operand.hbm [shape: bf16[128,128], index: 7, kind: input, shape index: {}]
  %s8 = inlined_call_operand.hbm [shape: f32[1,128], index: 8, kind: input, shape index: {}]
  %s9 = inlined_call_operand.hbm [shape: f32[8,128], index: 9, kind: output, shape index: {}]
  %s10 = sld [smem:[#allocation0]]
  $region82: #{tpu_custom_call.1} parent=0
    _
  %s12 = ssub.s32 1, %s10
  %s13 = scalar_select 0, %s12, %s10
  $region1: #{tpu_custom_call.1} parent=0
    #allocation2 [shape = 'u8[2048]{0}', space=vmem, size = 0x800, scoped, tag = 'input window, operand 0, single buffered']
    #allocation3 [shape = 's32[1]{0}', space=sflag, size = 0x4, scoped, tag = 'scoped memory for tpu_custom_call.1']
    #allocation4 [shape = 's32[1]{0}', space=sflag, size = 0x4, scoped, tag = 'scoped memory for tpu_custom_call.1']
    #allocation5 [shape = 'u8[524288]{0}', space=vmem, size = 0x80000, scoped, tag = 'input window, operand 1, single buffered']
    #allocation6 [shape = 's32[1]{0}', space=sflag, size = 0x4, scoped, tag = 'scoped memory for tpu_custom_call.1']
    #allocation7 [shape = 'u8[8192]{0}', space=vmem, size = 0x2000, scoped, tag = 'input window, operand 2, single buffered']
    #allocation8 [shape = 'u8[2097152]{0}', space=vmem, size = 0x200000, scoped, tag = 'input window, operand 3, single buffered']
    #allocation9 [shape = 's32[1]{0}', space=sflag, size = 0x4, scoped, tag = 'scoped memory for tpu_custom_call.1']
    #allocation10 [shape = 'u8[2048]{0}', space=vmem, size = 0x800, scoped, tag = 'input window, operand 4, single buffered']
    #allocation11 [shape = 'u8[131072]{0}', space=vmem, size = 0x20000, scoped, tag = 'input window, operand 5, single buffered']
    #allocation12 [shape = 's32[1]{0}', space=sflag, size = 0x4, scoped, tag = 'scoped memory for tpu_custom_call.1']
    #allocation13 [shape = 'u8[512]{0}', space=vmem, size = 0x400, scoped, tag = 'input window, operand 6, single buffered']
    #allocation14 [shape = 'u8[32768]{0}', space=vmem, size = 0x8000, scoped, tag = 'input window, operand 7, single buffered']
    #allocation15 [shape = 's32[1]{0}', space=sflag, size = 0x4, scoped, tag = 'scoped memory for tpu_custom_call.1']
    #allocation16 [shape = 'u8[512]{0}', space=vmem, size = 0x400, scoped, tag = 'input window, operand 8, single buffered']
    #allocation17 [shape = 'u8[4096]{0}', space=vmem, size = 0x1000, scoped, tag = 'output window, operand 0, single buffered']
    %14 = vsyncpa [#allocation3], 0
    %15 = vsyncpa [#allocation6], 0
    %16 = vsyncpa [#allocation9], 0
    %17 = vsyncpa [#allocation12], 0
    %18 = vsyncpa [#allocation15], 0
    %19 = vsyncpa [#allocation4], 0
    // Predicated region
    $region2: #{tpu_custom_call.1} parent=1 // pred_check
      _
    $region3: #{tpu_custom_call.1} parent=1 // pred_check_branch
      %21 = sbr.rel (0) target = $region5
    $region4: #{tpu_custom_call.1} parent=1 // pred_region
      %23 = vsyncadd [#allocation3], 0
      %s25 = sshll.u32 %s0, 4
      %s26 = int_to_ptr.hbm [resolvable:$true] %s25
      %s27 = sshll.u32 [#allocation2], 4
      %s28 = int_to_ptr.vmem [resolvable:$true] %s27
      %30 = dma.hbm_to_vmem [thread:$0]  %s26, 64, %s28, [#allocation3]
    $region5: #{tpu_custom_call.1} parent=1 // pred_fallthru
      _
    // Predicated region
    $region6: #{tpu_custom_call.1} parent=1 // pred_check
      _
    $region7: #{tpu_custom_call.1} parent=1 // pred_check_branch
      %32 = sbr.rel (0) target = $region9
    $region8: #{tpu_custom_call.1} parent=1 // pred_region
      %34 = vsyncadd [#allocation6], 0
      %s35 = sshll.u32 %s1, 4
      %s36 = int_to_ptr.hbm [resolvable:$true] %s35
      %s37 = sshll.u32 [#allocation5], 4
      %s38 = int_to_ptr.vmem [resolvable:$true] %s37
      %43 = dma.hbm_to_vmem [thread:$0]  %s36, 16384, %s38, [#allocation6], 1024, 1024, 64
    $region9: #{tpu_custom_call.1} parent=1 // pred_fallthru
      _
    // Predicated region
    $region10: #{tpu_custom_call.1} parent=1 // pred_check
      _
    $region11: #{tpu_custom_call.1} parent=1 // pred_check_branch
      %45 = sbr.rel (0) target = $region13
    $region12: #{tpu_custom_call.1} parent=1 // pred_region
      %47 = vsyncadd [#allocation6], 0
      %s49 = sshll.u32 %s2, 4
      %s50 = int_to_ptr.hbm [resolvable:$true] %s49
      %s51 = sshll.u32 [#allocation7], 4
      %s52 = int_to_ptr.vmem [resolvable:$true] %s51
      %54 = dma.hbm_to_vmem [thread:$0]  %s50, 256, %s52, [#allocation6]
    $region13: #{tpu_custom_call.1} parent=1 // pred_fallthru
      _
    // Predicated region
    $region14: #{tpu_custom_call.1} parent=1 // pred_check
      _
    $region15: #{tpu_custom_call.1} parent=1 // pred_check_branch
      %56 = sbr.rel (0) target = $region17
    $region16: #{tpu_custom_call.1} parent=1 // pred_region
      %58 = vsyncadd [#allocation9], 0
      %s59 = sshll.u32 %s3, 4
      %s60 = int_to_ptr.hbm [resolvable:$true] %s59
      %s61 = sshll.u32 [#allocation8], 4
      %s62 = int_to_ptr.vmem [resolvable:$true] %s61
      %67 = dma.hbm_to_vmem [thread:$0]  %s60, 65536, %s62, [#allocation9], 256, 256, 16
    $region17: #{tpu_custom_call.1} parent=1 // pred_fallthru
      _
    // Predicated region
    $region18: #{tpu_custom_call.1} parent=1 // pred_check
      _
    $region19: #{tpu_custom_call.1} parent=1 // pred_check_branch
      %69 = sbr.rel (0) target = $region21
    $region20: #{tpu_custom_call.1} parent=1 // pred_region
      %71 = vsyncadd [#allocation9], 0
      %s73 = sshll.u32 %s4, 4
      %s74 = int_to_ptr.hbm [resolvable:$true] %s73
      %s75 = sshll.u32 [#allocation10], 4
      %s76 = int_to_ptr.vmem [resolvable:$true] %s75
      %78 = dma.hbm_to_vmem [thread:$0]  %s74, 64, %s76, [#allocation9]
    $region21: #{tpu_custom_call.1} parent=1 // pred_fallthru
      _
    // Predicated region
    $region22: #{tpu_custom_call.1} parent=1 // pred_check
      _
    $region23: #{tpu_custom_call.1} parent=1 // pred_check_branch
      %80 = sbr.rel (0) target = $region25
    $region24: #{tpu_custom_call.1} parent=1 // pred_region
      %82 = vsyncadd [#allocation12], 0
      %s83 = sshll.u32 %s5, 4
      %s84 = int_to_ptr.hbm [resolvable:$true] %s83
      %s85 = sshll.u32 [#allocation11], 4
      %s86 = int_to_ptr.vmem [resolvable:$true] %s85
      %91 = dma.hbm_to_vmem [thread:$0]  %s84, 4096, %s86, [#allocation12], 64, 64, 4
    $region25: #{tpu_custom_call.1} parent=1 // pred_fallthru
      _
    // Predicated region
    $region26: #{tpu_custom_call.1} parent=1 // pred_check
      _
    $region27: #{tpu_custom_call.1} parent=1 // pred_check_branch
      %93 = sbr.rel (0) target = $region29
    $region28: #{tpu_custom_call.1} parent=1 // pred_region
      %95 = vsyncadd [#allocation12], 0
      %s97 = sshll.u32 %s6, 4
      %s98 = int_to_ptr.hbm [resolvable:$true] %s97
      %s99 = sshll.u32 [#allocation13], 4
      %s100 = int_to_ptr.vmem [resolvable:$true] %s99
      %102 = dma.hbm_to_vmem [thread:$0]  %s98, 16, %s100, [#allocation12]
    $region29: #{tpu_custom_call.1} parent=1 // pred_fallthru
      _
    // Predicated region
    $region30: #{tpu_custom_call.1} parent=1 // pred_check
      _
    $region31: #{tpu_custom_call.1} parent=1 // pred_check_branch
      %104 = sbr.rel (0) target = $region33
    $region32: #{tpu_custom_call.1} parent=1 // pred_region
      %106 = vsyncadd [#allocation15], 0
      %s107 = sshll.u32 %s7, 4
      %s108 = int_to_ptr.hbm [resolvable:$true] %s107
      %s109 = sshll.u32 [#allocation14], 4
      %s110 = int_to_ptr.vmem [resolvable:$true] %s109
      %115 = dma.hbm_to_vmem [thread:$0]  %s108, 1024, %s110, [#allocation15], 64, 64, 4
    $region33: #{tpu_custom_call.1} parent=1 // pred_fallthru
      _
    // Predicated region
    $region34: #{tpu_custom_call.1} parent=1 // pred_check
      _
    $region35: #{tpu_custom_call.1} parent=1 // pred_check_branch
      %117 = sbr.rel (0) target = $region37
    $region36: #{tpu_custom_call.1} parent=1 // pred_region
      %119 = vsyncadd [#allocation15], 0
      %s121 = sshll.u32 %s8, 4
      %s122 = int_to_ptr.hbm [resolvable:$true] %s121
      %s123 = sshll.u32 [#allocation16], 4
      %s124 = int_to_ptr.vmem [resolvable:$true] %s123
      %126 = dma.hbm_to_vmem [thread:$0]  %s122, 16, %s124, [#allocation15]
    $region37: #{tpu_custom_call.1} parent=1 // pred_fallthru
      _
    // Predicated region
    $region38: #{tpu_custom_call.1} parent=1 // pred_check
      _
    $region39: #{tpu_custom_call.1} parent=1 // pred_check_branch
      %128 = sbr.rel (0) target = $region41
    $region40: #{tpu_custom_call.1} parent=1 // pred_region
      %130 = dma.done [#allocation3], 64
    $region41: #{tpu_custom_call.1} parent=1 // pred_fallthru
      _
    // Predicated region
    $region42: #{tpu_custom_call.1} parent=1 // pred_check
      _
    $region43: #{tpu_custom_call.1} parent=1 // pred_check_branch
      %132 = sbr.rel (0) target = $region45
    $region44: #{tpu_custom_call.1} parent=1 // pred_region
      %134 = dma.done [#allocation6], 16384
    $region45: #{tpu_custom_call.1} parent=1 // pred_fallthru
      _
    // Predicated region
    $region46: #{tpu_custom_call.1} parent=1 // pred_check
      _
    $region47: #{tpu_custom_call.1} parent=1 // pred_check_branch
      %136 = sbr.rel (0) target = $region49
    $region48: #{tpu_custom_call.1} parent=1 // pred_region
      %138 = dma.done [#allocation6], 256
    $region49: #{tpu_custom_call.1} parent=1 // pred_fallthru
      _
    // Predicated region
    $region50: #{tpu_custom_call.1} parent=1 // pred_check
      _
    $region51: #{tpu_custom_call.1} parent=1 // pred_check_branch
      %140 = sbr.rel (0) target = $region53
    $region52: #{tpu_custom_call.1} parent=1 // pred_region
      %142 = dma.done [#allocation9], 65536
    $region53: #{tpu_custom_call.1} parent=1 // pred_fallthru
      _
    // Predicated region
    $region54: #{tpu_custom_call.1} parent=1 // pred_check
      _
    $region55: #{tpu_custom_call.1} parent=1 // pred_check_branch
      %144 = sbr.rel (0) target = $region57
    $region56: #{tpu_custom_call.1} parent=1 // pred_region
      %146 = dma.done [#allocation9], 64
    $region57: #{tpu_custom_call.1} parent=1 // pred_fallthru
      _
    // Predicated region
    $region58: #{tpu_custom_call.1} parent=1 // pred_check
      _
    $region59: #{tpu_custom_call.1} parent=1 // pred_check_branch
      %148 = sbr.rel (0) target = $region61
    $region60: #{tpu_custom_call.1} parent=1 // pred_region
      %150 = dma.done [#allocation12], 4096
    $region61: #{tpu_custom_call.1} parent=1 // pred_fallthru
      _
    // Predicated region
    $region62: #{tpu_custom_call.1} parent=1 // pred_check
      _
    $region63: #{tpu_custom_call.1} parent=1 // pred_check_branch
      %152 = sbr.rel (0) target = $region65
    $region64: #{tpu_custom_call.1} parent=1 // pred_region
      %154 = dma.done [#allocation12], 16
    $region65: #{tpu_custom_call.1} parent=1 // pred_fallthru
      _
    // Predicated region
    $region66: #{tpu_custom_call.1} parent=1 // pred_check
      _
    $region67: #{tpu_custom_call.1} parent=1 // pred_check_branch
      %156 = sbr.rel (0) target = $region69
    $region68: #{tpu_custom_call.1} parent=1 // pred_region
      %158 = dma.done [#allocation15], 1024
    $region69: #{tpu_custom_call.1} parent=1 // pred_fallthru
      _
    // Predicated region
    $region70: #{tpu_custom_call.1} parent=1 // pred_check
      _
    $region71: #{tpu_custom_call.1} parent=1 // pred_check_branch
      %160 = sbr.rel (0) target = $region73
    $region72: #{tpu_custom_call.1} parent=1 // pred_region
      %162 = dma.done [#allocation15], 16
    $region73: #{tpu_custom_call.1} parent=1 // pred_fallthru
      _
    %v163 = vld [vmem:[#allocation2] sm:$0xf]
    %v164 = vld [vmem:[#allocation5] sm:$0xff]
    %v165 = vld [vmem:[#allocation5 + $0x8] sm:$0xff]
    %v166 = vld [vmem:[#allocation5 + $0x10] sm:$0xff]
    %v167 = vld [vmem:[#allocation5 + $0x18] sm:$0xff]
    %v168 = vld [vmem:[#allocation5 + $0x20] sm:$0xff]
    %v169 = vld [vmem:[#allocation5 + $0x28] sm:$0xff]
    %v170 = vld [vmem:[#allocation5 + $0x30] sm:$0xff]
    %v171 = vld [vmem:[#allocation5 + $0x38] sm:$0xff]
    %v172 = vld [vmem:[#allocation5 + $0x40] sm:$0xff]
    %v173 = vld [vmem:[#allocation5 + $0x48] sm:$0xff]
    %v174 = vld [vmem:[#allocation5 + $0x50] sm:$0xff]
    %v175 = vld [vmem:[#allocation5 + $0x58] sm:$0xff]
    %v176 = vld [vmem:[#allocation5 + $0x60] sm:$0xff]
    %v177 = vld [vmem:[#allocation5 + $0x68] sm:$0xff]
    %v178 = vld [vmem:[#allocation5 + $0x70] sm:$0xff]
    %v179 = vld [vmem:[#allocation5 + $0x78] sm:$0xff]
    %v180 = vld [vmem:[#allocation5 + $0x80] sm:$0xff]
    %v181 = vld [vmem:[#allocation5 + $0x88] sm:$0xff]
    %v182 = vld [vmem:[#allocation5 + $0x90] sm:$0xff]
    %v183 = vld [vmem:[#allocation5 + $0x98] sm:$0xff]
    %v184 = vld [vmem:[#allocation5 + $0xa0] sm:$0xff]
    %v185 = vld [vmem:[#allocation5 + $0xa8] sm:$0xff]
    %v186 = vld [vmem:[#allocation5 + $0xb0] sm:$0xff]
    %v187 = vld [vmem:[#allocation5 + $0xb8] sm:$0xff]
    %v188 = vld [vmem:[#allocation5 + $0xc0] sm:$0xff]
    %v189 = vld [vmem:[#allocation5 + $0xc8] sm:$0xff]
    %v190 = vld [vmem:[#allocation5 + $0xd0] sm:$0xff]
    %v191 = vld [vmem:[#allocation5 + $0xd8] sm:$0xff]
    %v192 = vld [vmem:[#allocation5 + $0xe0] sm:$0xff]
    %v193 = vld [vmem:[#allocation5 + $0xe8] sm:$0xff]
    %v194 = vld [vmem:[#allocation5 + $0xf0] sm:$0xff]
    %v195 = vld [vmem:[#allocation5 + $0xf8] sm:$0xff]
    %v196 = vld [vmem:[#allocation5 + $0x100] sm:$0xff]
    %v197 = vld [vmem:[#allocation5 + $0x108] sm:$0xff]
    %v198 = vld [vmem:[#allocation5 + $0x110] sm:$0xff]
    %v199 = vld [vmem:[#allocation5 + $0x118] sm:$0xff]
    %v200 = vld [vmem:[#allocation5 + $0x120] sm:$0xff]
    %v201 = vld [vmem:[#allocation5 + $0x128] sm:$0xff]
    %v202 = vld [vmem:[#allocation5 + $0x130] sm:$0xff]
    %v203 = vld [vmem:[#allocation5 + $0x138] sm:$0xff]
    %v204 = vld [vmem:[#allocation5 + $0x140] sm:$0xff]
    %v205 = vld [vmem:[#allocation5 + $0x148] sm:$0xff]
    %v206 = vld [vmem:[#allocation5 + $0x150] sm:$0xff]
    %v207 = vld [vmem:[#allocation5 + $0x158] sm:$0xff]
    %v208 = vld [vmem:[#allocation5 + $0x160] sm:$0xff]
    %v209 = vld [vmem:[#allocation5 + $0x168] sm:$0xff]
    %v210 = vld [vmem:[#allocation5 + $0x170] sm:$0xff]
    %v211 = vld [vmem:[#allocation5 + $0x178] sm:$0xff]
    %v212 = vld [vmem:[#allocation5 + $0x180] sm:$0xff]
    %v213 = vld [vmem:[#allocation5 + $0x188] sm:$0xff]
    %v214 = vld [vmem:[#allocation5 + $0x190] sm:$0xff]
    %v215 = vld [vmem:[#allocation5 + $0x198] sm:$0xff]
    %v216 = vld [vmem:[#allocation5 + $0x1a0] sm:$0xff]
    %v217 = vld [vmem:[#allocation5 + $0x1a8] sm:$0xff]
    %v218 = vld [vmem:[#allocation5 + $0x1b0] sm:$0xff]
    %v219 = vld [vmem:[#allocation5 + $0x1b8] sm:$0xff]
    %v220 = vld [vmem:[#allocation5 + $0x1c0] sm:$0xff]
    %v221 = vld [vmem:[#allocation5 + $0x1c8] sm:$0xff]
    %v222 = vld [vmem:[#allocation5 + $0x1d0] sm:$0xff]
    %v223 = vld [vmem:[#allocation5 + $0x1d8] sm:$0xff]
    %v224 = vld [vmem:[#allocation5 + $0x1e0] sm:$0xff]
    %v225 = vld [vmem:[#allocation5 + $0x1e8] sm:$0xff]
    %v226 = vld [vmem:[#allocation5 + $0x1f0] sm:$0xff]
    %v227 = vld [vmem:[#allocation5 + $0x1f8] sm:$0xff]
    %v228 = vld [vmem:[#allocation5 + $0x200] sm:$0xff]
    %v229 = vld [vmem:[#allocation5 + $0x208] sm:$0xff]
    %v230 = vld [vmem:[#allocation5 + $0x210] sm:$0xff]
    %v231 = vld [vmem:[#allocation5 + $0x218] sm:$0xff]
    %v232 = vld [vmem:[#allocation5 + $0x220] sm:$0xff]
    %v233 = vld [vmem:[#allocation5 + $0x228] sm:$0xff]
    %v234 = vld [vmem:[#allocation5 + $0x230] sm:$0xff]
    %v235 = vld [vmem:[#allocation5 + $0x238] sm:$0xff]
    %v236 = vld [vmem:[#allocation5 + $0x240] sm:$0xff]
    %v237 = vld [vmem:[#allocation5 + $0x248] sm:$0xff]
    %v238 = vld [vmem:[#allocation5 + $0x250] sm:$0xff]
    %v239 = vld [vmem:[#allocation5 + $0x258] sm:$0xff]
    %v240 = vld [vmem:[#allocation5 + $0x260] sm:$0xff]
    %v241 = vld [vmem:[#allocation5 + $0x268] sm:$0xff]
    %v242 = vld [vmem:[#allocation5 + $0x270] sm:$0xff]
    %v243 = vld [vmem:[#allocation5 + $0x278] sm:$0xff]
    %v244 = vld [vmem:[#allocation5 + $0x280] sm:$0xff]
    %v245 = vld [vmem:[#allocation5 + $0x288] sm:$0xff]
    %v246 = vld [vmem:[#allocation5 + $0x290] sm:$0xff]
    %v247 = vld [vmem:[#allocation5 + $0x298] sm:$0xff]
    %v248 = vld [vmem:[#allocation5 + $0x2a0] sm:$0xff]
    %v249 = vld [vmem:[#allocation5 + $0x2a8] sm:$0xff]
    %v250 = vld [vmem:[#allocation5 + $0x2b0] sm:$0xff]
    %v251 = vld [vmem:[#allocation5 + $0x2b8] sm:$0xff]
    %v252 = vld [vmem:[#allocation5 + $0x2c0] sm:$0xff]
    %v253 = vld [vmem:[#allocation5 + $0x2c8] sm:$0xff]
    %v254 = vld [vmem:[#allocation5 + $0x2d0] sm:$0xff]
    %v255 = vld [vmem:[#allocation5 + $0x2d8] sm:$0xff]
    %v256 = vld [vmem:[#allocation5 + $0x2e0] sm:$0xff]
    %v257 = vld [vmem:[#allocation5 + $0x2e8] sm:$0xff]
    %v258 = vld [vmem:[#allocation5 + $0x2f0] sm:$0xff]
    %v259 = vld [vmem:[#allocation5 + $0x2f8] sm:$0xff]
    %v260 = vld [vmem:[#allocation5 + $0x300] sm:$0xff]
    %v261 = vld [vmem:[#allocation5 + $0x308] sm:$0xff]
    %v262 = vld [vmem:[#allocation5 + $0x310] sm:$0xff]
    %v263 = vld [vmem:[#allocation5 + $0x318] sm:$0xff]
    %v264 = vld [vmem:[#allocation5 + $0x320] sm:$0xff]
    %v265 = vld [vmem:[#allocation5 + $0x328] sm:$0xff]
    %v266 = vld [vmem:[#allocation5 + $0x330] sm:$0xff]
    %v267 = vld [vmem:[#allocation5 + $0x338] sm:$0xff]
    %v268 = vld [vmem:[#allocation5 + $0x340] sm:$0xff]
    %v269 = vld [vmem:[#allocation5 + $0x348] sm:$0xff]
    %v270 = vld [vmem:[#allocation5 + $0x350] sm:$0xff]
    %v271 = vld [vmem:[#allocation5 + $0x358] sm:$0xff]
    %v272 = vld [vmem:[#allocation5 + $0x360] sm:$0xff]
    %v273 = vld [vmem:[#allocation5 + $0x368] sm:$0xff]
    %v274 = vld [vmem:[#allocation5 + $0x370] sm:$0xff]
    %v275 = vld [vmem:[#allocation5 + $0x378] sm:$0xff]
    %v276 = vld [vmem:[#allocation5 + $0x380] sm:$0xff]
    %v277 = vld [vmem:[#allocation5 + $0x388] sm:$0xff]
    %v278 = vld [vmem:[#allocation5 + $0x390] sm:$0xff]
    %v279 = vld [vmem:[#allocation5 + $0x398] sm:$0xff]
    %v280 = vld [vmem:[#allocation5 + $0x3a0] sm:$0xff]
    %v281 = vld [vmem:[#allocation5 + $0x3a8] sm:$0xff]
    %v282 = vld [vmem:[#allocation5 + $0x3b0] sm:$0xff]
    %v283 = vld [vmem:[#allocation5 + $0x3b8] sm:$0xff]
    %v284 = vld [vmem:[#allocation5 + $0x3c0] sm:$0xff]
    %v285 = vld [vmem:[#allocation5 + $0x3c8] sm:$0xff]
    %v286 = vld [vmem:[#allocation5 + $0x3d0] sm:$0xff]
    %v287 = vld [vmem:[#allocation5 + $0x3d8] sm:$0xff]
    %v288 = vld [vmem:[#allocation5 + $0x3e0] sm:$0xff]
    %v289 = vld [vmem:[#allocation5 + $0x3e8] sm:$0xff]
    %v290 = vld [vmem:[#allocation5 + $0x3f0] sm:$0xff]
    %v291 = vld [vmem:[#allocation5 + $0x3f8] sm:$0xff]
    %v292 = vld [vmem:[#allocation7] sm:$0xff]
    %v293 = vld [vmem:[#allocation7 + $0x8] sm:$0xff]
    %v296 = vperm.slane %v292, 0
    %v297 = vperm.slane %v292, 1
    %v298 = vperm.slane %v292, 2
    %v299 = vperm.slane %v292, 3
    %v300 = vperm.slane %v292, 4
    %v301 = vperm.slane %v292, 5
    %v302 = vperm.slane %v292, 6
    %v303 = vperm.slane %v292, 7
    %v304 = vperm.slane %v293, 0
    %v305 = vperm.slane %v293, 1
    %v306 = vperm.slane %v293, 2
    %v307 = vperm.slane %v293, 3
    %v308 = vperm.slane %v293, 4
    %v309 = vperm.slane %v293, 5
    %v310 = vperm.slane %v293, 6
    %v311 = vperm.slane %v293, 7
    %v456 = vunpack.c.l.b16 %v164
    %v457 = vunpack.c.h.b16 %v164
    %v458 = vunpack.c.l.b16 %v165
    %v459 = vunpack.c.h.b16 %v165
    %v460 = vunpack.c.l.b16 %v166
    %v461 = vunpack.c.h.b16 %v166
    %v462 = vunpack.c.l.b16 %v167
    %v463 = vunpack.c.h.b16 %v167
    %v464 = vunpack.c.l.b16 %v168
    %v465 = vunpack.c.h.b16 %v168
    %v466 = vunpack.c.l.b16 %v169
    %v467 = vunpack.c.h.b16 %v169
    %v468 = vunpack.c.l.b16 %v170
    %v469 = vunpack.c.h.b16 %v170
    %v470 = vunpack.c.l.b16 %v171
    %v471 = vunpack.c.h.b16 %v171
    %v472 = vunpack.c.l.b16 %v172
    %v473 = vunpack.c.h.b16 %v172
    %v474 = vunpack.c.l.b16 %v173
    %v475 = vunpack.c.h.b16 %v173
    %v476 = vunpack.c.l.b16 %v174
    %v477 = vunpack.c.h.b16 %v174
    %v478 = vunpack.c.l.b16 %v175
    %v479 = vunpack.c.h.b16 %v175
    %v480 = vunpack.c.l.b16 %v176
    %v481 = vunpack.c.h.b16 %v176
    %v482 = vunpack.c.l.b16 %v177
    %v483 = vunpack.c.h.b16 %v177
    %v484 = vunpack.c.l.b16 %v178
    %v485 = vunpack.c.h.b16 %v178
    %v486 = vunpack.c.l.b16 %v179
    %v487 = vunpack.c.h.b16 %v179
    %v488 = vunpack.c.l.b16 %v180
    %v489 = vunpack.c.h.b16 %v180
    %v490 = vunpack.c.l.b16 %v181
    %v491 = vunpack.c.h.b16 %v181
    %v492 = vunpack.c.l.b16 %v182
    %v493 = vunpack.c.h.b16 %v182
    %v494 = vunpack.c.l.b16 %v183
    %v495 = vunpack.c.h.b16 %v183
    %v496 = vunpack.c.l.b16 %v184
    %v497 = vunpack.c.h.b16 %v184
    %v498 = vunpack.c.l.b16 %v185
    %v499 = vunpack.c.h.b16 %v185
    %v500 = vunpack.c.l.b16 %v186
    %v501 = vunpack.c.h.b16 %v186
    %v502 = vunpack.c.l.b16 %v187
    %v503 = vunpack.c.h.b16 %v187
    %v504 = vunpack.c.l.b16 %v188
    %v505 = vunpack.c.h.b16 %v188
    %v506 = vunpack.c.l.b16 %v189
    %v507 = vunpack.c.h.b16 %v189
    %v508 = vunpack.c.l.b16 %v190
    %v509 = vunpack.c.h.b16 %v190
    %v510 = vunpack.c.l.b16 %v191
    %v511 = vunpack.c.h.b16 %v191
    %v512 = vunpack.c.l.b16 %v192
    %v513 = vunpack.c.h.b16 %v192
    %v514 = vunpack.c.l.b16 %v193
    %v515 = vunpack.c.h.b16 %v193
    %v516 = vunpack.c.l.b16 %v194
    %v517 = vunpack.c.h.b16 %v194
    %v518 = vunpack.c.l.b16 %v195
    %v519 = vunpack.c.h.b16 %v195
    %v520 = vunpack.c.l.b16 %v196
    %v521 = vunpack.c.h.b16 %v196
    %v522 = vunpack.c.l.b16 %v197
    %v523 = vunpack.c.h.b16 %v197
    %v524 = vunpack.c.l.b16 %v198
    %v525 = vunpack.c.h.b16 %v198
    %v526 = vunpack.c.l.b16 %v199
    %v527 = vunpack.c.h.b16 %v199
    %v528 = vunpack.c.l.b16 %v200
    %v529 = vunpack.c.h.b16 %v200
    %v530 = vunpack.c.l.b16 %v201
    %v531 = vunpack.c.h.b16 %v201
    %v532 = vunpack.c.l.b16 %v202
    %v533 = vunpack.c.h.b16 %v202
    %v534 = vunpack.c.l.b16 %v203
    %v535 = vunpack.c.h.b16 %v203
    %v536 = vunpack.c.l.b16 %v204
    %v537 = vunpack.c.h.b16 %v204
    %v538 = vunpack.c.l.b16 %v205
    %v539 = vunpack.c.h.b16 %v205
    %v540 = vunpack.c.l.b16 %v206
    %v541 = vunpack.c.h.b16 %v206
    %v542 = vunpack.c.l.b16 %v207
    %v543 = vunpack.c.h.b16 %v207
    %v544 = vunpack.c.l.b16 %v208
    %v545 = vunpack.c.h.b16 %v208
    %v546 = vunpack.c.l.b16 %v209
    %v547 = vunpack.c.h.b16 %v209
    %v548 = vunpack.c.l.b16 %v210
    %v549 = vunpack.c.h.b16 %v210
    %v550 = vunpack.c.l.b16 %v211
    %v551 = vunpack.c.h.b16 %v211
    %v552 = vunpack.c.l.b16 %v212
    %v553 = vunpack.c.h.b16 %v212
    %v554 = vunpack.c.l.b16 %v213
    %v555 = vunpack.c.h.b16 %v213
    %v556 = vunpack.c.l.b16 %v214
    %v557 = vunpack.c.h.b16 %v214
    %v558 = vunpack.c.l.b16 %v215
    %v559 = vunpack.c.h.b16 %v215
    %v560 = vunpack.c.l.b16 %v216
    %v561 = vunpack.c.h.b16 %v216
    %v562 = vunpack.c.l.b16 %v217
    %v563 = vunpack.c.h.b16 %v217
    %v564 = vunpack.c.l.b16 %v218
    %v565 = vunpack.c.h.b16 %v218
    %v566 = vunpack.c.l.b16 %v219
    %v567 = vunpack.c.h.b16 %v219
    %v568 = vunpack.c.l.b16 %v220
    %v569 = vunpack.c.h.b16 %v220
    %v570 = vunpack.c.l.b16 %v221
    %v571 = vunpack.c.h.b16 %v221
    %v572 = vunpack.c.l.b16 %v222
    %v573 = vunpack.c.h.b16 %v222
    %v574 = vunpack.c.l.b16 %v223
    %v575 = vunpack.c.h.b16 %v223
    %v576 = vunpack.c.l.b16 %v224
    %v577 = vunpack.c.h.b16 %v224
    %v578 = vunpack.c.l.b16 %v225
    %v579 = vunpack.c.h.b16 %v225
    %v580 = vunpack.c.l.b16 %v226
    %v581 = vunpack.c.h.b16 %v226
    %v582 = vunpack.c.l.b16 %v227
    %v583 = vunpack.c.h.b16 %v227
    %v584 = vunpack.c.l.b16 %v228
    %v585 = vunpack.c.h.b16 %v228
    %v586 = vunpack.c.l.b16 %v229
    %v587 = vunpack.c.h.b16 %v229
    %v588 = vunpack.c.l.b16 %v230
    %v589 = vunpack.c.h.b16 %v230
    %v590 = vunpack.c.l.b16 %v231
    %v591 = vunpack.c.h.b16 %v231
    %v592 = vunpack.c.l.b16 %v232
    %v593 = vunpack.c.h.b16 %v232
    %v594 = vunpack.c.l.b16 %v233
    %v595 = vunpack.c.h.b16 %v233
    %v596 = vunpack.c.l.b16 %v234
    %v597 = vunpack.c.h.b16 %v234
    %v598 = vunpack.c.l.b16 %v235
    %v599 = vunpack.c.h.b16 %v235
    %v600 = vunpack.c.l.b16 %v236
    %v601 = vunpack.c.h.b16 %v236
    %v602 = vunpack.c.l.b16 %v237
    %v603 = vunpack.c.h.b16 %v237
    %v604 = vunpack.c.l.b16 %v238
    %v605 = vunpack.c.h.b16 %v238
    %v606 = vunpack.c.l.b16 %v239
    %v607 = vunpack.c.h.b16 %v239
    %v608 = vunpack.c.l.b16 %v240
    %v609 = vunpack.c.h.b16 %v240
    %v610 = vunpack.c.l.b16 %v241
    %v611 = vunpack.c.h.b16 %v241
    %v612 = vunpack.c.l.b16 %v242
    %v613 = vunpack.c.h.b16 %v242
    %v614 = vunpack.c.l.b16 %v243
    %v615 = vunpack.c.h.b16 %v243
    %v616 = vunpack.c.l.b16 %v244
    %v617 = vunpack.c.h.b16 %v244
    %v618 = vunpack.c.l.b16 %v245
    %v619 = vunpack.c.h.b16 %v245
    %v620 = vunpack.c.l.b16 %v246
    %v621 = vunpack.c.h.b16 %v246
    %v622 = vunpack.c.l.b16 %v247
    %v623 = vunpack.c.h.b16 %v247
    %v624 = vunpack.c.l.b16 %v248
    %v625 = vunpack.c.h.b16 %v248
    %v626 = vunpack.c.l.b16 %v249
    %v627 = vunpack.c.h.b16 %v249
    %v628 = vunpack.c.l.b16 %v250
    %v629 = vunpack.c.h.b16 %v250
    %v630 = vunpack.c.l.b16 %v251
    %v631 = vunpack.c.h.b16 %v251
    %v632 = vunpack.c.l.b16 %v252
    %v633 = vunpack.c.h.b16 %v252
    %v634 = vunpack.c.l.b16 %v253
    %v635 = vunpack.c.h.b16 %v253
    %v636 = vunpack.c.l.b16 %v254
    %v637 = vunpack.c.h.b16 %v254
    %v638 = vunpack.c.l.b16 %v255
    %v639 = vunpack.c.h.b16 %v255
    %v640 = vunpack.c.l.b16 %v256
    %v641 = vunpack.c.h.b16 %v256
    %v642 = vunpack.c.l.b16 %v257
    %v643 = vunpack.c.h.b16 %v257
    %v644 = vunpack.c.l.b16 %v258
    %v645 = vunpack.c.h.b16 %v258
    %v646 = vunpack.c.l.b16 %v259
    %v647 = vunpack.c.h.b16 %v259
    %v648 = vunpack.c.l.b16 %v260
    %v649 = vunpack.c.h.b16 %v260
    %v650 = vunpack.c.l.b16 %v261
    %v651 = vunpack.c.h.b16 %v261
    %v652 = vunpack.c.l.b16 %v262
    %v653 = vunpack.c.h.b16 %v262
    %v654 = vunpack.c.l.b16 %v263
    %v655 = vunpack.c.h.b16 %v263
    %v656 = vunpack.c.l.b16 %v264
    %v657 = vunpack.c.h.b16 %v264
    %v658 = vunpack.c.l.b16 %v265
    %v659 = vunpack.c.h.b16 %v265
    %v660 = vunpack.c.l.b16 %v266
    %v661 = vunpack.c.h.b16 %v266
    %v662 = vunpack.c.l.b16 %v267
    %v663 = vunpack.c.h.b16 %v267
    %v664 = vunpack.c.l.b16 %v268
    %v665 = vunpack.c.h.b16 %v268
    %v666 = vunpack.c.l.b16 %v269
    %v667 = vunpack.c.h.b16 %v269
    %v668 = vunpack.c.l.b16 %v270
    %v669 = vunpack.c.h.b16 %v270
    %v670 = vunpack.c.l.b16 %v271
    %v671 = vunpack.c.h.b16 %v271
    %v672 = vunpack.c.l.b16 %v272
    %v673 = vunpack.c.h.b16 %v272
    %v674 = vunpack.c.l.b16 %v273
    %v675 = vunpack.c.h.b16 %v273
    %v676 = vunpack.c.l.b16 %v274
    %v677 = vunpack.c.h.b16 %v274
    %v678 = vunpack.c.l.b16 %v275
    %v679 = vunpack.c.h.b16 %v275
    %v680 = vunpack.c.l.b16 %v276
    %v681 = vunpack.c.h.b16 %v276
    %v682 = vunpack.c.l.b16 %v277
    %v683 = vunpack.c.h.b16 %v277
    %v684 = vunpack.c.l.b16 %v278
    %v685 = vunpack.c.h.b16 %v278
    %v686 = vunpack.c.l.b16 %v279
    %v687 = vunpack.c.h.b16 %v279
    %v688 = vunpack.c.l.b16 %v280
    %v689 = vunpack.c.h.b16 %v280
    %v690 = vunpack.c.l.b16 %v281
    %v691 = vunpack.c.h.b16 %v281
    %v692 = vunpack.c.l.b16 %v282
    %v693 = vunpack.c.h.b16 %v282
    %v694 = vunpack.c.l.b16 %v283
    %v695 = vunpack.c.h.b16 %v283
    %v696 = vunpack.c.l.b16 %v284
    %v697 = vunpack.c.h.b16 %v284
    %v698 = vunpack.c.l.b16 %v285
    %v699 = vunpack.c.h.b16 %v285
    %v700 = vunpack.c.l.b16 %v286
    %v701 = vunpack.c.h.b16 %v286
    %v702 = vunpack.c.l.b16 %v287
    %v703 = vunpack.c.h.b16 %v287
    %v704 = vunpack.c.l.b16 %v288
    %v705 = vunpack.c.h.b16 %v288
    %v706 = vunpack.c.l.b16 %v289
    %v707 = vunpack.c.h.b16 %v289
    %v708 = vunpack.c.l.b16 %v290
    %v709 = vunpack.c.h.b16 %v290
    %v710 = vunpack.c.l.b16 %v291
    %v711 = vunpack.c.h.b16 %v291
    %v712 = vpack.c.b16 %v472, %v456
    %v713 = vpack.c.b16 %v473, %v457
    %v714 = vpack.c.b16 %v474, %v458
    %v715 = vpack.c.b16 %v475, %v459
    %v716 = vpack.c.b16 %v476, %v460
    %v717 = vpack.c.b16 %v477, %v461
    %v718 = vpack.c.b16 %v478, %v462
    %v719 = vpack.c.b16 %v479, %v463
    %v720 = vpack.c.b16 %v480, %v464
    %v721 = vpack.c.b16 %v481, %v465
    %v722 = vpack.c.b16 %v482, %v466
    %v723 = vpack.c.b16 %v483, %v467
    %v724 = vpack.c.b16 %v484, %v468
    %v725 = vpack.c.b16 %v485, %v469
    %v726 = vpack.c.b16 %v486, %v470
    %v727 = vpack.c.b16 %v487, %v471
    %v728 = vpack.c.b16 %v504, %v488
    %v729 = vpack.c.b16 %v505, %v489
    %v730 = vpack.c.b16 %v506, %v490
    %v731 = vpack.c.b16 %v507, %v491
    %v732 = vpack.c.b16 %v508, %v492
    %v733 = vpack.c.b16 %v509, %v493
    %v734 = vpack.c.b16 %v510, %v494
    %v735 = vpack.c.b16 %v511, %v495
    %v736 = vpack.c.b16 %v512, %v496
    %v737 = vpack.c.b16 %v513, %v497
    %v738 = vpack.c.b16 %v514, %v498
    %v739 = vpack.c.b16 %v515, %v499
    %v740 = vpack.c.b16 %v516, %v500
    %v741 = vpack.c.b16 %v517, %v501
    %v742 = vpack.c.b16 %v518, %v502
    %v743 = vpack.c.b16 %v519, %v503
    %v744 = vpack.c.b16 %v536, %v520
    %v745 = vpack.c.b16 %v537, %v521
    %v746 = vpack.c.b16 %v538, %v522
    %v747 = vpack.c.b16 %v539, %v523
    %v748 = vpack.c.b16 %v540, %v524
    %v749 = vpack.c.b16 %v541, %v525
    %v750 = vpack.c.b16 %v542, %v526
    %v751 = vpack.c.b16 %v543, %v527
    %v752 = vpack.c.b16 %v544, %v528
    %v753 = vpack.c.b16 %v545, %v529
    %v754 = vpack.c.b16 %v546, %v530
    %v755 = vpack.c.b16 %v547, %v531
    %v756 = vpack.c.b16 %v548, %v532
    %v757 = vpack.c.b16 %v549, %v533
    %v758 = vpack.c.b16 %v550, %v534
    %v759 = vpack.c.b16 %v551, %v535
    %v760 = vpack.c.b16 %v568, %v552
    %v761 = vpack.c.b16 %v569, %v553
    %v762 = vpack.c.b16 %v570, %v554
    %v763 = vpack.c.b16 %v571, %v555
    %v764 = vpack.c.b16 %v572, %v556
    %v765 = vpack.c.b16 %v573, %v557
    %v766 = vpack.c.b16 %v574, %v558
    %v767 = vpack.c.b16 %v575, %v559
    %v768 = vpack.c.b16 %v576, %v560
    %v769 = vpack.c.b16 %v577, %v561
    %v770 = vpack.c.b16 %v578, %v562
    %v771 = vpack.c.b16 %v579, %v563
    %v772 = vpack.c.b16 %v580, %v564
    %v773 = vpack.c.b16 %v581, %v565
    %v774 = vpack.c.b16 %v582, %v566
    %v775 = vpack.c.b16 %v583, %v567
    %v776 = vpack.c.b16 %v600, %v584
    %v777 = vpack.c.b16 %v601, %v585
    %v778 = vpack.c.b16 %v602, %v586
    %v779 = vpack.c.b16 %v603, %v587
    %v780 = vpack.c.b16 %v604, %v588
    %v781 = vpack.c.b16 %v605, %v589
    %v782 = vpack.c.b16 %v606, %v590
    %v783 = vpack.c.b16 %v607, %v591
    %v784 = vpack.c.b16 %v608, %v592
    %v785 = vpack.c.b16 %v609, %v593
    %v786 = vpack.c.b16 %v610, %v594
    %v787 = vpack.c.b16 %v611, %v595
    %v788 = vpack.c.b16 %v612, %v596
    %v789 = vpack.c.b16 %v613, %v597
    %v790 = vpack.c.b16 %v614, %v598
    %v791 = vpack.c.b16 %v615, %v599
    %v792 = vpack.c.b16 %v632, %v616
    %v793 = vpack.c.b16 %v633, %v617
    %v794 = vpack.c.b16 %v634, %v618
    %v795 = vpack.c.b16 %v635, %v619
    %v796 = vpack.c.b16 %v636, %v620
    %v797 = vpack.c.b16 %v637, %v621
    %v798 = vpack.c.b16 %v638, %v622
    %v799 = vpack.c.b16 %v639, %v623
    %v800 = vpack.c.b16 %v640, %v624
    %v801 = vpack.c.b16 %v641, %v625
    %v802 = vpack.c.b16 %v642, %v626
    %v803 = vpack.c.b16 %v643, %v627
    %v804 = vpack.c.b16 %v644, %v628
    %v805 = vpack.c.b16 %v645, %v629
    %v806 = vpack.c.b16 %v646, %v630
    %v807 = vpack.c.b16 %v647, %v631
    %v808 = vpack.c.b16 %v664, %v648
    %v809 = vpack.c.b16 %v665, %v649
    %v810 = vpack.c.b16 %v666, %v650
    %v811 = vpack.c.b16 %v667, %v651
    %v812 = vpack.c.b16 %v668, %v652
    %v813 = vpack.c.b16 %v669, %v653
    %v814 = vpack.c.b16 %v670, %v654
    %v815 = vpack.c.b16 %v671, %v655
    %v816 = vpack.c.b16 %v672, %v656
    %v817 = vpack.c.b16 %v673, %v657
    %v818 = vpack.c.b16 %v674, %v658
    %v819 = vpack.c.b16 %v675, %v659
    %v820 = vpack.c.b16 %v676, %v660
    %v821 = vpack.c.b16 %v677, %v661
    %v822 = vpack.c.b16 %v678, %v662
    %v823 = vpack.c.b16 %v679, %v663
    %v824 = vpack.c.b16 %v696, %v680
    %v825 = vpack.c.b16 %v697, %v681
    %v826 = vpack.c.b16 %v698, %v682
    %v827 = vpack.c.b16 %v699, %v683
    %v828 = vpack.c.b16 %v700, %v684
    %v829 = vpack.c.b16 %v701, %v685
    %v830 = vpack.c.b16 %v702, %v686
    %v831 = vpack.c.b16 %v703, %v687
    %v832 = vpack.c.b16 %v704, %v688
    %v833 = vpack.c.b16 %v705, %v689
    %v834 = vpack.c.b16 %v706, %v690
    %v835 = vpack.c.b16 %v707, %v691
    %v836 = vpack.c.b16 %v708, %v692
    %v837 = vpack.c.b16 %v709, %v693
    %v838 = vpack.c.b16 %v710, %v694
    %v839 = vpack.c.b16 %v711, %v695
    %968 = vmatpush.bf16.msra.mxu0 %v824
    %969 = vmatpush.bf16.msra.mxu0 %v808
    %970 = vmatpush.bf16.msra.mxu0 %v792
    %971 = vmatpush.bf16.msra.mxu0 %v776
    %972 = vmatpush.bf16.msra.mxu0 %v760
    %973 = vmatpush.bf16.msra.mxu0 %v744
    %974 = vmatpush.bf16.msra.mxu0 %v728
    %975 = vmatpush.bf16.msra.mxu0 %v712
    %976 = vmatmul.bf16.gmra.mxu0 %v163
    %v977 = vpop.f32.mrf.mxu0
    %v978 = vadd.f32 %v296, %v977
    %v979 = vpop.f32.mrf.mxu0
    %980 = vdwg.mxu0
    %981 = vmatpush.bf16.msra.mxu0 %v825
    %982 = vmatpush.bf16.msra.mxu0 %v809
    %983 = vmatpush.bf16.msra.mxu0 %v793
    %984 = vmatpush.bf16.msra.mxu0 %v777
    %985 = vmatpush.bf16.msra.mxu0 %v761
    %986 = vmatpush.bf16.msra.mxu0 %v745
    %987 = vmatpush.bf16.msra.mxu0 %v729
    %988 = vmatpush.bf16.msra.mxu0 %v713
    %989 = vmatmul.bf16.gmra.mxu0 %v163
    %v990 = vpop.f32.mrf.mxu0
    %v991 = vadd.f32 %v297, %v990
    %v992 = vpop.f32.mrf.mxu0
    %993 = vdwg.mxu0
    %994 = vmatpush.bf16.msra.mxu0 %v826
    %995 = vmatpush.bf16.msra.mxu0 %v810
    %996 = vmatpush.bf16.msra.mxu0 %v794
    %997 = vmatpush.bf16.msra.mxu0 %v778
    %998 = vmatpush.bf16.msra.mxu0 %v762
    %999 = vmatpush.bf16.msra.mxu0 %v746
    %1000 = vmatpush.bf16.msra.mxu0 %v730
    %1001 = vmatpush.bf16.msra.mxu0 %v714
    %1002 = vmatmul.bf16.gmra.mxu0 %v163
    %v1003 = vpop.f32.mrf.mxu0
    %v1004 = vadd.f32 %v298, %v1003
    %v1005 = vpop.f32.mrf.mxu0
    %1006 = vdwg.mxu0
    %1007 = vmatpush.bf16.msra.mxu0 %v827
    %1008 = vmatpush.bf16.msra.mxu0 %v811
    %1009 = vmatpush.bf16.msra.mxu0 %v795
    %1010 = vmatpush.bf16.msra.mxu0 %v779
    %1011 = vmatpush.bf16.msra.mxu0 %v763
    %1012 = vmatpush.bf16.msra.mxu0 %v747
    %1013 = vmatpush.bf16.msra.mxu0 %v731
    %1014 = vmatpush.bf16.msra.mxu0 %v715
    %1015 = vmatmul.bf16.gmra.mxu0 %v163
    %v1016 = vpop.f32.mrf.mxu0
    %v1017 = vadd.f32 %v299, %v1016
    %v1018 = vpop.f32.mrf.mxu0
    %1019 = vdwg.mxu0
    %1020 = vmatpush.bf16.msra.mxu0 %v828
    %1021 = vmatpush.bf16.msra.mxu0 %v812
    %1022 = vmatpush.bf16.msra.mxu0 %v796
    %1023 = vmatpush.bf16.msra.mxu0 %v780
    %1024 = vmatpush.bf16.msra.mxu0 %v764
    %1025 = vmatpush.bf16.msra.mxu0 %v748
    %1026 = vmatpush.bf16.msra.mxu0 %v732
    %1027 = vmatpush.bf16.msra.mxu0 %v716
    %1028 = vmatmul.bf16.gmra.mxu0 %v163
    %v1029 = vpop.f32.mrf.mxu0
    %v1030 = vadd.f32 %v300, %v1029
    %v1031 = vpop.f32.mrf.mxu0
    %1032 = vdwg.mxu0
    %1033 = vmatpush.bf16.msra.mxu0 %v829
    %1034 = vmatpush.bf16.msra.mxu0 %v813
    %1035 = vmatpush.bf16.msra.mxu0 %v797
    %1036 = vmatpush.bf16.msra.mxu0 %v781
    %1037 = vmatpush.bf16.msra.mxu0 %v765
    %1038 = vmatpush.bf16.msra.mxu0 %v749
    %1039 = vmatpush.bf16.msra.mxu0 %v733
    %1040 = vmatpush.bf16.msra.mxu0 %v717
    %1041 = vmatmul.bf16.gmra.mxu0 %v163
    %v1042 = vpop.f32.mrf.mxu0
    %v1043 = vadd.f32 %v301, %v1042
    %v1044 = vpop.f32.mrf.mxu0
    %1045 = vdwg.mxu0
    %1046 = vmatpush.bf16.msra.mxu0 %v830
    %1047 = vmatpush.bf16.msra.mxu0 %v814
    %1048 = vmatpush.bf16.msra.mxu0 %v798
    %1049 = vmatpush.bf16.msra.mxu0 %v782
    %1050 = vmatpush.bf16.msra.mxu0 %v766
    %1051 = vmatpush.bf16.msra.mxu0 %v750
    %1052 = vmatpush.bf16.msra.mxu0 %v734
    %1053 = vmatpush.bf16.msra.mxu0 %v718
    %1054 = vmatmul.bf16.gmra.mxu0 %v163
    %v1055 = vpop.f32.mrf.mxu0
    %v1056 = vadd.f32 %v302, %v1055
    %v1057 = vpop.f32.mrf.mxu0
    %1058 = vdwg.mxu0
    %1059 = vmatpush.bf16.msra.mxu0 %v831
    %1060 = vmatpush.bf16.msra.mxu0 %v815
    %1061 = vmatpush.bf16.msra.mxu0 %v799
    %1062 = vmatpush.bf16.msra.mxu0 %v783
    %1063 = vmatpush.bf16.msra.mxu0 %v767
    %1064 = vmatpush.bf16.msra.mxu0 %v751
    %1065 = vmatpush.bf16.msra.mxu0 %v735
    %1066 = vmatpush.bf16.msra.mxu0 %v719
    %1067 = vmatmul.bf16.gmra.mxu0 %v163
    %v1068 = vpop.f32.mrf.mxu0
    %v1069 = vadd.f32 %v303, %v1068
    %v1070 = vpop.f32.mrf.mxu0
    %1071 = vdwg.mxu0
    %1072 = vmatpush.bf16.msra.mxu0 %v832
    %1073 = vmatpush.bf16.msra.mxu0 %v816
    %1074 = vmatpush.bf16.msra.mxu0 %v800
    %1075 = vmatpush.bf16.msra.mxu0 %v784
    %1076 = vmatpush.bf16.msra.mxu0 %v768
    %1077 = vmatpush.bf16.msra.mxu0 %v752
    %1078 = vmatpush.bf16.msra.mxu0 %v736
    %1079 = vmatpush.bf16.msra.mxu0 %v720
    %1080 = vmatmul.bf16.gmra.mxu0 %v163
    %v1081 = vpop.f32.mrf.mxu0
    %v1082 = vadd.f32 %v304, %v1081
    %v1083 = vpop.f32.mrf.mxu0
    %1084 = vdwg.mxu0
    %1085 = vmatpush.bf16.msra.mxu0 %v833
    %1086 = vmatpush.bf16.msra.mxu0 %v817
    %1087 = vmatpush.bf16.msra.mxu0 %v801
    %1088 = vmatpush.bf16.msra.mxu0 %v785
    %1089 = vmatpush.bf16.msra.mxu0 %v769
    %1090 = vmatpush.bf16.msra.mxu0 %v753
    %1091 = vmatpush.bf16.msra.mxu0 %v737
    %1092 = vmatpush.bf16.msra.mxu0 %v721
    %1093 = vmatmul.bf16.gmra.mxu0 %v163
    %v1094 = vpop.f32.mrf.mxu0
    %v1095 = vadd.f32 %v305, %v1094
    %v1096 = vpop.f32.mrf.mxu0
    %1097 = vdwg.mxu0
    %1098 = vmatpush.bf16.msra.mxu0 %v834
    %1099 = vmatpush.bf16.msra.mxu0 %v818
    %1100 = vmatpush.bf16.msra.mxu0 %v802
    %1101 = vmatpush.bf16.msra.mxu0 %v786
    %1102 = vmatpush.bf16.msra.mxu0 %v770
    %1103 = vmatpush.bf16.msra.mxu0 %v754
    %1104 = vmatpush.bf16.msra.mxu0 %v738
    %1105 = vmatpush.bf16.msra.mxu0 %v722
    %1106 = vmatmul.bf16.gmra.mxu0 %v163
    %v1107 = vpop.f32.mrf.mxu0
    %v1108 = vadd.f32 %v306, %v1107
    %v1109 = vpop.f32.mrf.mxu0
    %1110 = vdwg.mxu0
    %1111 = vmatpush.bf16.msra.mxu0 %v835
    %1112 = vmatpush.bf16.msra.mxu0 %v819
    %1113 = vmatpush.bf16.msra.mxu0 %v803
    %1114 = vmatpush.bf16.msra.mxu0 %v787
    %1115 = vmatpush.bf16.msra.mxu0 %v771
    %1116 = vmatpush.bf16.msra.mxu0 %v755
    %1117 = vmatpush.bf16.msra.mxu0 %v739
    %1118 = vmatpush.bf16.msra.mxu0 %v723
    %1119 = vmatmul.bf16.gmra.mxu0 %v163
    %v1120 = vpop.f32.mrf.mxu0
    %v1121 = vadd.f32 %v307, %v1120
    %v1122 = vpop.f32.mrf.mxu0
    %1123 = vdwg.mxu0
    %1124 = vmatpush.bf16.msra.mxu0 %v836
    %1125 = vmatpush.bf16.msra.mxu0 %v820
    %1126 = vmatpush.bf16.msra.mxu0 %v804
    %1127 = vmatpush.bf16.msra.mxu0 %v788
    %1128 = vmatpush.bf16.msra.mxu0 %v772
    %1129 = vmatpush.bf16.msra.mxu0 %v756
    %1130 = vmatpush.bf16.msra.mxu0 %v740
    %1131 = vmatpush.bf16.msra.mxu0 %v724
    %1132 = vmatmul.bf16.gmra.mxu0 %v163
    %v1133 = vpop.f32.mrf.mxu0
    %v1134 = vadd.f32 %v308, %v1133
    %v1135 = vpop.f32.mrf.mxu0
    %1136 = vdwg.mxu0
    %1137 = vmatpush.bf16.msra.mxu0 %v837
    %1138 = vmatpush.bf16.msra.mxu0 %v821
    %1139 = vmatpush.bf16.msra.mxu0 %v805
    %1140 = vmatpush.bf16.msra.mxu0 %v789
    %1141 = vmatpush.bf16.msra.mxu0 %v773
    %1142 = vmatpush.bf16.msra.mxu0 %v757
    %1143 = vmatpush.bf16.msra.mxu0 %v741
    %1144 = vmatpush.bf16.msra.mxu0 %v725
    %1145 = vmatmul.bf16.gmra.mxu0 %v163
    %v1146 = vpop.f32.mrf.mxu0
    %v1147 = vadd.f32 %v309, %v1146
    %v1148 = vpop.f32.mrf.mxu0
    %1149 = vdwg.mxu0
    %1150 = vmatpush.bf16.msra.mxu0 %v838
    %1151 = vmatpush.bf16.msra.mxu0 %v822
    %1152 = vmatpush.bf16.msra.mxu0 %v806
    %1153 = vmatpush.bf16.msra.mxu0 %v790
    %1154 = vmatpush.bf16.msra.mxu0 %v774
    %1155 = vmatpush.bf16.msra.mxu0 %v758
    %1156 = vmatpush.bf16.msra.mxu0 %v742
    %1157 = vmatpush.bf16.msra.mxu0 %v726
    %1158 = vmatmul.bf16.gmra.mxu0 %v163
    %v1159 = vpop.f32.mrf.mxu0
    %v1160 = vadd.f32 %v310, %v1159
    %v1161 = vpop.f32.mrf.mxu0
    %1162 = vdwg.mxu0
    %1163 = vmatpush.bf16.msra.mxu0 %v839
    %1164 = vmatpush.bf16.msra.mxu0 %v823
    %1165 = vmatpush.bf16.msra.mxu0 %v807
    %1166 = vmatpush.bf16.msra.mxu0 %v791
    %1167 = vmatpush.bf16.msra.mxu0 %v775
    %1168 = vmatpush.bf16.msra.mxu0 %v759
    %1169 = vmatpush.bf16.msra.mxu0 %v743
    %1170 = vmatpush.bf16.msra.mxu0 %v727
    %1171 = vmatmul.bf16.gmra.mxu0 %v163
    %v1172 = vpop.f32.mrf.mxu0
    %v1173 = vadd.f32 %v311, %v1172
    %v1174 = vpop.f32.mrf.mxu0
    %1175 = vdwg.mxu0
    %v1176 = vmax.f32 %v978, 0.0
    %v1177 = vmax.f32 %v991, 0.0
    %v1178 = vmax.f32 %v1004, 0.0
    %v1179 = vmax.f32 %v1017, 0.0
    %v1180 = vmax.f32 %v1030, 0.0
    %v1181 = vmax.f32 %v1043, 0.0
    %v1182 = vmax.f32 %v1056, 0.0
    %v1183 = vmax.f32 %v1069, 0.0
    %v1184 = vmax.f32 %v1082, 0.0
    %v1185 = vmax.f32 %v1095, 0.0
    %v1186 = vmax.f32 %v1108, 0.0
    %v1187 = vmax.f32 %v1121, 0.0
    %v1188 = vmax.f32 %v1134, 0.0
    %v1189 = vmax.f32 %v1147, 0.0
    %v1190 = vmax.f32 %v1160, 0.0
    %v1191 = vmax.f32 %v1173, 0.0
    %v1192 = vpack.c.bf16 %v1176, %v1176
    %v1193 = vpack.c.bf16 %v1177, %v1177
    %v1194 = vpack.c.bf16 %v1178, %v1178
    %v1195 = vpack.c.bf16 %v1179, %v1179
    %v1196 = vpack.c.bf16 %v1180, %v1180
    %v1197 = vpack.c.bf16 %v1181, %v1181
    %v1198 = vpack.c.bf16 %v1182, %v1182
    %v1199 = vpack.c.bf16 %v1183, %v1183
    %v1200 = vpack.c.bf16 %v1184, %v1184
    %v1201 = vpack.c.bf16 %v1185, %v1185
    %v1202 = vpack.c.bf16 %v1186, %v1186
    %v1203 = vpack.c.bf16 %v1187, %v1187
    %v1204 = vpack.c.bf16 %v1188, %v1188
    %v1205 = vpack.c.bf16 %v1189, %v1189
    %v1206 = vpack.c.bf16 %v1190, %v1190
    %v1207 = vpack.c.bf16 %v1191, %v1191
    %v1208 = vld [vmem:[#allocation8] sm:$0xff]
    %v1209 = vld [vmem:[#allocation8 + $0x8] sm:$0xff]
    %v1210 = vld [vmem:[#allocation8 + $0x10] sm:$0xff]
    %v1211 = vld [vmem:[#allocation8 + $0x18] sm:$0xff]
    %v1212 = vld [vmem:[#allocation8 + $0x20] sm:$0xff]
    %v1213 = vld [vmem:[#allocation8 + $0x28] sm:$0xff]
    %v1214 = vld [vmem:[#allocation8 + $0x30] sm:$0xff]
    %v1215 = vld [vmem:[#allocation8 + $0x38] sm:$0xff]
    %v1216 = vld [vmem:[#allocation8 + $0x40] sm:$0xff]
    %v1217 = vld [vmem:[#allocation8 + $0x48] sm:$0xff]
    %v1218 = vld [vmem:[#allocation8 + $0x50] sm:$0xff]
    %v1219 = vld [vmem:[#allocation8 + $0x58] sm:$0xff]
    %v1220 = vld [vmem:[#allocation8 + $0x60] sm:$0xff]
    %v1221 = vld [vmem:[#allocation8 + $0x68] sm:$0xff]
    %v1222 = vld [vmem:[#allocation8 + $0x70] sm:$0xff]
    %v1223 = vld [vmem:[#allocation8 + $0x78] sm:$0xff]
    %v1224 = vld [vmem:[#allocation8 + $0x80] sm:$0xff]
    %v1225 = vld [vmem:[#allocation8 + $0x88] sm:$0xff]
    %v1226 = vld [vmem:[#allocation8 + $0x90] sm:$0xff]
    %v1227 = vld [vmem:[#allocation8 + $0x98] sm:$0xff]
    %v1228 = vld [vmem:[#allocation8 + $0xa0] sm:$0xff]
    %v1229 = vld [vmem:[#allocation8 + $0xa8] sm:$0xff]
    %v1230 = vld [vmem:[#allocation8 + $0xb0] sm:$0xff]
    %v1231 = vld [vmem:[#allocation8 + $0xb8] sm:$0xff]
    %v1232 = vld [vmem:[#allocation8 + $0xc0] sm:$0xff]
    %v1233 = vld [vmem:[#allocation8 + $0xc8] sm:$0xff]
    %v1234 = vld [vmem:[#allocation8 + $0xd0] sm:$0xff]
    %v1235 = vld [vmem:[#allocation8 + $0xd8] sm:$0xff]
    %v1236 = vld [vmem:[#allocation8 + $0xe0] sm:$0xff]
    %v1237 = vld [vmem:[#allocation8 + $0xe8] sm:$0xff]
    %v1238 = vld [vmem:[#allocation8 + $0xf0] sm:$0xff]
    %v1239 = vld [vmem:[#allocation8 + $0xf8] sm:$0xff]
    %v1240 = vld [vmem:[#allocation8 + $0x100] sm:$0xff]
    %v1241 = vld [vmem:[#allocation8 + $0x108] sm:$0xff]
    %v1242 = vld [vmem:[#allocation8 + $0x110] sm:$0xff]
    %v1243 = vld [vmem:[#allocation8 + $0x118] sm:$0xff]
    %v1244 = vld [vmem:[#allocation8 + $0x120] sm:$0xff]
    %v1245 = vld [vmem:[#allocation8 + $0x128] sm:$0xff]
    %v1246 = vld [vmem:[#allocation8 + $0x130] sm:$0xff]
    %v1247 = vld [vmem:[#allocation8 + $0x138] sm:$0xff]
    %v1248 = vld [vmem:[#allocation8 + $0x140] sm:$0xff]
    %v1249 = vld [vmem:[#allocation8 + $0x148] sm:$0xff]
    %v1250 = vld [vmem:[#allocation8 + $0x150] sm:$0xff]
    %v1251 = vld [vmem:[#allocation8 + $0x158] sm:$0xff]
    %v1252 = vld [vmem:[#allocation8 + $0x160] sm:$0xff]
    %v1253 = vld [vmem:[#allocation8 + $0x168] sm:$0xff]
    %v1254 = vld [vmem:[#allocation8 + $0x170] sm:$0xff]
    %v1255 = vld [vmem:[#allocation8 + $0x178] sm:$0xff]
    %v1256 = vld [vmem:[#allocation8 + $0x180] sm:$0xff]
    %v1257 = vld [vmem:[#allocation8 + $0x188] sm:$0xff]
    %v1258 = vld [vmem:[#allocation8 + $0x190] sm:$0xff]
    %v1259 = vld [vmem:[#allocation8 + $0x198] sm:$0xff]
    %v1260 = vld [vmem:[#allocation8 + $0x1a0] sm:$0xff]
    %v1261 = vld [vmem:[#allocation8 + $0x1a8] sm:$0xff]
    %v1262 = vld [vmem:[#allocation8 + $0x1b0] sm:$0xff]
    %v1263 = vld [vmem:[#allocation8 + $0x1b8] sm:$0xff]
    %v1264 = vld [vmem:[#allocation8 + $0x1c0] sm:$0xff]
    %v1265 = vld [vmem:[#allocation8 + $0x1c8] sm:$0xff]
    %v1266 = vld [vmem:[#allocation8 + $0x1d0] sm:$0xff]
    %v1267 = vld [vmem:[#allocation8 + $0x1d8] sm:$0xff]
    %v1268 = vld [vmem:[#allocation8 + $0x1e0] sm:$0xff]
    %v1269 = vld [vmem:[#allocation8 + $0x1e8] sm:$0xff]
    %v1270 = vld [vmem:[#allocation8 + $0x1f0] sm:$0xff]
    %v1271 = vld [vmem:[#allocation8 + $0x1f8] sm:$0xff]
    %v1272 = vld [vmem:[#allocation8 + $0x200] sm:$0xff]
    %v1273 = vld [vmem:[#allocation8 + $0x208] sm:$0xff]
    %v1274 = vld [vmem:[#allocation8 + $0x210] sm:$0xff]
    %v1275 = vld [vmem:[#allocation8 + $0x218] sm:$0xff]
    %v1276 = vld [vmem:[#allocation8 + $0x220] sm:$0xff]
    %v1277 = vld [vmem:[#allocation8 + $0x228] sm:$0xff]
    %v1278 = vld [vmem:[#allocation8 + $0x230] sm:$0xff]
    %v1279 = vld [vmem:[#allocation8 + $0x238] sm:$0xff]
    %v1280 = vld [vmem:[#allocation8 + $0x240] sm:$0xff]
    %v1281 = vld [vmem:[#allocation8 + $0x248] sm:$0xff]
    %v1282 = vld [vmem:[#allocation8 + $0x250] sm:$0xff]
    %v1283 = vld [vmem:[#allocation8 + $0x258] sm:$0xff]
    %v1284 = vld [vmem:[#allocation8 + $0x260] sm:$0xff]
    %v1285 = vld [vmem:[#allocation8 + $0x268] sm:$0xff]
    %v1286 = vld [vmem:[#allocation8 + $0x270] sm:$0xff]
    %v1287 = vld [vmem:[#allocation8 + $0x278] sm:$0xff]
    %v1288 = vld [vmem:[#allocation8 + $0x280] sm:$0xff]
    %v1289 = vld [vmem:[#allocation8 + $0x288] sm:$0xff]
    %v1290 = vld [vmem:[#allocation8 + $0x290] sm:$0xff]
    %v1291 = vld [vmem:[#allocation8 + $0x298] sm:$0xff]
    %v1292 = vld [vmem:[#allocation8 + $0x2a0] sm:$0xff]
    %v1293 = vld [vmem:[#allocation8 + $0x2a8] sm:$0xff]
    %v1294 = vld [vmem:[#allocation8 + $0x2b0] sm:$0xff]
    %v1295 = vld [vmem:[#allocation8 + $0x2b8] sm:$0xff]
    %v1296 = vld [vmem:[#allocation8 + $0x2c0] sm:$0xff]
    %v1297 = vld [vmem:[#allocation8 + $0x2c8] sm:$0xff]
    %v1298 = vld [vmem:[#allocation8 + $0x2d0] sm:$0xff]
    %v1299 = vld [vmem:[#allocation8 + $0x2d8] sm:$0xff]
    %v1300 = vld [vmem:[#allocation8 + $0x2e0] sm:$0xff]
    %v1301 = vld [vmem:[#allocation8 + $0x2e8] sm:$0xff]
    %v1302 = vld [vmem:[#allocation8 + $0x2f0] sm:$0xff]
    %v1303 = vld [vmem:[#allocation8 + $0x2f8] sm:$0xff]
    %v1304 = vld [vmem:[#allocation8 + $0x300] sm:$0xff]
    %v1305 = vld [vmem:[#allocation8 + $0x308] sm:$0xff]
    %v1306 = vld [vmem:[#allocation8 + $0x310] sm:$0xff]
    %v1307 = vld [vmem:[#allocation8 + $0x318] sm:$0xff]
    %v1308 = vld [vmem:[#allocation8 + $0x320] sm:$0xff]
    %v1309 = vld [vmem:[#allocation8 + $0x328] sm:$0xff]
    %v1310 = vld [vmem:[#allocation8 + $0x330] sm:$0xff]
    %v1311 = vld [vmem:[#allocation8 + $0x338] sm:$0xff]
    %v1312 = vld [vmem:[#allocation8 + $0x340] sm:$0xff]
    %v1313 = vld [vmem:[#allocation8 + $0x348] sm:$0xff]
    %v1314 = vld [vmem:[#allocation8 + $0x350] sm:$0xff]
    %v1315 = vld [vmem:[#allocation8 + $0x358] sm:$0xff]
    %v1316 = vld [vmem:[#allocation8 + $0x360] sm:$0xff]
    %v1317 = vld [vmem:[#allocation8 + $0x368] sm:$0xff]
    %v1318 = vld [vmem:[#allocation8 + $0x370] sm:$0xff]
    %v1319 = vld [vmem:[#allocation8 + $0x378] sm:$0xff]
    %v1320 = vld [vmem:[#allocation8 + $0x380] sm:$0xff]
    %v1321 = vld [vmem:[#allocation8 + $0x388] sm:$0xff]
    %v1322 = vld [vmem:[#allocation8 + $0x390] sm:$0xff]
    %v1323 = vld [vmem:[#allocation8 + $0x398] sm:$0xff]
    %v1324 = vld [vmem:[#allocation8 + $0x3a0] sm:$0xff]
    %v1325 = vld [vmem:[#allocation8 + $0x3a8] sm:$0xff]
    %v1326 = vld [vmem:[#allocation8 + $0x3b0] sm:$0xff]
    %v1327 = vld [vmem:[#allocation8 + $0x3b8] sm:$0xff]
    %v1328 = vld [vmem:[#allocation8 + $0x3c0] sm:$0xff]
    %v1329 = vld [vmem:[#allocation8 + $0x3c8] sm:$0xff]
    %v1330 = vld [vmem:[#allocation8 + $0x3d0] sm:$0xff]
    %v1331 = vld [vmem:[#allocation8 + $0x3d8] sm:$0xff]
    %v1332 = vld [vmem:[#allocation8 + $0x3e0] sm:$0xff]
    %v1333 = vld [vmem:[#allocation8 + $0x3e8] sm:$0xff]
    %v1334 = vld [vmem:[#allocation8 + $0x3f0] sm:$0xff]
    %v1335 = vld [vmem:[#allocation8 + $0x3f8] sm:$0xff]
    %v1336 = vld [vmem:[#allocation8 + $0x400] sm:$0xff]
    %v1337 = vld [vmem:[#allocation8 + $0x408] sm:$0xff]
    %v1338 = vld [vmem:[#allocation8 + $0x410] sm:$0xff]
    %v1339 = vld [vmem:[#allocation8 + $0x418] sm:$0xff]
    %v1340 = vld [vmem:[#allocation8 + $0x420] sm:$0xff]
    %v1341 = vld [vmem:[#allocation8 + $0x428] sm:$0xff]
    %v1342 = vld [vmem:[#allocation8 + $0x430] sm:$0xff]
    %v1343 = vld [vmem:[#allocation8 + $0x438] sm:$0xff]
    %v1344 = vld [vmem:[#allocation8 + $0x440] sm:$0xff]
    %v1345 = vld [vmem:[#allocation8 + $0x448] sm:$0xff]
    %v1346 = vld [vmem:[#allocation8 + $0x450] sm:$0xff]
    %v1347 = vld [vmem:[#allocation8 + $0x458] sm:$0xff]
    %v1348 = vld [vmem:[#allocation8 + $0x460] sm:$0xff]
    %v1349 = vld [vmem:[#allocation8 + $0x468] sm:$0xff]
    %v1350 = vld [vmem:[#allocation8 + $0x470] sm:$0xff]
    %v1351 = vld [vmem:[#allocation8 + $0x478] sm:$0xff]
    %v1352 = vld [vmem:[#allocation8 + $0x480] sm:$0xff]
    %v1353 = vld [vmem:[#allocation8 + $0x488] sm:$0xff]
    %v1354 = vld [vmem:[#allocation8 + $0x490] sm:$0xff]
    %v1355 = vld [vmem:[#allocation8 + $0x498] sm:$0xff]
    %v1356 = vld [vmem:[#allocation8 + $0x4a0] sm:$0xff]
    %v1357 = vld [vmem:[#allocation8 + $0x4a8] sm:$0xff]
    %v1358 = vld [vmem:[#allocation8 + $0x4b0] sm:$0xff]
    %v1359 = vld [vmem:[#allocation8 + $0x4b8] sm:$0xff]
    %v1360 = vld [vmem:[#allocation8 + $0x4c0] sm:$0xff]
    %v1361 = vld [vmem:[#allocation8 + $0x4c8] sm:$0xff]
    %v1362 = vld [vmem:[#allocation8 + $0x4d0] sm:$0xff]
    %v1363 = vld [vmem:[#allocation8 + $0x4d8] sm:$0xff]
    %v1364 = vld [vmem:[#allocation8 + $0x4e0] sm:$0xff]
    %v1365 = vld [vmem:[#allocation8 + $0x4e8] sm:$0xff]
    %v1366 = vld [vmem:[#allocation8 + $0x4f0] sm:$0xff]
    %v1367 = vld [vmem:[#allocation8 + $0x4f8] sm:$0xff]
    %v1368 = vld [vmem:[#allocation8 + $0x500] sm:$0xff]
    %v1369 = vld [vmem:[#allocation8 + $0x508] sm:$0xff]
    %v1370 = vld [vmem:[#allocation8 + $0x510] sm:$0xff]
    %v1371 = vld [vmem:[#allocation8 + $0x518] sm:$0xff]
    %v1372 = vld [vmem:[#allocation8 + $0x520] sm:$0xff]
    %v1373 = vld [vmem:[#allocation8 + $0x528] sm:$0xff]
    %v1374 = vld [vmem:[#allocation8 + $0x530] sm:$0xff]
    %v1375 = vld [vmem:[#allocation8 + $0x538] sm:$0xff]
    %v1376 = vld [vmem:[#allocation8 + $0x540] sm:$0xff]
    %v1377 = vld [vmem:[#allocation8 + $0x548] sm:$0xff]
    %v1378 = vld [vmem:[#allocation8 + $0x550] sm:$0xff]
    %v1379 = vld [vmem:[#allocation8 + $0x558] sm:$0xff]
    %v1380 = vld [vmem:[#allocation8 + $0x560] sm:$0xff]
    %v1381 = vld [vmem:[#allocation8 + $0x568] sm:$0xff]
    %v1382 = vld [vmem:[#allocation8 + $0x570] sm:$0xff]
    %v1383 = vld [vmem:[#allocation8 + $0x578] sm:$0xff]
    %v1384 = vld [vmem:[#allocation8 + $0x580] sm:$0xff]
    %v1385 = vld [vmem:[#allocation8 + $0x588] sm:$0xff]
    %v1386 = vld [vmem:[#allocation8 + $0x590] sm:$0xff]
    %v1387 = vld [vmem:[#allocation8 + $0x598] sm:$0xff]
    %v1388 = vld [vmem:[#allocation8 + $0x5a0] sm:$0xff]
    %v1389 = vld [vmem:[#allocation8 + $0x5a8] sm:$0xff]
    %v1390 = vld [vmem:[#allocation8 + $0x5b0] sm:$0xff]
    %v1391 = vld [vmem:[#allocation8 + $0x5b8] sm:$0xff]
    %v1392 = vld [vmem:[#allocation8 + $0x5c0] sm:$0xff]
    %v1393 = vld [vmem:[#allocation8 + $0x5c8] sm:$0xff]
    %v1394 = vld [vmem:[#allocation8 + $0x5d0] sm:$0xff]
    %v1395 = vld [vmem:[#allocation8 + $0x5d8] sm:$0xff]
    %v1396 = vld [vmem:[#allocation8 + $0x5e0] sm:$0xff]
    %v1397 = vld [vmem:[#allocation8 + $0x5e8] sm:$0xff]
    %v1398 = vld [vmem:[#allocation8 + $0x5f0] sm:$0xff]
    %v1399 = vld [vmem:[#allocation8 + $0x5f8] sm:$0xff]
    %v1400 = vld [vmem:[#allocation8 + $0x600] sm:$0xff]
    %v1401 = vld [vmem:[#allocation8 + $0x608] sm:$0xff]
    %v1402 = vld [vmem:[#allocation8 + $0x610] sm:$0xff]
    %v1403 = vld [vmem:[#allocation8 + $0x618] sm:$0xff]
    %v1404 = vld [vmem:[#allocation8 + $0x620] sm:$0xff]
    %v1405 = vld [vmem:[#allocation8 + $0x628] sm:$0xff]
    %v1406 = vld [vmem:[#allocation8 + $0x630] sm:$0xff]
    %v1407 = vld [vmem:[#allocation8 + $0x638] sm:$0xff]
    %v1408 = vld [vmem:[#allocation8 + $0x640] sm:$0xff]
    %v1409 = vld [vmem:[#allocation8 + $0x648] sm:$0xff]
    %v1410 = vld [vmem:[#allocation8 + $0x650] sm:$0xff]
    %v1411 = vld [vmem:[#allocation8 + $0x658] sm:$0xff]
    %v1412 = vld [vmem:[#allocation8 + $0x660] sm:$0xff]
    %v1413 = vld [vmem:[#allocation8 + $0x668] sm:$0xff]
    %v1414 = vld [vmem:[#allocation8 + $0x670] sm:$0xff]
    %v1415 = vld [vmem:[#allocation8 + $0x678] sm:$0xff]
    %v1416 = vld [vmem:[#allocation8 + $0x680] sm:$0xff]
    %v1417 = vld [vmem:[#allocation8 + $0x688] sm:$0xff]
    %v1418 = vld [vmem:[#allocation8 + $0x690] sm:$0xff]
    %v1419 = vld [vmem:[#allocation8 + $0x698] sm:$0xff]
    %v1420 = vld [vmem:[#allocation8 + $0x6a0] sm:$0xff]
    %v1421 = vld [vmem:[#allocation8 + $0x6a8] sm:$0xff]
    %v1422 = vld [vmem:[#allocation8 + $0x6b0] sm:$0xff]
    %v1423 = vld [vmem:[#allocation8 + $0x6b8] sm:$0xff]
    %v1424 = vld [vmem:[#allocation8 + $0x6c0] sm:$0xff]
    %v1425 = vld [vmem:[#allocation8 + $0x6c8] sm:$0xff]
    %v1426 = vld [vmem:[#allocation8 + $0x6d0] sm:$0xff]
    %v1427 = vld [vmem:[#allocation8 + $0x6d8] sm:$0xff]
    %v1428 = vld [vmem:[#allocation8 + $0x6e0] sm:$0xff]
    %v1429 = vld [vmem:[#allocation8 + $0x6e8] sm:$0xff]
    %v1430 = vld [vmem:[#allocation8 + $0x6f0] sm:$0xff]
    %v1431 = vld [vmem:[#allocation8 + $0x6f8] sm:$0xff]
    %v1432 = vld [vmem:[#allocation8 + $0x700] sm:$0xff]
    %v1433 = vld [vmem:[#allocation8 + $0x708] sm:$0xff]
    %v1434 = vld [vmem:[#allocation8 + $0x710] sm:$0xff]
    %v1435 = vld [vmem:[#allocation8 + $0x718] sm:$0xff]
    %v1436 = vld [vmem:[#allocation8 + $0x720] sm:$0xff]
    %v1437 = vld [vmem:[#allocation8 + $0x728] sm:$0xff]
    %v1438 = vld [vmem:[#allocation8 + $0x730] sm:$0xff]
    %v1439 = vld [vmem:[#allocation8 + $0x738] sm:$0xff]
    %v1440 = vld [vmem:[#allocation8 + $0x740] sm:$0xff]
    %v1441 = vld [vmem:[#allocation8 + $0x748] sm:$0xff]
    %v1442 = vld [vmem:[#allocation8 + $0x750] sm:$0xff]
    %v1443 = vld [vmem:[#allocation8 + $0x758] sm:$0xff]
    %v1444 = vld [vmem:[#allocation8 + $0x760] sm:$0xff]
    %v1445 = vld [vmem:[#allocation8 + $0x768] sm:$0xff]
    %v1446 = vld [vmem:[#allocation8 + $0x770] sm:$0xff]
    %v1447 = vld [vmem:[#allocation8 + $0x778] sm:$0xff]
    %v1448 = vld [vmem:[#allocation8 + $0x780] sm:$0xff]
    %v1449 = vld [vmem:[#allocation8 + $0x788] sm:$0xff]
    %v1450 = vld [vmem:[#allocation8 + $0x790] sm:$0xff]
    %v1451 = vld [vmem:[#allocation8 + $0x798] sm:$0xff]
    %v1452 = vld [vmem:[#allocation8 + $0x7a0] sm:$0xff]
    %v1453 = vld [vmem:[#allocation8 + $0x7a8] sm:$0xff]
    %v1454 = vld [vmem:[#allocation8 + $0x7b0] sm:$0xff]
    %v1455 = vld [vmem:[#allocation8 + $0x7b8] sm:$0xff]
    %v1456 = vld [vmem:[#allocation8 + $0x7c0] sm:$0xff]
    %v1457 = vld [vmem:[#allocation8 + $0x7c8] sm:$0xff]
    %v1458 = vld [vmem:[#allocation8 + $0x7d0] sm:$0xff]
    %v1459 = vld [vmem:[#allocation8 + $0x7d8] sm:$0xff]
    %v1460 = vld [vmem:[#allocation8 + $0x7e0] sm:$0xff]
    %v1461 = vld [vmem:[#allocation8 + $0x7e8] sm:$0xff]
    %v1462 = vld [vmem:[#allocation8 + $0x7f0] sm:$0xff]
    %v1463 = vld [vmem:[#allocation8 + $0x7f8] sm:$0xff]
    %v1464 = vld [vmem:[#allocation8 + $0x800] sm:$0xff]
    %v1465 = vld [vmem:[#allocation8 + $0x808] sm:$0xff]
    %v1466 = vld [vmem:[#allocation8 + $0x810] sm:$0xff]
    %v1467 = vld [vmem:[#allocation8 + $0x818] sm:$0xff]
    %v1468 = vld [vmem:[#allocation8 + $0x820] sm:$0xff]
    %v1469 = vld [vmem:[#allocation8 + $0x828] sm:$0xff]
    %v1470 = vld [vmem:[#allocation8 + $0x830] sm:$0xff]
    %v1471 = vld [vmem:[#allocation8 + $0x838] sm:$0xff]
    %v1472 = vld [vmem:[#allocation8 + $0x840] sm:$0xff]
    %v1473 = vld [vmem:[#allocation8 + $0x848] sm:$0xff]
    %v1474 = vld [vmem:[#allocation8 + $0x850] sm:$0xff]
    %v1475 = vld [vmem:[#allocation8 + $0x858] sm:$0xff]
    %v1476 = vld [vmem:[#allocation8 + $0x860] sm:$0xff]
    %v1477 = vld [vmem:[#allocation8 + $0x868] sm:$0xff]
    %v1478 = vld [vmem:[#allocation8 + $0x870] sm:$0xff]
    %v1479 = vld [vmem:[#allocation8 + $0x878] sm:$0xff]
    %v1480 = vld [vmem:[#allocation8 + $0x880] sm:$0xff]
    %v1481 = vld [vmem:[#allocation8 + $0x888] sm:$0xff]
    %v1482 = vld [vmem:[#allocation8 + $0x890] sm:$0xff]
    %v1483 = vld [vmem:[#allocation8 + $0x898] sm:$0xff]
    %v1484 = vld [vmem:[#allocation8 + $0x8a0] sm:$0xff]
    %v1485 = vld [vmem:[#allocation8 + $0x8a8] sm:$0xff]
    %v1486 = vld [vmem:[#allocation8 + $0x8b0] sm:$0xff]
    %v1487 = vld [vmem:[#allocation8 + $0x8b8] sm:$0xff]
    %v1488 = vld [vmem:[#allocation8 + $0x8c0] sm:$0xff]
    %v1489 = vld [vmem:[#allocation8 + $0x8c8] sm:$0xff]
    %v1490 = vld [vmem:[#allocation8 + $0x8d0] sm:$0xff]
    %v1491 = vld [vmem:[#allocation8 + $0x8d8] sm:$0xff]
    %v1492 = vld [vmem:[#allocation8 + $0x8e0] sm:$0xff]
    %v1493 = vld [vmem:[#allocation8 + $0x8e8] sm:$0xff]
    %v1494 = vld [vmem:[#allocation8 + $0x8f0] sm:$0xff]
    %v1495 = vld [vmem:[#allocation8 + $0x8f8] sm:$0xff]
    %v1496 = vld [vmem:[#allocation8 + $0x900] sm:$0xff]
    %v1497 = vld [vmem:[#allocation8 + $0x908] sm:$0xff]
    %v1498 = vld [vmem:[#allocation8 + $0x910] sm:$0xff]
    %v1499 = vld [vmem:[#allocation8 + $0x918] sm:$0xff]
    %v1500 = vld [vmem:[#allocation8 + $0x920] sm:$0xff]
    %v1501 = vld [vmem:[#allocation8 + $0x928] sm:$0xff]
    %v1502 = vld [vmem:[#allocation8 + $0x930] sm:$0xff]
    %v1503 = vld [vmem:[#allocation8 + $0x938] sm:$0xff]
    %v1504 = vld [vmem:[#allocation8 + $0x940] sm:$0xff]
    %v1505 = vld [vmem:[#allocation8 + $0x948] sm:$0xff]
    %v1506 = vld [vmem:[#allocation8 + $0x950] sm:$0xff]
    %v1507 = vld [vmem:[#allocation8 + $0x958] sm:$0xff]
    %v1508 = vld [vmem:[#allocation8 + $0x960] sm:$0xff]
    %v1509 = vld [vmem:[#allocation8 + $0x968] sm:$0xff]
    %v1510 = vld [vmem:[#allocation8 + $0x970] sm:$0xff]
    %v1511 = vld [vmem:[#allocation8 + $0x978] sm:$0xff]
    %v1512 = vld [vmem:[#allocation8 + $0x980] sm:$0xff]
    %v1513 = vld [vmem:[#allocation8 + $0x988] sm:$0xff]
    %v1514 = vld [vmem:[#allocation8 + $0x990] sm:$0xff]
    %v1515 = vld [vmem:[#allocation8 + $0x998] sm:$0xff]
    %v1516 = vld [vmem:[#allocation8 + $0x9a0] sm:$0xff]
    %v1517 = vld [vmem:[#allocation8 + $0x9a8] sm:$0xff]
    %v1518 = vld [vmem:[#allocation8 + $0x9b0] sm:$0xff]
    %v1519 = vld [vmem:[#allocation8 + $0x9b8] sm:$0xff]
    %v1520 = vld [vmem:[#allocation8 + $0x9c0] sm:$0xff]
    %v1521 = vld [vmem:[#allocation8 + $0x9c8] sm:$0xff]
    %v1522 = vld [vmem:[#allocation8 + $0x9d0] sm:$0xff]
    %v1523 = vld [vmem:[#allocation8 + $0x9d8] sm:$0xff]
    %v1524 = vld [vmem:[#allocation8 + $0x9e0] sm:$0xff]
    %v1525 = vld [vmem:[#allocation8 + $0x9e8] sm:$0xff]
    %v1526 = vld [vmem:[#allocation8 + $0x9f0] sm:$0xff]
    %v1527 = vld [vmem:[#allocation8 + $0x9f8] sm:$0xff]
    %v1528 = vld [vmem:[#allocation8 + $0xa00] sm:$0xff]
    %v1529 = vld [vmem:[#allocation8 + $0xa08] sm:$0xff]
    %v1530 = vld [vmem:[#allocation8 + $0xa10] sm:$0xff]
    %v1531 = vld [vmem:[#allocation8 + $0xa18] sm:$0xff]
    %v1532 = vld [vmem:[#allocation8 + $0xa20] sm:$0xff]
    %v1533 = vld [vmem:[#allocation8 + $0xa28] sm:$0xff]
    %v1534 = vld [vmem:[#allocation8 + $0xa30] sm:$0xff]
    %v1535 = vld [vmem:[#allocation8 + $0xa38] sm:$0xff]
    %v1536 = vld [vmem:[#allocation8 + $0xa40] sm:$0xff]
    %v1537 = vld [vmem:[#allocation8 + $0xa48] sm:$0xff]
    %v1538 = vld [vmem:[#allocation8 + $0xa50] sm:$0xff]
    %v1539 = vld [vmem:[#allocation8 + $0xa58] sm:$0xff]
    %v1540 = vld [vmem:[#allocation8 + $0xa60] sm:$0xff]
    %v1541 = vld [vmem:[#allocation8 + $0xa68] sm:$0xff]
    %v1542 = vld [vmem:[#allocation8 + $0xa70] sm:$0xff]
    %v1543 = vld [vmem:[#allocation8 + $0xa78] sm:$0xff]
    %v1544 = vld [vmem:[#allocation8 + $0xa80] sm:$0xff]
    %v1545 = vld [vmem:[#allocation8 + $0xa88] sm:$0xff]
    %v1546 = vld [vmem:[#allocation8 + $0xa90] sm:$0xff]
    %v1547 = vld [vmem:[#allocation8 + $0xa98] sm:$0xff]
    %v1548 = vld [vmem:[#allocation8 + $0xaa0] sm:$0xff]
    %v1549 = vld [vmem:[#allocation8 + $0xaa8] sm:$0xff]
    %v1550 = vld [vmem:[#allocation8 + $0xab0] sm:$0xff]
    %v1551 = vld [vmem:[#allocation8 + $0xab8] sm:$0xff]
    %v1552 = vld [vmem:[#allocation8 + $0xac0] sm:$0xff]
    %v1553 = vld [vmem:[#allocation8 + $0xac8] sm:$0xff]
    %v1554 = vld [vmem:[#allocation8 + $0xad0] sm:$0xff]
    %v1555 = vld [vmem:[#allocation8 + $0xad8] sm:$0xff]
    %v1556 = vld [vmem:[#allocation8 + $0xae0] sm:$0xff]
    %v1557 = vld [vmem:[#allocation8 + $0xae8] sm:$0xff]
    %v1558 = vld [vmem:[#allocation8 + $0xaf0] sm:$0xff]
    %v1559 = vld [vmem:[#allocation8 + $0xaf8] sm:$0xff]
    %v1560 = vld [vmem:[#allocation8 + $0xb00] sm:$0xff]
    %v1561 = vld [vmem:[#allocation8 + $0xb08] sm:$0xff]
    %v1562 = vld [vmem:[#allocation8 + $0xb10] sm:$0xff]
    %v1563 = vld [vmem:[#allocation8 + $0xb18] sm:$0xff]
    %v1564 = vld [vmem:[#allocation8 + $0xb20] sm:$0xff]
    %v1565 = vld [vmem:[#allocation8 + $0xb28] sm:$0xff]
    %v1566 = vld [vmem:[#allocation8 + $0xb30] sm:$0xff]
    %v1567 = vld [vmem:[#allocation8 + $0xb38] sm:$0xff]
    %v1568 = vld [vmem:[#allocation8 + $0xb40] sm:$0xff]
    %v1569 = vld [vmem:[#allocation8 + $0xb48] sm:$0xff]
    %v1570 = vld [vmem:[#allocation8 + $0xb50] sm:$0xff]
    %v1571 = vld [vmem:[#allocation8 + $0xb58] sm:$0xff]
    %v1572 = vld [vmem:[#allocation8 + $0xb60] sm:$0xff]
    %v1573 = vld [vmem:[#allocation8 + $0xb68] sm:$0xff]
    %v1574 = vld [vmem:[#allocation8 + $0xb70] sm:$0xff]
    %v1575 = vld [vmem:[#allocation8 + $0xb78] sm:$0xff]
    %v1576 = vld [vmem:[#allocation8 + $0xb80] sm:$0xff]
    %v1577 = vld [vmem:[#allocation8 + $0xb88] sm:$0xff]
    %v1578 = vld [vmem:[#allocation8 + $0xb90] sm:$0xff]
    %v1579 = vld [vmem:[#allocation8 + $0xb98] sm:$0xff]
    %v1580 = vld [vmem:[#allocation8 + $0xba0] sm:$0xff]
    %v1581 = vld [vmem:[#allocation8 + $0xba8] sm:$0xff]
    %v1582 = vld [vmem:[#allocation8 + $0xbb0] sm:$0xff]
    %v1583 = vld [vmem:[#allocation8 + $0xbb8] sm:$0xff]
    %v1584 = vld [vmem:[#allocation8 + $0xbc0] sm:$0xff]
    %v1585 = vld [vmem:[#allocation8 + $0xbc8] sm:$0xff]
    %v1586 = vld [vmem:[#allocation8 + $0xbd0] sm:$0xff]
    %v1587 = vld [vmem:[#allocation8 + $0xbd8] sm:$0xff]
    %v1588 = vld [vmem:[#allocation8 + $0xbe0] sm:$0xff]
    %v1589 = vld [vmem:[#allocation8 + $0xbe8] sm:$0xff]
    %v1590 = vld [vmem:[#allocation8 + $0xbf0] sm:$0xff]
    %v1591 = vld [vmem:[#allocation8 + $0xbf8] sm:$0xff]
    %v1592 = vld [vmem:[#allocation8 + $0xc00] sm:$0xff]
    %v1593 = vld [vmem:[#allocation8 + $0xc08] sm:$0xff]
    %v1594 = vld [vmem:[#allocation8 + $0xc10] sm:$0xff]
    %v1595 = vld [vmem:[#allocation8 + $0xc18] sm:$0xff]
    %v1596 = vld [vmem:[#allocation8 + $0xc20] sm:$0xff]
    %v1597 = vld [vmem:[#allocation8 + $0xc28] sm:$0xff]
    %v1598 = vld [vmem:[#allocation8 + $0xc30] sm:$0xff]
    %v1599 = vld [vmem:[#allocation8 + $0xc38] sm:$0xff]
    %v1600 = vld [vmem:[#allocation8 + $0xc40] sm:$0xff]
    %v1601 = vld [vmem:[#allocation8 + $0xc48] sm:$0xff]
    %v1602 = vld [vmem:[#allocation8 + $0xc50] sm:$0xff]
    %v1603 = vld [vmem:[#allocation8 + $0xc58] sm:$0xff]
    %v1604 = vld [vmem:[#allocation8 + $0xc60] sm:$0xff]
    %v1605 = vld [vmem:[#allocation8 + $0xc68] sm:$0xff]
    %v1606 = vld [vmem:[#allocation8 + $0xc70] sm:$0xff]
    %v1607 = vld [vmem:[#allocation8 + $0xc78] sm:$0xff]
    %v1608 = vld [vmem:[#allocation8 + $0xc80] sm:$0xff]
    %v1609 = vld [vmem:[#allocation8 + $0xc88] sm:$0xff]
    %v1610 = vld [vmem:[#allocation8 + $0xc90] sm:$0xff]
    %v1611 = vld [vmem:[#allocation8 + $0xc98] sm:$0xff]
    %v1612 = vld [vmem:[#allocation8 + $0xca0] sm:$0xff]
    %v1613 = vld [vmem:[#allocation8 + $0xca8] sm:$0xff]
    %v1614 = vld [vmem:[#allocation8 + $0xcb0] sm:$0xff]
    %v1615 = vld [vmem:[#allocation8 + $0xcb8] sm:$0xff]
    %v1616 = vld [vmem:[#allocation8 + $0xcc0] sm:$0xff]
    %v1617 = vld [vmem:[#allocation8 + $0xcc8] sm:$0xff]
    %v1618 = vld [vmem:[#allocation8 + $0xcd0] sm:$0xff]
    %v1619 = vld [vmem:[#allocation8 + $0xcd8] sm:$0xff]
    %v1620 = vld [vmem:[#allocation8 + $0xce0] sm:$0xff]
    %v1621 = vld [vmem:[#allocation8 + $0xce8] sm:$0xff]
    %v1622 = vld [vmem:[#allocation8 + $0xcf0] sm:$0xff]
    %v1623 = vld [vmem:[#allocation8 + $0xcf8] sm:$0xff]
    %v1624 = vld [vmem:[#allocation8 + $0xd00] sm:$0xff]
    %v1625 = vld [vmem:[#allocation8 + $0xd08] sm:$0xff]
    %v1626 = vld [vmem:[#allocation8 + $0xd10] sm:$0xff]
    %v1627 = vld [vmem:[#allocation8 + $0xd18] sm:$0xff]
    %v1628 = vld [vmem:[#allocation8 + $0xd20] sm:$0xff]
    %v1629 = vld [vmem:[#allocation8 + $0xd28] sm:$0xff]
    %v1630 = vld [vmem:[#allocation8 + $0xd30] sm:$0xff]
    %v1631 = vld [vmem:[#allocation8 + $0xd38] sm:$0xff]
    %v1632 = vld [vmem:[#allocation8 + $0xd40] sm:$0xff]
    %v1633 = vld [vmem:[#allocation8 + $0xd48] sm:$0xff]
    %v1634 = vld [vmem:[#allocation8 + $0xd50] sm:$0xff]
    %v1635 = vld [vmem:[#allocation8 + $0xd58] sm:$0xff]
    %v1636 = vld [vmem:[#allocation8 + $0xd60] sm:$0xff]
    %v1637 = vld [vmem:[#allocation8 + $0xd68] sm:$0xff]
    %v1638 = vld [vmem:[#allocation8 + $0xd70] sm:$0xff]
    %v1639 = vld [vmem:[#allocation8 + $0xd78] sm:$0xff]
    %v1640 = vld [vmem:[#allocation8 + $0xd80] sm:$0xff]
    %v1641 = vld [vmem:[#allocation8 + $0xd88] sm:$0xff]
    %v1642 = vld [vmem:[#allocation8 + $0xd90] sm:$0xff]
    %v1643 = vld [vmem:[#allocation8 + $0xd98] sm:$0xff]
    %v1644 = vld [vmem:[#allocation8 + $0xda0] sm:$0xff]
    %v1645 = vld [vmem:[#allocation8 + $0xda8] sm:$0xff]
    %v1646 = vld [vmem:[#allocation8 + $0xdb0] sm:$0xff]
    %v1647 = vld [vmem:[#allocation8 + $0xdb8] sm:$0xff]
    %v1648 = vld [vmem:[#allocation8 + $0xdc0] sm:$0xff]
    %v1649 = vld [vmem:[#allocation8 + $0xdc8] sm:$0xff]
    %v1650 = vld [vmem:[#allocation8 + $0xdd0] sm:$0xff]
    %v1651 = vld [vmem:[#allocation8 + $0xdd8] sm:$0xff]
    %v1652 = vld [vmem:[#allocation8 + $0xde0] sm:$0xff]
    %v1653 = vld [vmem:[#allocation8 + $0xde8] sm:$0xff]
    %v1654 = vld [vmem:[#allocation8 + $0xdf0] sm:$0xff]
    %v1655 = vld [vmem:[#allocation8 + $0xdf8] sm:$0xff]
    %v1656 = vld [vmem:[#allocation8 + $0xe00] sm:$0xff]
    %v1657 = vld [vmem:[#allocation8 + $0xe08] sm:$0xff]
    %v1658 = vld [vmem:[#allocation8 + $0xe10] sm:$0xff]
    %v1659 = vld [vmem:[#allocation8 + $0xe18] sm:$0xff]
    %v1660 = vld [vmem:[#allocation8 + $0xe20] sm:$0xff]
    %v1661 = vld [vmem:[#allocation8 + $0xe28] sm:$0xff]
    %v1662 = vld [vmem:[#allocation8 + $0xe30] sm:$0xff]
    %v1663 = vld [vmem:[#allocation8 + $0xe38] sm:$0xff]
    %v1664 = vld [vmem:[#allocation8 + $0xe40] sm:$0xff]
    %v1665 = vld [vmem:[#allocation8 + $0xe48] sm:$0xff]
    %v1666 = vld [vmem:[#allocation8 + $0xe50] sm:$0xff]
    %v1667 = vld [vmem:[#allocation8 + $0xe58] sm:$0xff]
    %v1668 = vld [vmem:[#allocation8 + $0xe60] sm:$0xff]
    %v1669 = vld [vmem:[#allocation8 + $0xe68] sm:$0xff]
    %v1670 = vld [vmem:[#allocation8 + $0xe70] sm:$0xff]
    %v1671 = vld [vmem:[#allocation8 + $0xe78] sm:$0xff]
    %v1672 = vld [vmem:[#allocation8 + $0xe80] sm:$0xff]
    %v1673 = vld [vmem:[#allocation8 + $0xe88] sm:$0xff]
    %v1674 = vld [vmem:[#allocation8 + $0xe90] sm:$0xff]
    %v1675 = vld [vmem:[#allocation8 + $0xe98] sm:$0xff]
    %v1676 = vld [vmem:[#allocation8 + $0xea0] sm:$0xff]
    %v1677 = vld [vmem:[#allocation8 + $0xea8] sm:$0xff]
    %v1678 = vld [vmem:[#allocation8 + $0xeb0] sm:$0xff]
    %v1679 = vld [vmem:[#allocation8 + $0xeb8] sm:$0xff]
    %v1680 = vld [vmem:[#allocation8 + $0xec0] sm:$0xff]
    %v1681 = vld [vmem:[#allocation8 + $0xec8] sm:$0xff]
    %v1682 = vld [vmem:[#allocation8 + $0xed0] sm:$0xff]
    %v1683 = vld [vmem:[#allocation8 + $0xed8] sm:$0xff]
    %v1684 = vld [vmem:[#allocation8 + $0xee0] sm:$0xff]
    %v1685 = vld [vmem:[#allocation8 + $0xee8] sm:$0xff]
    %v1686 = vld [vmem:[#allocation8 + $0xef0] sm:$0xff]
    %v1687 = vld [vmem:[#allocation8 + $0xef8] sm:$0xff]
    %v1688 = vld [vmem:[#allocation8 + $0xf00] sm:$0xff]
    %v1689 = vld [vmem:[#allocation8 + $0xf08] sm:$0xff]
    %v1690 = vld [vmem:[#allocation8 + $0xf10] sm:$0xff]
    %v1691 = vld [vmem:[#allocation8 + $0xf18] sm:$0xff]
    %v1692 = vld [vmem:[#allocation8 + $0xf20] sm:$0xff]
    %v1693 = vld [vmem:[#allocation8 + $0xf28] sm:$0xff]
    %v1694 = vld [vmem:[#allocation8 + $0xf30] sm:$0xff]
    %v1695 = vld [vmem:[#allocation8 + $0xf38] sm:$0xff]
    %v1696 = vld [vmem:[#allocation8 + $0xf40] sm:$0xff]
    %v1697 = vld [vmem:[#allocation8 + $0xf48] sm:$0xff]
    %v1698 = vld [vmem:[#allocation8 + $0xf50] sm:$0xff]
    %v1699 = vld [vmem:[#allocation8 + $0xf58] sm:$0xff]
    %v1700 = vld [vmem:[#allocation8 + $0xf60] sm:$0xff]
    %v1701 = vld [vmem:[#allocation8 + $0xf68] sm:$0xff]
    %v1702 = vld [vmem:[#allocation8 + $0xf70] sm:$0xff]
    %v1703 = vld [vmem:[#allocation8 + $0xf78] sm:$0xff]
    %v1704 = vld [vmem:[#allocation8 + $0xf80] sm:$0xff]
    %v1705 = vld [vmem:[#allocation8 + $0xf88] sm:$0xff]
    %v1706 = vld [vmem:[#allocation8 + $0xf90] sm:$0xff]
    %v1707 = vld [vmem:[#allocation8 + $0xf98] sm:$0xff]
    %v1708 = vld [vmem:[#allocation8 + $0xfa0] sm:$0xff]
    %v1709 = vld [vmem:[#allocation8 + $0xfa8] sm:$0xff]
    %v1710 = vld [vmem:[#allocation8 + $0xfb0] sm:$0xff]
    %v1711 = vld [vmem:[#allocation8 + $0xfb8] sm:$0xff]
    %v1712 = vld [vmem:[#allocation8 + $0xfc0] sm:$0xff]
    %v1713 = vld [vmem:[#allocation8 + $0xfc8] sm:$0xff]
    %v1714 = vld [vmem:[#allocation8 + $0xfd0] sm:$0xff]
    %v1715 = vld [vmem:[#allocation8 + $0xfd8] sm:$0xff]
    %v1716 = vld [vmem:[#allocation8 + $0xfe0] sm:$0xff]
    %v1717 = vld [vmem:[#allocation8 + $0xfe8] sm:$0xff]
    %v1718 = vld [vmem:[#allocation8 + $0xff0] sm:$0xff]
    %v1719 = vld [vmem:[#allocation8 + $0xff8] sm:$0xff]
    %v1720 = vld [vmem:[#allocation10] sm:$0xf]
    %v1722 = vperm.slane %v1720, 0
    %v1723 = vperm.slane %v1720, 1
    %v1724 = vperm.slane %v1720, 2
    %v1725 = vperm.slane %v1720, 3
    %v2242 = vunpack.c.l.b16 %v1208
    %v2243 = vunpack.c.h.b16 %v1208
    %v2244 = vunpack.c.l.b16 %v1209
    %v2245 = vunpack.c.h.b16 %v1209
    %v2246 = vunpack.c.l.b16 %v1210
    %v2247 = vunpack.c.h.b16 %v1210
    %v2248 = vunpack.c.l.b16 %v1211
    %v2249 = vunpack.c.h.b16 %v1211
    %v2250 = vunpack.c.l.b16 %v1212
    %v2251 = vunpack.c.h.b16 %v1212
    %v2252 = vunpack.c.l.b16 %v1213
    %v2253 = vunpack.c.h.b16 %v1213
    %v2254 = vunpack.c.l.b16 %v1214
    %v2255 = vunpack.c.h.b16 %v1214
    %v2256 = vunpack.c.l.b16 %v1215
    %v2257 = vunpack.c.h.b16 %v1215
    %v2258 = vunpack.c.l.b16 %v1216
    %v2259 = vunpack.c.h.b16 %v1216
    %v2260 = vunpack.c.l.b16 %v1217
    %v2261 = vunpack.c.h.b16 %v1217
    %v2262 = vunpack.c.l.b16 %v1218
    %v2263 = vunpack.c.h.b16 %v1218
    %v2264 = vunpack.c.l.b16 %v1219
    %v2265 = vunpack.c.h.b16 %v1219
    %v2266 = vunpack.c.l.b16 %v1220
    %v2267 = vunpack.c.h.b16 %v1220
    %v2268 = vunpack.c.l.b16 %v1221
    %v2269 = vunpack.c.h.b16 %v1221
    %v2270 = vunpack.c.l.b16 %v1222
    %v2271 = vunpack.c.h.b16 %v1222
    %v2272 = vunpack.c.l.b16 %v1223
    %v2273 = vunpack.c.h.b16 %v1223
    %v2274 = vunpack.c.l.b16 %v1224
    %v2275 = vunpack.c.h.b16 %v1224
    %v2276 = vunpack.c.l.b16 %v1225
    %v2277 = vunpack.c.h.b16 %v1225
    %v2278 = vunpack.c.l.b16 %v1226
    %v2279 = vunpack.c.h.b16 %v1226
    %v2280 = vunpack.c.l.b16 %v1227
    %v2281 = vunpack.c.h.b16 %v1227
    %v2282 = vunpack.c.l.b16 %v1228
    %v2283 = vunpack.c.h.b16 %v1228
    %v2284 = vunpack.c.l.b16 %v1229
    %v2285 = vunpack.c.h.b16 %v1229
    %v2286 = vunpack.c.l.b16 %v1230
    %v2287 = vunpack.c.h.b16 %v1230
    %v2288 = vunpack.c.l.b16 %v1231
    %v2289 = vunpack.c.h.b16 %v1231
    %v2290 = vunpack.c.l.b16 %v1232
    %v2291 = vunpack.c.h.b16 %v1232
    %v2292 = vunpack.c.l.b16 %v1233
    %v2293 = vunpack.c.h.b16 %v1233
    %v2294 = vunpack.c.l.b16 %v1234
    %v2295 = vunpack.c.h.b16 %v1234
    %v2296 = vunpack.c.l.b16 %v1235
    %v2297 = vunpack.c.h.b16 %v1235
    %v2298 = vunpack.c.l.b16 %v1236
    %v2299 = vunpack.c.h.b16 %v1236
    %v2300 = vunpack.c.l.b16 %v1237
    %v2301 = vunpack.c.h.b16 %v1237
    %v2302 = vunpack.c.l.b16 %v1238
    %v2303 = vunpack.c.h.b16 %v1238
    %v2304 = vunpack.c.l.b16 %v1239
    %v2305 = vunpack.c.h.b16 %v1239
    %v2306 = vunpack.c.l.b16 %v1240
    %v2307 = vunpack.c.h.b16 %v1240
    %v2308 = vunpack.c.l.b16 %v1241
    %v2309 = vunpack.c.h.b16 %v1241
    %v2310 = vunpack.c.l.b16 %v1242
    %v2311 = vunpack.c.h.b16 %v1242
    %v2312 = vunpack.c.l.b16 %v1243
    %v2313 = vunpack.c.h.b16 %v1243
    %v2314 = vunpack.c.l.b16 %v1244
    %v2315 = vunpack.c.h.b16 %v1244
    %v2316 = vunpack.c.l.b16 %v1245
    %v2317 = vunpack.c.h.b16 %v1245
    %v2318 = vunpack.c.l.b16 %v1246
    %v2319 = vunpack.c.h.b16 %v1246
    %v2320 = vunpack.c.l.b16 %v1247
    %v2321 = vunpack.c.h.b16 %v1247
    %v2322 = vunpack.c.l.b16 %v1248
    %v2323 = vunpack.c.h.b16 %v1248
    %v2324 = vunpack.c.l.b16 %v1249
    %v2325 = vunpack.c.h.b16 %v1249
    %v2326 = vunpack.c.l.b16 %v1250
    %v2327 = vunpack.c.h.b16 %v1250
    %v2328 = vunpack.c.l.b16 %v1251
    %v2329 = vunpack.c.h.b16 %v1251
    %v2330 = vunpack.c.l.b16 %v1252
    %v2331 = vunpack.c.h.b16 %v1252
    %v2332 = vunpack.c.l.b16 %v1253
    %v2333 = vunpack.c.h.b16 %v1253
    %v2334 = vunpack.c.l.b16 %v1254
    %v2335 = vunpack.c.h.b16 %v1254
    %v2336 = vunpack.c.l.b16 %v1255
    %v2337 = vunpack.c.h.b16 %v1255
    %v2338 = vunpack.c.l.b16 %v1256
    %v2339 = vunpack.c.h.b16 %v1256
    %v2340 = vunpack.c.l.b16 %v1257
    %v2341 = vunpack.c.h.b16 %v1257
    %v2342 = vunpack.c.l.b16 %v1258
    %v2343 = vunpack.c.h.b16 %v1258
    %v2344 = vunpack.c.l.b16 %v1259
    %v2345 = vunpack.c.h.b16 %v1259
    %v2346 = vunpack.c.l.b16 %v1260
    %v2347 = vunpack.c.h.b16 %v1260
    %v2348 = vunpack.c.l.b16 %v1261
    %v2349 = vunpack.c.h.b16 %v1261
    %v2350 = vunpack.c.l.b16 %v1262
    %v2351 = vunpack.c.h.b16 %v1262
    %v2352 = vunpack.c.l.b16 %v1263
    %v2353 = vunpack.c.h.b16 %v1263
    %v2354 = vunpack.c.l.b16 %v1264
    %v2355 = vunpack.c.h.b16 %v1264
    %v2356 = vunpack.c.l.b16 %v1265
    %v2357 = vunpack.c.h.b16 %v1265
    %v2358 = vunpack.c.l.b16 %v1266
    %v2359 = vunpack.c.h.b16 %v1266
    %v2360 = vunpack.c.l.b16 %v1267
    %v2361 = vunpack.c.h.b16 %v1267
    %v2362 = vunpack.c.l.b16 %v1268
    %v2363 = vunpack.c.h.b16 %v1268
    %v2364 = vunpack.c.l.b16 %v1269
    %v2365 = vunpack.c.h.b16 %v1269
    %v2366 = vunpack.c.l.b16 %v1270
    %v2367 = vunpack.c.h.b16 %v1270
    %v2368 = vunpack.c.l.b16 %v1271
    %v2369 = vunpack.c.h.b16 %v1271
    %v2370 = vunpack.c.l.b16 %v1272
    %v2371 = vunpack.c.h.b16 %v1272
    %v2372 = vunpack.c.l.b16 %v1273
    %v2373 = vunpack.c.h.b16 %v1273
    %v2374 = vunpack.c.l.b16 %v1274
    %v2375 = vunpack.c.h.b16 %v1274
    %v2376 = vunpack.c.l.b16 %v1275
    %v2377 = vunpack.c.h.b16 %v1275
    %v2378 = vunpack.c.l.b16 %v1276
    %v2379 = vunpack.c.h.b16 %v1276
    %v2380 = vunpack.c.l.b16 %v1277
    %v2381 = vunpack.c.h.b16 %v1277
    %v2382 = vunpack.c.l.b16 %v1278
    %v2383 = vunpack.c.h.b16 %v1278
    %v2384 = vunpack.c.l.b16 %v1279
    %v2385 = vunpack.c.h.b16 %v1279
    %v2386 = vunpack.c.l.b16 %v1280
    %v2387 = vunpack.c.h.b16 %v1280
    %v2388 = vunpack.c.l.b16 %v1281
    %v2389 = vunpack.c.h.b16 %v1281
    %v2390 = vunpack.c.l.b16 %v1282
    %v2391 = vunpack.c.h.b16 %v1282
    %v2392 = vunpack.c.l.b16 %v1283
    %v2393 = vunpack.c.h.b16 %v1283
    %v2394 = vunpack.c.l.b16 %v1284
    %v2395 = vunpack.c.h.b16 %v1284
    %v2396 = vunpack.c.l.b16 %v1285
    %v2397 = vunpack.c.h.b16 %v1285
    %v2398 = vunpack.c.l.b16 %v1286
    %v2399 = vunpack.c.h.b16 %v1286
    %v2400 = vunpack.c.l.b16 %v1287
    %v2401 = vunpack.c.h.b16 %v1287
    %v2402 = vunpack.c.l.b16 %v1288
    %v2403 = vunpack.c.h.b16 %v1288
    %v2404 = vunpack.c.l.b16 %v1289
    %v2405 = vunpack.c.h.b16 %v1289
    %v2406 = vunpack.c.l.b16 %v1290
    %v2407 = vunpack.c.h.b16 %v1290
    %v2408 = vunpack.c.l.b16 %v1291
    %v2409 = vunpack.c.h.b16 %v1291
    %v2410 = vunpack.c.l.b16 %v1292
    %v2411 = vunpack.c.h.b16 %v1292
    %v2412 = vunpack.c.l.b16 %v1293
    %v2413 = vunpack.c.h.b16 %v1293
    %v2414 = vunpack.c.l.b16 %v1294
    %v2415 = vunpack.c.h.b16 %v1294
    %v2416 = vunpack.c.l.b16 %v1295
    %v2417 = vunpack.c.h.b16 %v1295
    %v2418 = vunpack.c.l.b16 %v1296
    %v2419 = vunpack.c.h.b16 %v1296
    %v2420 = vunpack.c.l.b16 %v1297
    %v2421 = vunpack.c.h.b16 %v1297
    %v2422 = vunpack.c.l.b16 %v1298
    %v2423 = vunpack.c.h.b16 %v1298
    %v2424 = vunpack.c.l.b16 %v1299
    %v2425 = vunpack.c.h.b16 %v1299
    %v2426 = vunpack.c.l.b16 %v1300
    %v2427 = vunpack.c.h.b16 %v1300
    %v2428 = vunpack.c.l.b16 %v1301
    %v2429 = vunpack.c.h.b16 %v1301
    %v2430 = vunpack.c.l.b16 %v1302
    %v2431 = vunpack.c.h.b16 %v1302
    %v2432 = vunpack.c.l.b16 %v1303
    %v2433 = vunpack.c.h.b16 %v1303
    %v2434 = vunpack.c.l.b16 %v1304
    %v2435 = vunpack.c.h.b16 %v1304
    %v2436 = vunpack.c.l.b16 %v1305
    %v2437 = vunpack.c.h.b16 %v1305
    %v2438 = vunpack.c.l.b16 %v1306
    %v2439 = vunpack.c.h.b16 %v1306
    %v2440 = vunpack.c.l.b16 %v1307
    %v2441 = vunpack.c.h.b16 %v1307
    %v2442 = vunpack.c.l.b16 %v1308
    %v2443 = vunpack.c.h.b16 %v1308
    %v2444 = vunpack.c.l.b16 %v1309
    %v2445 = vunpack.c.h.b16 %v1309
    %v2446 = vunpack.c.l.b16 %v1310
    %v2447 = vunpack.c.h.b16 %v1310
    %v2448 = vunpack.c.l.b16 %v1311
    %v2449 = vunpack.c.h.b16 %v1311
    %v2450 = vunpack.c.l.b16 %v1312
    %v2451 = vunpack.c.h.b16 %v1312
    %v2452 = vunpack.c.l.b16 %v1313
    %v2453 = vunpack.c.h.b16 %v1313
    %v2454 = vunpack.c.l.b16 %v1314
    %v2455 = vunpack.c.h.b16 %v1314
    %v2456 = vunpack.c.l.b16 %v1315
    %v2457 = vunpack.c.h.b16 %v1315
    %v2458 = vunpack.c.l.b16 %v1316
    %v2459 = vunpack.c.h.b16 %v1316
    %v2460 = vunpack.c.l.b16 %v1317
    %v2461 = vunpack.c.h.b16 %v1317
    %v2462 = vunpack.c.l.b16 %v1318
    %v2463 = vunpack.c.h.b16 %v1318
    %v2464 = vunpack.c.l.b16 %v1319
    %v2465 = vunpack.c.h.b16 %v1319
    %v2466 = vunpack.c.l.b16 %v1320
    %v2467 = vunpack.c.h.b16 %v1320
    %v2468 = vunpack.c.l.b16 %v1321
    %v2469 = vunpack.c.h.b16 %v1321
    %v2470 = vunpack.c.l.b16 %v1322
    %v2471 = vunpack.c.h.b16 %v1322
    %v2472 = vunpack.c.l.b16 %v1323
    %v2473 = vunpack.c.h.b16 %v1323
    %v2474 = vunpack.c.l.b16 %v1324
    %v2475 = vunpack.c.h.b16 %v1324
    %v2476 = vunpack.c.l.b16 %v1325
    %v2477 = vunpack.c.h.b16 %v1325
    %v2478 = vunpack.c.l.b16 %v1326
    %v2479 = vunpack.c.h.b16 %v1326
    %v2480 = vunpack.c.l.b16 %v1327
    %v2481 = vunpack.c.h.b16 %v1327
    %v2482 = vunpack.c.l.b16 %v1328
    %v2483 = vunpack.c.h.b16 %v1328
    %v2484 = vunpack.c.l.b16 %v1329
    %v2485 = vunpack.c.h.b16 %v1329
    %v2486 = vunpack.c.l.b16 %v1330
    %v2487 = vunpack.c.h.b16 %v1330
    %v2488 = vunpack.c.l.b16 %v1331
    %v2489 = vunpack.c.h.b16 %v1331
    %v2490 = vunpack.c.l.b16 %v1332
    %v2491 = vunpack.c.h.b16 %v1332
    %v2492 = vunpack.c.l.b16 %v1333
    %v2493 = vunpack.c.h.b16 %v1333
    %v2494 = vunpack.c.l.b16 %v1334
    %v2495 = vunpack.c.h.b16 %v1334
    %v2496 = vunpack.c.l.b16 %v1335
    %v2497 = vunpack.c.h.b16 %v1335
    %v2498 = vunpack.c.l.b16 %v1336
    %v2499 = vunpack.c.h.b16 %v1336
    %v2500 = vunpack.c.l.b16 %v1337
    %v2501 = vunpack.c.h.b16 %v1337
    %v2502 = vunpack.c.l.b16 %v1338
    %v2503 = vunpack.c.h.b16 %v1338
    %v2504 = vunpack.c.l.b16 %v1339
    %v2505 = vunpack.c.h.b16 %v1339
    %v2506 = vunpack.c.l.b16 %v1340
    %v2507 = vunpack.c.h.b16 %v1340
    %v2508 = vunpack.c.l.b16 %v1341
    %v2509 = vunpack.c.h.b16 %v1341
    %v2510 = vunpack.c.l.b16 %v1342
    %v2511 = vunpack.c.h.b16 %v1342
    %v2512 = vunpack.c.l.b16 %v1343
    %v2513 = vunpack.c.h.b16 %v1343
    %v2514 = vunpack.c.l.b16 %v1344
    %v2515 = vunpack.c.h.b16 %v1344
    %v2516 = vunpack.c.l.b16 %v1345
    %v2517 = vunpack.c.h.b16 %v1345
    %v2518 = vunpack.c.l.b16 %v1346
    %v2519 = vunpack.c.h.b16 %v1346
    %v2520 = vunpack.c.l.b16 %v1347
    %v2521 = vunpack.c.h.b16 %v1347
    %v2522 = vunpack.c.l.b16 %v1348
    %v2523 = vunpack.c.h.b16 %v1348
    %v2524 = vunpack.c.l.b16 %v1349
    %v2525 = vunpack.c.h.b16 %v1349
    %v2526 = vunpack.c.l.b16 %v1350
    %v2527 = vunpack.c.h.b16 %v1350
    %v2528 = vunpack.c.l.b16 %v1351
    %v2529 = vunpack.c.h.b16 %v1351
    %v2530 = vunpack.c.l.b16 %v1352
    %v2531 = vunpack.c.h.b16 %v1352
    %v2532 = vunpack.c.l.b16 %v1353
    %v2533 = vunpack.c.h.b16 %v1353
    %v2534 = vunpack.c.l.b16 %v1354
    %v2535 = vunpack.c.h.b16 %v1354
    %v2536 = vunpack.c.l.b16 %v1355
    %v2537 = vunpack.c.h.b16 %v1355
    %v2538 = vunpack.c.l.b16 %v1356
    %v2539 = vunpack.c.h.b16 %v1356
    %v2540 = vunpack.c.l.b16 %v1357
    %v2541 = vunpack.c.h.b16 %v1357
    %v2542 = vunpack.c.l.b16 %v1358
    %v2543 = vunpack.c.h.b16 %v1358
    %v2544 = vunpack.c.l.b16 %v1359
    %v2545 = vunpack.c.h.b16 %v1359
    %v2546 = vunpack.c.l.b16 %v1360
    %v2547 = vunpack.c.h.b16 %v1360
    %v2548 = vunpack.c.l.b16 %v1361
    %v2549 = vunpack.c.h.b16 %v1361
    %v2550 = vunpack.c.l.b16 %v1362
    %v2551 = vunpack.c.h.b16 %v1362
    %v2552 = vunpack.c.l.b16 %v1363
    %v2553 = vunpack.c.h.b16 %v1363
    %v2554 = vunpack.c.l.b16 %v1364
    %v2555 = vunpack.c.h.b16 %v1364
    %v2556 = vunpack.c.l.b16 %v1365
    %v2557 = vunpack.c.h.b16 %v1365
    %v2558 = vunpack.c.l.b16 %v1366
    %v2559 = vunpack.c.h.b16 %v1366
    %v2560 = vunpack.c.l.b16 %v1367
    %v2561 = vunpack.c.h.b16 %v1367
    %v2562 = vunpack.c.l.b16 %v1368
    %v2563 = vunpack.c.h.b16 %v1368
    %v2564 = vunpack.c.l.b16 %v1369
    %v2565 = vunpack.c.h.b16 %v1369
    %v2566 = vunpack.c.l.b16 %v1370
    %v2567 = vunpack.c.h.b16 %v1370
    %v2568 = vunpack.c.l.b16 %v1371
    %v2569 = vunpack.c.h.b16 %v1371
    %v2570 = vunpack.c.l.b16 %v1372
    %v2571 = vunpack.c.h.b16 %v1372
    %v2572 = vunpack.c.l.b16 %v1373
    %v2573 = vunpack.c.h.b16 %v1373
    %v2574 = vunpack.c.l.b16 %v1374
    %v2575 = vunpack.c.h.b16 %v1374
    %v2576 = vunpack.c.l.b16 %v1375
    %v2577 = vunpack.c.h.b16 %v1375
    %v2578 = vunpack.c.l.b16 %v1376
    %v2579 = vunpack.c.h.b16 %v1376
    %v2580 = vunpack.c.l.b16 %v1377
    %v2581 = vunpack.c.h.b16 %v1377
    %v2582 = vunpack.c.l.b16 %v1378
    %v2583 = vunpack.c.h.b16 %v1378
    %v2584 = vunpack.c.l.b16 %v1379
    %v2585 = vunpack.c.h.b16 %v1379
    %v2586 = vunpack.c.l.b16 %v1380
    %v2587 = vunpack.c.h.b16 %v1380
    %v2588 = vunpack.c.l.b16 %v1381
    %v2589 = vunpack.c.h.b16 %v1381
    %v2590 = vunpack.c.l.b16 %v1382
    %v2591 = vunpack.c.h.b16 %v1382
    %v2592 = vunpack.c.l.b16 %v1383
    %v2593 = vunpack.c.h.b16 %v1383
    %v2594 = vunpack.c.l.b16 %v1384
    %v2595 = vunpack.c.h.b16 %v1384
    %v2596 = vunpack.c.l.b16 %v1385
    %v2597 = vunpack.c.h.b16 %v1385
    %v2598 = vunpack.c.l.b16 %v1386
    %v2599 = vunpack.c.h.b16 %v1386
    %v2600 = vunpack.c.l.b16 %v1387
    %v2601 = vunpack.c.h.b16 %v1387
    %v2602 = vunpack.c.l.b16 %v1388
    %v2603 = vunpack.c.h.b16 %v1388
    %v2604 = vunpack.c.l.b16 %v1389
    %v2605 = vunpack.c.h.b16 %v1389
    %v2606 = vunpack.c.l.b16 %v1390
    %v2607 = vunpack.c.h.b16 %v1390
    %v2608 = vunpack.c.l.b16 %v1391
    %v2609 = vunpack.c.h.b16 %v1391
    %v2610 = vunpack.c.l.b16 %v1392
    %v2611 = vunpack.c.h.b16 %v1392
    %v2612 = vunpack.c.l.b16 %v1393
    %v2613 = vunpack.c.h.b16 %v1393
    %v2614 = vunpack.c.l.b16 %v1394
    %v2615 = vunpack.c.h.b16 %v1394
    %v2616 = vunpack.c.l.b16 %v1395
    %v2617 = vunpack.c.h.b16 %v1395
    %v2618 = vunpack.c.l.b16 %v1396
    %v2619 = vunpack.c.h.b16 %v1396
    %v2620 = vunpack.c.l.b16 %v1397
    %v2621 = vunpack.c.h.b16 %v1397
    %v2622 = vunpack.c.l.b16 %v1398
    %v2623 = vunpack.c.h.b16 %v1398
    %v2624 = vunpack.c.l.b16 %v1399
    %v2625 = vunpack.c.h.b16 %v1399
    %v2626 = vunpack.c.l.b16 %v1400
    %v2627 = vunpack.c.h.b16 %v1400
    %v2628 = vunpack.c.l.b16 %v1401
    %v2629 = vunpack.c.h.b16 %v1401
    %v2630 = vunpack.c.l.b16 %v1402
    %v2631 = vunpack.c.h.b16 %v1402
    %v2632 = vunpack.c.l.b16 %v1403
    %v2633 = vunpack.c.h.b16 %v1403
    %v2634 = vunpack.c.l.b16 %v1404
    %v2635 = vunpack.c.h.b16 %v1404
    %v2636 = vunpack.c.l.b16 %v1405
    %v2637 = vunpack.c.h.b16 %v1405
    %v2638 = vunpack.c.l.b16 %v1406
    %v2639 = vunpack.c.h.b16 %v1406
    %v2640 = vunpack.c.l.b16 %v1407
    %v2641 = vunpack.c.h.b16 %v1407
    %v2642 = vunpack.c.l.b16 %v1408
    %v2643 = vunpack.c.h.b16 %v1408
    %v2644 = vunpack.c.l.b16 %v1409
    %v2645 = vunpack.c.h.b16 %v1409
    %v2646 = vunpack.c.l.b16 %v1410
    %v2647 = vunpack.c.h.b16 %v1410
    %v2648 = vunpack.c.l.b16 %v1411
    %v2649 = vunpack.c.h.b16 %v1411
    %v2650 = vunpack.c.l.b16 %v1412
    %v2651 = vunpack.c.h.b16 %v1412
    %v2652 = vunpack.c.l.b16 %v1413
    %v2653 = vunpack.c.h.b16 %v1413
    %v2654 = vunpack.c.l.b16 %v1414
    %v2655 = vunpack.c.h.b16 %v1414
    %v2656 = vunpack.c.l.b16 %v1415
    %v2657 = vunpack.c.h.b16 %v1415
    %v2658 = vunpack.c.l.b16 %v1416
    %v2659 = vunpack.c.h.b16 %v1416
    %v2660 = vunpack.c.l.b16 %v1417
    %v2661 = vunpack.c.h.b16 %v1417
    %v2662 = vunpack.c.l.b16 %v1418
    %v2663 = vunpack.c.h.b16 %v1418
    %v2664 = vunpack.c.l.b16 %v1419
    %v2665 = vunpack.c.h.b16 %v1419
    %v2666 = vunpack.c.l.b16 %v1420
    %v2667 = vunpack.c.h.b16 %v1420
    %v2668 = vunpack.c.l.b16 %v1421
    %v2669 = vunpack.c.h.b16 %v1421
    %v2670 = vunpack.c.l.b16 %v1422
    %v2671 = vunpack.c.h.b16 %v1422
    %v2672 = vunpack.c.l.b16 %v1423
    %v2673 = vunpack.c.h.b16 %v1423
    %v2674 = vunpack.c.l.b16 %v1424
    %v2675 = vunpack.c.h.b16 %v1424
    %v2676 = vunpack.c.l.b16 %v1425
    %v2677 = vunpack.c.h.b16 %v1425
    %v2678 = vunpack.c.l.b16 %v1426
    %v2679 = vunpack.c.h.b16 %v1426
    %v2680 = vunpack.c.l.b16 %v1427
    %v2681 = vunpack.c.h.b16 %v1427
    %v2682 = vunpack.c.l.b16 %v1428
    %v2683 = vunpack.c.h.b16 %v1428
    %v2684 = vunpack.c.l.b16 %v1429
    %v2685 = vunpack.c.h.b16 %v1429
    %v2686 = vunpack.c.l.b16 %v1430
    %v2687 = vunpack.c.h.b16 %v1430
    %v2688 = vunpack.c.l.b16 %v1431
    %v2689 = vunpack.c.h.b16 %v1431
    %v2690 = vunpack.c.l.b16 %v1432
    %v2691 = vunpack.c.h.b16 %v1432
    %v2692 = vunpack.c.l.b16 %v1433
    %v2693 = vunpack.c.h.b16 %v1433
    %v2694 = vunpack.c.l.b16 %v1434
    %v2695 = vunpack.c.h.b16 %v1434
    %v2696 = vunpack.c.l.b16 %v1435
    %v2697 = vunpack.c.h.b16 %v1435
    %v2698 = vunpack.c.l.b16 %v1436
    %v2699 = vunpack.c.h.b16 %v1436
    %v2700 = vunpack.c.l.b16 %v1437
    %v2701 = vunpack.c.h.b16 %v1437
    %v2702 = vunpack.c.l.b16 %v1438
    %v2703 = vunpack.c.h.b16 %v1438
    %v2704 = vunpack.c.l.b16 %v1439
    %v2705 = vunpack.c.h.b16 %v1439
    %v2706 = vunpack.c.l.b16 %v1440
    %v2707 = vunpack.c.h.b16 %v1440
    %v2708 = vunpack.c.l.b16 %v1441
    %v2709 = vunpack.c.h.b16 %v1441
    %v2710 = vunpack.c.l.b16 %v1442
    %v2711 = vunpack.c.h.b16 %v1442
    %v2712 = vunpack.c.l.b16 %v1443
    %v2713 = vunpack.c.h.b16 %v1443
    %v2714 = vunpack.c.l.b16 %v1444
    %v2715 = vunpack.c.h.b16 %v1444
    %v2716 = vunpack.c.l.b16 %v1445
    %v2717 = vunpack.c.h.b16 %v1445
    %v2718 = vunpack.c.l.b16 %v1446
    %v2719 = vunpack.c.h.b16 %v1446
    %v2720 = vunpack.c.l.b16 %v1447
    %v2721 = vunpack.c.h.b16 %v1447
    %v2722 = vunpack.c.l.b16 %v1448
    %v2723 = vunpack.c.h.b16 %v1448
    %v2724 = vunpack.c.l.b16 %v1449
    %v2725 = vunpack.c.h.b16 %v1449
    %v2726 = vunpack.c.l.b16 %v1450
    %v2727 = vunpack.c.h.b16 %v1450
    %v2728 = vunpack.c.l.b16 %v1451
    %v2729 = vunpack.c.h.b16 %v1451
    %v2730 = vunpack.c.l.b16 %v1452
    %v2731 = vunpack.c.h.b16 %v1452
    %v2732 = vunpack.c.l.b16 %v1453
    %v2733 = vunpack.c.h.b16 %v1453
    %v2734 = vunpack.c.l.b16 %v1454
    %v2735 = vunpack.c.h.b16 %v1454
    %v2736 = vunpack.c.l.b16 %v1455
    %v2737 = vunpack.c.h.b16 %v1455
    %v2738 = vunpack.c.l.b16 %v1456
    %v2739 = vunpack.c.h.b16 %v1456
    %v2740 = vunpack.c.l.b16 %v1457
    %v2741 = vunpack.c.h.b16 %v1457
    %v2742 = vunpack.c.l.b16 %v1458
    %v2743 = vunpack.c.h.b16 %v1458
    %v2744 = vunpack.c.l.b16 %v1459
    %v2745 = vunpack.c.h.b16 %v1459
    %v2746 = vunpack.c.l.b16 %v1460
    %v2747 = vunpack.c.h.b16 %v1460
    %v2748 = vunpack.c.l.b16 %v1461
    %v2749 = vunpack.c.h.b16 %v1461
    %v2750 = vunpack.c.l.b16 %v1462
    %v2751 = vunpack.c.h.b16 %v1462
    %v2752 = vunpack.c.l.b16 %v1463
    %v2753 = vunpack.c.h.b16 %v1463
    %v2754 = vunpack.c.l.b16 %v1464
    %v2755 = vunpack.c.h.b16 %v1464
    %v2756 = vunpack.c.l.b16 %v1465
    %v2757 = vunpack.c.h.b16 %v1465
    %v2758 = vunpack.c.l.b16 %v1466
    %v2759 = vunpack.c.h.b16 %v1466
    %v2760 = vunpack.c.l.b16 %v1467
    %v2761 = vunpack.c.h.b16 %v1467
    %v2762 = vunpack.c.l.b16 %v1468
    %v2763 = vunpack.c.h.b16 %v1468
    %v2764 = vunpack.c.l.b16 %v1469
    %v2765 = vunpack.c.h.b16 %v1469
    %v2766 = vunpack.c.l.b16 %v1470
    %v2767 = vunpack.c.h.b16 %v1470
    %v2768 = vunpack.c.l.b16 %v1471
    %v2769 = vunpack.c.h.b16 %v1471
    %v2770 = vunpack.c.l.b16 %v1472
    %v2771 = vunpack.c.h.b16 %v1472
    %v2772 = vunpack.c.l.b16 %v1473
    %v2773 = vunpack.c.h.b16 %v1473
    %v2774 = vunpack.c.l.b16 %v1474
    %v2775 = vunpack.c.h.b16 %v1474
    %v2776 = vunpack.c.l.b16 %v1475
    %v2777 = vunpack.c.h.b16 %v1475
    %v2778 = vunpack.c.l.b16 %v1476
    %v2779 = vunpack.c.h.b16 %v1476
    %v2780 = vunpack.c.l.b16 %v1477
    %v2781 = vunpack.c.h.b16 %v1477
    %v2782 = vunpack.c.l.b16 %v1478
    %v2783 = vunpack.c.h.b16 %v1478
    %v2784 = vunpack.c.l.b16 %v1479
    %v2785 = vunpack.c.h.b16 %v1479
    %v2786 = vunpack.c.l.b16 %v1480
    %v2787 = vunpack.c.h.b16 %v1480
    %v2788 = vunpack.c.l.b16 %v1481
    %v2789 = vunpack.c.h.b16 %v1481
    %v2790 = vunpack.c.l.b16 %v1482
    %v2791 = vunpack.c.h.b16 %v1482
    %v2792 = vunpack.c.l.b16 %v1483
    %v2793 = vunpack.c.h.b16 %v1483
    %v2794 = vunpack.c.l.b16 %v1484
    %v2795 = vunpack.c.h.b16 %v1484
    %v2796 = vunpack.c.l.b16 %v1485
    %v2797 = vunpack.c.h.b16 %v1485
    %v2798 = vunpack.c.l.b16 %v1486
    %v2799 = vunpack.c.h.b16 %v1486
    %v2800 = vunpack.c.l.b16 %v1487
    %v2801 = vunpack.c.h.b16 %v1487
    %v2802 = vunpack.c.l.b16 %v1488
    %v2803 = vunpack.c.h.b16 %v1488
    %v2804 = vunpack.c.l.b16 %v1489
    %v2805 = vunpack.c.h.b16 %v1489
    %v2806 = vunpack.c.l.b16 %v1490
    %v2807 = vunpack.c.h.b16 %v1490
    %v2808 = vunpack.c.l.b16 %v1491
    %v2809 = vunpack.c.h.b16 %v1491
    %v2810 = vunpack.c.l.b16 %v1492
    %v2811 = vunpack.c.h.b16 %v1492
    %v2812 = vunpack.c.l.b16 %v1493
    %v2813 = vunpack.c.h.b16 %v1493
    %v2814 = vunpack.c.l.b16 %v1494
    %v2815 = vunpack.c.h.b16 %v1494
    %v2816 = vunpack.c.l.b16 %v1495
    %v2817 = vunpack.c.h.b16 %v1495
    %v2818 = vunpack.c.l.b16 %v1496
    %v2819 = vunpack.c.h.b16 %v1496
    %v2820 = vunpack.c.l.b16 %v1497
    %v2821 = vunpack.c.h.b16 %v1497
    %v2822 = vunpack.c.l.b16 %v1498
    %v2823 = vunpack.c.h.b16 %v1498
    %v2824 = vunpack.c.l.b16 %v1499
    %v2825 = vunpack.c.h.b16 %v1499
    %v2826 = vunpack.c.l.b16 %v1500
    %v2827 = vunpack.c.h.b16 %v1500
    %v2828 = vunpack.c.l.b16 %v1501
    %v2829 = vunpack.c.h.b16 %v1501
    %v2830 = vunpack.c.l.b16 %v1502
    %v2831 = vunpack.c.h.b16 %v1502
    %v2832 = vunpack.c.l.b16 %v1503
    %v2833 = vunpack.c.h.b16 %v1503
    %v2834 = vunpack.c.l.b16 %v1504
    %v2835 = vunpack.c.h.b16 %v1504
    %v2836 = vunpack.c.l.b16 %v1505
    %v2837 = vunpack.c.h.b16 %v1505
    %v2838 = vunpack.c.l.b16 %v1506
    %v2839 = vunpack.c.h.b16 %v1506
    %v2840 = vunpack.c.l.b16 %v1507
    %v2841 = vunpack.c.h.b16 %v1507
    %v2842 = vunpack.c.l.b16 %v1508
    %v2843 = vunpack.c.h.b16 %v1508
    %v2844 = vunpack.c.l.b16 %v1509
    %v2845 = vunpack.c.h.b16 %v1509
    %v2846 = vunpack.c.l.b16 %v1510
    %v2847 = vunpack.c.h.b16 %v1510
    %v2848 = vunpack.c.l.b16 %v1511
    %v2849 = vunpack.c.h.b16 %v1511
    %v2850 = vunpack.c.l.b16 %v1512
    %v2851 = vunpack.c.h.b16 %v1512
    %v2852 = vunpack.c.l.b16 %v1513
    %v2853 = vunpack.c.h.b16 %v1513
    %v2854 = vunpack.c.l.b16 %v1514
    %v2855 = vunpack.c.h.b16 %v1514
    %v2856 = vunpack.c.l.b16 %v1515
    %v2857 = vunpack.c.h.b16 %v1515
    %v2858 = vunpack.c.l.b16 %v1516
    %v2859 = vunpack.c.h.b16 %v1516
    %v2860 = vunpack.c.l.b16 %v1517
    %v2861 = vunpack.c.h.b16 %v1517
    %v2862 = vunpack.c.l.b16 %v1518
    %v2863 = vunpack.c.h.b16 %v1518
    %v2864 = vunpack.c.l.b16 %v1519
    %v2865 = vunpack.c.h.b16 %v1519
    %v2866 = vunpack.c.l.b16 %v1520
    %v2867 = vunpack.c.h.b16 %v1520
    %v2868 = vunpack.c.l.b16 %v1521
    %v2869 = vunpack.c.h.b16 %v1521
    %v2870 = vunpack.c.l.b16 %v1522
    %v2871 = vunpack.c.h.b16 %v1522
    %v2872 = vunpack.c.l.b16 %v1523
    %v2873 = vunpack.c.h.b16 %v1523
    %v2874 = vunpack.c.l.b16 %v1524
    %v2875 = vunpack.c.h.b16 %v1524
    %v2876 = vunpack.c.l.b16 %v1525
    %v2877 = vunpack.c.h.b16 %v1525
    %v2878 = vunpack.c.l.b16 %v1526
    %v2879 = vunpack.c.h.b16 %v1526
    %v2880 = vunpack.c.l.b16 %v1527
    %v2881 = vunpack.c.h.b16 %v1527
    %v2882 = vunpack.c.l.b16 %v1528
    %v2883 = vunpack.c.h.b16 %v1528
    %v2884 = vunpack.c.l.b16 %v1529
    %v2885 = vunpack.c.h.b16 %v1529
    %v2886 = vunpack.c.l.b16 %v1530
    %v2887 = vunpack.c.h.b16 %v1530
    %v2888 = vunpack.c.l.b16 %v1531
    %v2889 = vunpack.c.h.b16 %v1531
    %v2890 = vunpack.c.l.b16 %v1532
    %v2891 = vunpack.c.h.b16 %v1532
    %v2892 = vunpack.c.l.b16 %v1533
    %v2893 = vunpack.c.h.b16 %v1533
    %v2894 = vunpack.c.l.b16 %v1534
    %v2895 = vunpack.c.h.b16 %v1534
    %v2896 = vunpack.c.l.b16 %v1535
    %v2897 = vunpack.c.h.b16 %v1535
    %v2898 = vunpack.c.l.b16 %v1536
    %v2899 = vunpack.c.h.b16 %v1536
    %v2900 = vunpack.c.l.b16 %v1537
    %v2901 = vunpack.c.h.b16 %v1537
    %v2902 = vunpack.c.l.b16 %v1538
    %v2903 = vunpack.c.h.b16 %v1538
    %v2904 = vunpack.c.l.b16 %v1539
    %v2905 = vunpack.c.h.b16 %v1539
    %v2906 = vunpack.c.l.b16 %v1540
    %v2907 = vunpack.c.h.b16 %v1540
    %v2908 = vunpack.c.l.b16 %v1541
    %v2909 = vunpack.c.h.b16 %v1541
    %v2910 = vunpack.c.l.b16 %v1542
    %v2911 = vunpack.c.h.b16 %v1542
    %v2912 = vunpack.c.l.b16 %v1543
    %v2913 = vunpack.c.h.b16 %v1543
    %v2914 = vunpack.c.l.b16 %v1544
    %v2915 = vunpack.c.h.b16 %v1544
    %v2916 = vunpack.c.l.b16 %v1545
    %v2917 = vunpack.c.h.b16 %v1545
    %v2918 = vunpack.c.l.b16 %v1546
    %v2919 = vunpack.c.h.b16 %v1546
    %v2920 = vunpack.c.l.b16 %v1547
    %v2921 = vunpack.c.h.b16 %v1547
    %v2922 = vunpack.c.l.b16 %v1548
    %v2923 = vunpack.c.h.b16 %v1548
    %v2924 = vunpack.c.l.b16 %v1549
    %v2925 = vunpack.c.h.b16 %v1549
    %v2926 = vunpack.c.l.b16 %v1550
    %v2927 = vunpack.c.h.b16 %v1550
    %v2928 = vunpack.c.l.b16 %v1551
    %v2929 = vunpack.c.h.b16 %v1551
    %v2930 = vunpack.c.l.b16 %v1552
    %v2931 = vunpack.c.h.b16 %v1552
    %v2932 = vunpack.c.l.b16 %v1553
    %v2933 = vunpack.c.h.b16 %v1553
    %v2934 = vunpack.c.l.b16 %v1554
    %v2935 = vunpack.c.h.b16 %v1554
    %v2936 = vunpack.c.l.b16 %v1555
    %v2937 = vunpack.c.h.b16 %v1555
    %v2938 = vunpack.c.l.b16 %v1556
    %v2939 = vunpack.c.h.b16 %v1556
    %v2940 = vunpack.c.l.b16 %v1557
    %v2941 = vunpack.c.h.b16 %v1557
    %v2942 = vunpack.c.l.b16 %v1558
    %v2943 = vunpack.c.h.b16 %v1558
    %v2944 = vunpack.c.l.b16 %v1559
    %v2945 = vunpack.c.h.b16 %v1559
    %v2946 = vunpack.c.l.b16 %v1560
    %v2947 = vunpack.c.h.b16 %v1560
    %v2948 = vunpack.c.l.b16 %v1561
    %v2949 = vunpack.c.h.b16 %v1561
    %v2950 = vunpack.c.l.b16 %v1562
    %v2951 = vunpack.c.h.b16 %v1562
    %v2952 = vunpack.c.l.b16 %v1563
    %v2953 = vunpack.c.h.b16 %v1563
    %v2954 = vunpack.c.l.b16 %v1564
    %v2955 = vunpack.c.h.b16 %v1564
    %v2956 = vunpack.c.l.b16 %v1565
    %v2957 = vunpack.c.h.b16 %v1565
    %v2958 = vunpack.c.l.b16 %v1566
    %v2959 = vunpack.c.h.b16 %v1566
    %v2960 = vunpack.c.l.b16 %v1567
    %v2961 = vunpack.c.h.b16 %v1567
    %v2962 = vunpack.c.l.b16 %v1568
    %v2963 = vunpack.c.h.b16 %v1568
    %v2964 = vunpack.c.l.b16 %v1569
    %v2965 = vunpack.c.h.b16 %v1569
    %v2966 = vunpack.c.l.b16 %v1570
    %v2967 = vunpack.c.h.b16 %v1570
    %v2968 = vunpack.c.l.b16 %v1571
    %v2969 = vunpack.c.h.b16 %v1571
    %v2970 = vunpack.c.l.b16 %v1572
    %v2971 = vunpack.c.h.b16 %v1572
    %v2972 = vunpack.c.l.b16 %v1573
    %v2973 = vunpack.c.h.b16 %v1573
    %v2974 = vunpack.c.l.b16 %v1574
    %v2975 = vunpack.c.h.b16 %v1574
    %v2976 = vunpack.c.l.b16 %v1575
    %v2977 = vunpack.c.h.b16 %v1575
    %v2978 = vunpack.c.l.b16 %v1576
    %v2979 = vunpack.c.h.b16 %v1576
    %v2980 = vunpack.c.l.b16 %v1577
    %v2981 = vunpack.c.h.b16 %v1577
    %v2982 = vunpack.c.l.b16 %v1578
    %v2983 = vunpack.c.h.b16 %v1578
    %v2984 = vunpack.c.l.b16 %v1579
    %v2985 = vunpack.c.h.b16 %v1579
    %v2986 = vunpack.c.l.b16 %v1580
    %v2987 = vunpack.c.h.b16 %v1580
    %v2988 = vunpack.c.l.b16 %v1581
    %v2989 = vunpack.c.h.b16 %v1581
    %v2990 = vunpack.c.l.b16 %v1582
    %v2991 = vunpack.c.h.b16 %v1582
    %v2992 = vunpack.c.l.b16 %v1583
    %v2993 = vunpack.c.h.b16 %v1583
    %v2994 = vunpack.c.l.b16 %v1584
    %v2995 = vunpack.c.h.b16 %v1584
    %v2996 = vunpack.c.l.b16 %v1585
    %v2997 = vunpack.c.h.b16 %v1585
    %v2998 = vunpack.c.l.b16 %v1586
    %v2999 = vunpack.c.h.b16 %v1586
    %v3000 = vunpack.c.l.b16 %v1587
    %v3001 = vunpack.c.h.b16 %v1587
    %v3002 = vunpack.c.l.b16 %v1588
    %v3003 = vunpack.c.h.b16 %v1588
    %v3004 = vunpack.c.l.b16 %v1589
    %v3005 = vunpack.c.h.b16 %v1589
    %v3006 = vunpack.c.l.b16 %v1590
    %v3007 = vunpack.c.h.b16 %v1590
    %v3008 = vunpack.c.l.b16 %v1591
    %v3009 = vunpack.c.h.b16 %v1591
    %v3010 = vunpack.c.l.b16 %v1592
    %v3011 = vunpack.c.h.b16 %v1592
    %v3012 = vunpack.c.l.b16 %v1593
    %v3013 = vunpack.c.h.b16 %v1593
    %v3014 = vunpack.c.l.b16 %v1594
    %v3015 = vunpack.c.h.b16 %v1594
    %v3016 = vunpack.c.l.b16 %v1595
    %v3017 = vunpack.c.h.b16 %v1595
    %v3018 = vunpack.c.l.b16 %v1596
    %v3019 = vunpack.c.h.b16 %v1596
    %v3020 = vunpack.c.l.b16 %v1597
    %v3021 = vunpack.c.h.b16 %v1597
    %v3022 = vunpack.c.l.b16 %v1598
    %v3023 = vunpack.c.h.b16 %v1598
    %v3024 = vunpack.c.l.b16 %v1599
    %v3025 = vunpack.c.h.b16 %v1599
    %v3026 = vunpack.c.l.b16 %v1600
    %v3027 = vunpack.c.h.b16 %v1600
    %v3028 = vunpack.c.l.b16 %v1601
    %v3029 = vunpack.c.h.b16 %v1601
    %v3030 = vunpack.c.l.b16 %v1602
    %v3031 = vunpack.c.h.b16 %v1602
    %v3032 = vunpack.c.l.b16 %v1603
    %v3033 = vunpack.c.h.b16 %v1603
    %v3034 = vunpack.c.l.b16 %v1604
    %v3035 = vunpack.c.h.b16 %v1604
    %v3036 = vunpack.c.l.b16 %v1605
    %v3037 = vunpack.c.h.b16 %v1605
    %v3038 = vunpack.c.l.b16 %v1606
    %v3039 = vunpack.c.h.b16 %v1606
    %v3040 = vunpack.c.l.b16 %v1607
    %v3041 = vunpack.c.h.b16 %v1607
    %v3042 = vunpack.c.l.b16 %v1608
    %v3043 = vunpack.c.h.b16 %v1608
    %v3044 = vunpack.c.l.b16 %v1609
    %v3045 = vunpack.c.h.b16 %v1609
    %v3046 = vunpack.c.l.b16 %v1610
    %v3047 = vunpack.c.h.b16 %v1610
    %v3048 = vunpack.c.l.b16 %v1611
    %v3049 = vunpack.c.h.b16 %v1611
    %v3050 = vunpack.c.l.b16 %v1612
    %v3051 = vunpack.c.h.b16 %v1612
    %v3052 = vunpack.c.l.b16 %v1613
    %v3053 = vunpack.c.h.b16 %v1613
    %v3054 = vunpack.c.l.b16 %v1614
    %v3055 = vunpack.c.h.b16 %v1614
    %v3056 = vunpack.c.l.b16 %v1615
    %v3057 = vunpack.c.h.b16 %v1615
    %v3058 = vunpack.c.l.b16 %v1616
    %v3059 = vunpack.c.h.b16 %v1616
    %v3060 = vunpack.c.l.b16 %v1617
    %v3061 = vunpack.c.h.b16 %v1617
    %v3062 = vunpack.c.l.b16 %v1618
    %v3063 = vunpack.c.h.b16 %v1618
    %v3064 = vunpack.c.l.b16 %v1619
    %v3065 = vunpack.c.h.b16 %v1619
    %v3066 = vunpack.c.l.b16 %v1620
    %v3067 = vunpack.c.h.b16 %v1620
    %v3068 = vunpack.c.l.b16 %v1621
    %v3069 = vunpack.c.h.b16 %v1621
    %v3070 = vunpack.c.l.b16 %v1622
    %v3071 = vunpack.c.h.b16 %v1622
    %v3072 = vunpack.c.l.b16 %v1623
    %v3073 = vunpack.c.h.b16 %v1623
    %v3074 = vunpack.c.l.b16 %v1624
    %v3075 = vunpack.c.h.b16 %v1624
    %v3076 = vunpack.c.l.b16 %v1625
    %v3077 = vunpack.c.h.b16 %v1625
    %v3078 = vunpack.c.l.b16 %v1626
    %v3079 = vunpack.c.h.b16 %v1626
    %v3080 = vunpack.c.l.b16 %v1627
    %v3081 = vunpack.c.h.b16 %v1627
    %v3082 = vunpack.c.l.b16 %v1628
    %v3083 = vunpack.c.h.b16 %v1628
    %v3084 = vunpack.c.l.b16 %v1629
    %v3085 = vunpack.c.h.b16 %v1629
    %v3086 = vunpack.c.l.b16 %v1630
    %v3087 = vunpack.c.h.b16 %v1630
    %v3088 = vunpack.c.l.b16 %v1631
    %v3089 = vunpack.c.h.b16 %v1631
    %v3090 = vunpack.c.l.b16 %v1632
    %v3091 = vunpack.c.h.b16 %v1632
    %v3092 = vunpack.c.l.b16 %v1633
    %v3093 = vunpack.c.h.b16 %v1633
    %v3094 = vunpack.c.l.b16 %v1634
    %v3095 = vunpack.c.h.b16 %v1634
    %v3096 = vunpack.c.l.b16 %v1635
    %v3097 = vunpack.c.h.b16 %v1635
    %v3098 = vunpack.c.l.b16 %v1636
    %v3099 = vunpack.c.h.b16 %v1636
    %v3100 = vunpack.c.l.b16 %v1637
    %v3101 = vunpack.c.h.b16 %v1637
    %v3102 = vunpack.c.l.b16 %v1638
    %v3103 = vunpack.c.h.b16 %v1638
    %v3104 = vunpack.c.l.b16 %v1639
    %v3105 = vunpack.c.h.b16 %v1639
    %v3106 = vunpack.c.l.b16 %v1640
    %v3107 = vunpack.c.h.b16 %v1640
    %v3108 = vunpack.c.l.b16 %v1641
    %v3109 = vunpack.c.h.b16 %v1641
    %v3110 = vunpack.c.l.b16 %v1642
    %v3111 = vunpack.c.h.b16 %v1642
    %v3112 = vunpack.c.l.b16 %v1643
    %v3113 = vunpack.c.h.b16 %v1643
    %v3114 = vunpack.c.l.b16 %v1644
    %v3115 = vunpack.c.h.b16 %v1644
    %v3116 = vunpack.c.l.b16 %v1645
    %v3117 = vunpack.c.h.b16 %v1645
    %v3118 = vunpack.c.l.b16 %v1646
    %v3119 = vunpack.c.h.b16 %v1646
    %v3120 = vunpack.c.l.b16 %v1647
    %v3121 = vunpack.c.h.b16 %v1647
    %v3122 = vunpack.c.l.b16 %v1648
    %v3123 = vunpack.c.h.b16 %v1648
    %v3124 = vunpack.c.l.b16 %v1649
    %v3125 = vunpack.c.h.b16 %v1649
    %v3126 = vunpack.c.l.b16 %v1650
    %v3127 = vunpack.c.h.b16 %v1650
    %v3128 = vunpack.c.l.b16 %v1651
    %v3129 = vunpack.c.h.b16 %v1651
    %v3130 = vunpack.c.l.b16 %v1652
    %v3131 = vunpack.c.h.b16 %v1652
    %v3132 = vunpack.c.l.b16 %v1653
    %v3133 = vunpack.c.h.b16 %v1653
    %v3134 = vunpack.c.l.b16 %v1654
    %v3135 = vunpack.c.h.b16 %v1654
    %v3136 = vunpack.c.l.b16 %v1655
    %v3137 = vunpack.c.h.b16 %v1655
    %v3138 = vunpack.c.l.b16 %v1656
    %v3139 = vunpack.c.h.b16 %v1656
    %v3140 = vunpack.c.l.b16 %v1657
    %v3141 = vunpack.c.h.b16 %v1657
    %v3142 = vunpack.c.l.b16 %v1658
    %v3143 = vunpack.c.h.b16 %v1658
    %v3144 = vunpack.c.l.b16 %v1659
    %v3145 = vunpack.c.h.b16 %v1659
    %v3146 = vunpack.c.l.b16 %v1660
    %v3147 = vunpack.c.h.b16 %v1660
    %v3148 = vunpack.c.l.b16 %v1661
    %v3149 = vunpack.c.h.b16 %v1661
    %v3150 = vunpack.c.l.b16 %v1662
    %v3151 = vunpack.c.h.b16 %v1662
    %v3152 = vunpack.c.l.b16 %v1663
    %v3153 = vunpack.c.h.b16 %v1663
    %v3154 = vunpack.c.l.b16 %v1664
    %v3155 = vunpack.c.h.b16 %v1664
    %v3156 = vunpack.c.l.b16 %v1665
    %v3157 = vunpack.c.h.b16 %v1665
    %v3158 = vunpack.c.l.b16 %v1666
    %v3159 = vunpack.c.h.b16 %v1666
    %v3160 = vunpack.c.l.b16 %v1667
    %v3161 = vunpack.c.h.b16 %v1667
    %v3162 = vunpack.c.l.b16 %v1668
    %v3163 = vunpack.c.h.b16 %v1668
    %v3164 = vunpack.c.l.b16 %v1669
    %v3165 = vunpack.c.h.b16 %v1669
    %v3166 = vunpack.c.l.b16 %v1670
    %v3167 = vunpack.c.h.b16 %v1670
    %v3168 = vunpack.c.l.b16 %v1671
    %v3169 = vunpack.c.h.b16 %v1671
    %v3170 = vunpack.c.l.b16 %v1672
    %v3171 = vunpack.c.h.b16 %v1672
    %v3172 = vunpack.c.l.b16 %v1673
    %v3173 = vunpack.c.h.b16 %v1673
    %v3174 = vunpack.c.l.b16 %v1674
    %v3175 = vunpack.c.h.b16 %v1674
    %v3176 = vunpack.c.l.b16 %v1675
    %v3177 = vunpack.c.h.b16 %v1675
    %v3178 = vunpack.c.l.b16 %v1676
    %v3179 = vunpack.c.h.b16 %v1676
    %v3180 = vunpack.c.l.b16 %v1677
    %v3181 = vunpack.c.h.b16 %v1677
    %v3182 = vunpack.c.l.b16 %v1678
    %v3183 = vunpack.c.h.b16 %v1678
    %v3184 = vunpack.c.l.b16 %v1679
    %v3185 = vunpack.c.h.b16 %v1679
    %v3186 = vunpack.c.l.b16 %v1680
    %v3187 = vunpack.c.h.b16 %v1680
    %v3188 = vunpack.c.l.b16 %v1681
    %v3189 = vunpack.c.h.b16 %v1681
    %v3190 = vunpack.c.l.b16 %v1682
    %v3191 = vunpack.c.h.b16 %v1682
    %v3192 = vunpack.c.l.b16 %v1683
    %v3193 = vunpack.c.h.b16 %v1683
    %v3194 = vunpack.c.l.b16 %v1684
    %v3195 = vunpack.c.h.b16 %v1684
    %v3196 = vunpack.c.l.b16 %v1685
    %v3197 = vunpack.c.h.b16 %v1685
    %v3198 = vunpack.c.l.b16 %v1686
    %v3199 = vunpack.c.h.b16 %v1686
    %v3200 = vunpack.c.l.b16 %v1687
    %v3201 = vunpack.c.h.b16 %v1687
    %v3202 = vunpack.c.l.b16 %v1688
    %v3203 = vunpack.c.h.b16 %v1688
    %v3204 = vunpack.c.l.b16 %v1689
    %v3205 = vunpack.c.h.b16 %v1689
    %v3206 = vunpack.c.l.b16 %v1690
    %v3207 = vunpack.c.h.b16 %v1690
    %v3208 = vunpack.c.l.b16 %v1691
    %v3209 = vunpack.c.h.b16 %v1691
    %v3210 = vunpack.c.l.b16 %v1692
    %v3211 = vunpack.c.h.b16 %v1692
    %v3212 = vunpack.c.l.b16 %v1693
    %v3213 = vunpack.c.h.b16 %v1693
    %v3214 = vunpack.c.l.b16 %v1694
    %v3215 = vunpack.c.h.b16 %v1694
    %v3216 = vunpack.c.l.b16 %v1695
    %v3217 = vunpack.c.h.b16 %v1695
    %v3218 = vunpack.c.l.b16 %v1696
    %v3219 = vunpack.c.h.b16 %v1696
    %v3220 = vunpack.c.l.b16 %v1697
    %v3221 = vunpack.c.h.b16 %v1697
    %v3222 = vunpack.c.l.b16 %v1698
    %v3223 = vunpack.c.h.b16 %v1698
    %v3224 = vunpack.c.l.b16 %v1699
    %v3225 = vunpack.c.h.b16 %v1699
    %v3226 = vunpack.c.l.b16 %v1700
    %v3227 = vunpack.c.h.b16 %v1700
    %v3228 = vunpack.c.l.b16 %v1701
    %v3229 = vunpack.c.h.b16 %v1701
    %v3230 = vunpack.c.l.b16 %v1702
    %v3231 = vunpack.c.h.b16 %v1702
    %v3232 = vunpack.c.l.b16 %v1703
    %v3233 = vunpack.c.h.b16 %v1703
    %v3234 = vunpack.c.l.b16 %v1704
    %v3235 = vunpack.c.h.b16 %v1704
    %v3236 = vunpack.c.l.b16 %v1705
    %v3237 = vunpack.c.h.b16 %v1705
    %v3238 = vunpack.c.l.b16 %v1706
    %v3239 = vunpack.c.h.b16 %v1706
    %v3240 = vunpack.c.l.b16 %v1707
    %v3241 = vunpack.c.h.b16 %v1707
    %v3242 = vunpack.c.l.b16 %v1708
    %v3243 = vunpack.c.h.b16 %v1708
    %v3244 = vunpack.c.l.b16 %v1709
    %v3245 = vunpack.c.h.b16 %v1709
    %v3246 = vunpack.c.l.b16 %v1710
    %v3247 = vunpack.c.h.b16 %v1710
    %v3248 = vunpack.c.l.b16 %v1711
    %v3249 = vunpack.c.h.b16 %v1711
    %v3250 = vunpack.c.l.b16 %v1712
    %v3251 = vunpack.c.h.b16 %v1712
    %v3252 = vunpack.c.l.b16 %v1713
    %v3253 = vunpack.c.h.b16 %v1713
    %v3254 = vunpack.c.l.b16 %v1714
    %v3255 = vunpack.c.h.b16 %v1714
    %v3256 = vunpack.c.l.b16 %v1715
    %v3257 = vunpack.c.h.b16 %v1715
    %v3258 = vunpack.c.l.b16 %v1716
    %v3259 = vunpack.c.h.b16 %v1716
    %v3260 = vunpack.c.l.b16 %v1717
    %v3261 = vunpack.c.h.b16 %v1717
    %v3262 = vunpack.c.l.b16 %v1718
    %v3263 = vunpack.c.h.b16 %v1718
    %v3264 = vunpack.c.l.b16 %v1719
    %v3265 = vunpack.c.h.b16 %v1719
    %v3266 = vpack.c.b16 %v2246, %v2242
    %v3267 = vpack.c.b16 %v2247, %v2243
    %v3268 = vpack.c.b16 %v2248, %v2244
    %v3269 = vpack.c.b16 %v2249, %v2245
    %v3270 = vpack.c.b16 %v2254, %v2250
    %v3271 = vpack.c.b16 %v2255, %v2251
    %v3272 = vpack.c.b16 %v2256, %v2252
    %v3273 = vpack.c.b16 %v2257, %v2253
    %v3274 = vpack.c.b16 %v2262, %v2258
    %v3275 = vpack.c.b16 %v2263, %v2259
    %v3276 = vpack.c.b16 %v2264, %v2260
    %v3277 = vpack.c.b16 %v2265, %v2261
    %v3278 = vpack.c.b16 %v2270, %v2266
    %v3279 = vpack.c.b16 %v2271, %v2267
    %v3280 = vpack.c.b16 %v2272, %v2268
    %v3281 = vpack.c.b16 %v2273, %v2269
    %v3282 = vpack.c.b16 %v2278, %v2274
    %v3283 = vpack.c.b16 %v2279, %v2275
    %v3284 = vpack.c.b16 %v2280, %v2276
    %v3285 = vpack.c.b16 %v2281, %v2277
    %v3286 = vpack.c.b16 %v2286, %v2282
    %v3287 = vpack.c.b16 %v2287, %v2283
    %v3288 = vpack.c.b16 %v2288, %v2284
    %v3289 = vpack.c.b16 %v2289, %v2285
    %v3290 = vpack.c.b16 %v2294, %v2290
    %v3291 = vpack.c.b16 %v2295, %v2291
    %v3292 = vpack.c.b16 %v2296, %v2292
    %v3293 = vpack.c.b16 %v2297, %v2293
    %v3294 = vpack.c.b16 %v2302, %v2298
    %v3295 = vpack.c.b16 %v2303, %v2299
    %v3296 = vpack.c.b16 %v2304, %v2300
    %v3297 = vpack.c.b16 %v2305, %v2301
    %v3298 = vpack.c.b16 %v2310, %v2306
    %v3299 = vpack.c.b16 %v2311, %v2307
    %v3300 = vpack.c.b16 %v2312, %v2308
    %v3301 = vpack.c.b16 %v2313, %v2309
    %v3302 = vpack.c.b16 %v2318, %v2314
    %v3303 = vpack.c.b16 %v2319, %v2315
    %v3304 = vpack.c.b16 %v2320, %v2316
    %v3305 = vpack.c.b16 %v2321, %v2317
    %v3306 = vpack.c.b16 %v2326, %v2322
    %v3307 = vpack.c.b16 %v2327, %v2323
    %v3308 = vpack.c.b16 %v2328, %v2324
    %v3309 = vpack.c.b16 %v2329, %v2325
    %v3310 = vpack.c.b16 %v2334, %v2330
    %v3311 = vpack.c.b16 %v2335, %v2331
    %v3312 = vpack.c.b16 %v2336, %v2332
    %v3313 = vpack.c.b16 %v2337, %v2333
    %v3314 = vpack.c.b16 %v2342, %v2338
    %v3315 = vpack.c.b16 %v2343, %v2339
    %v3316 = vpack.c.b16 %v2344, %v2340
    %v3317 = vpack.c.b16 %v2345, %v2341
    %v3318 = vpack.c.b16 %v2350, %v2346
    %v3319 = vpack.c.b16 %v2351, %v2347
    %v3320 = vpack.c.b16 %v2352, %v2348
    %v3321 = vpack.c.b16 %v2353, %v2349
    %v3322 = vpack.c.b16 %v2358, %v2354
    %v3323 = vpack.c.b16 %v2359, %v2355
    %v3324 = vpack.c.b16 %v2360, %v2356
    %v3325 = vpack.c.b16 %v2361, %v2357
    %v3326 = vpack.c.b16 %v2366, %v2362
    %v3327 = vpack.c.b16 %v2367, %v2363
    %v3328 = vpack.c.b16 %v2368, %v2364
    %v3329 = vpack.c.b16 %v2369, %v2365
    %v3330 = vpack.c.b16 %v2374, %v2370
    %v3331 = vpack.c.b16 %v2375, %v2371
    %v3332 = vpack.c.b16 %v2376, %v2372
    %v3333 = vpack.c.b16 %v2377, %v2373
    %v3334 = vpack.c.b16 %v2382, %v2378
    %v3335 = vpack.c.b16 %v2383, %v2379
    %v3336 = vpack.c.b16 %v2384, %v2380
    %v3337 = vpack.c.b16 %v2385, %v2381
    %v3338 = vpack.c.b16 %v2390, %v2386
    %v3339 = vpack.c.b16 %v2391, %v2387
    %v3340 = vpack.c.b16 %v2392, %v2388
    %v3341 = vpack.c.b16 %v2393, %v2389
    %v3342 = vpack.c.b16 %v2398, %v2394
    %v3343 = vpack.c.b16 %v2399, %v2395
    %v3344 = vpack.c.b16 %v2400, %v2396
    %v3345 = vpack.c.b16 %v2401, %v2397
    %v3346 = vpack.c.b16 %v2406, %v2402
    %v3347 = vpack.c.b16 %v2407, %v2403
    %v3348 = vpack.c.b16 %v2408, %v2404
    %v3349 = vpack.c.b16 %v2409, %v2405
    %v3350 = vpack.c.b16 %v2414, %v2410
    %v3351 = vpack.c.b16 %v2415, %v2411
    %v3352 = vpack.c.b16 %v2416, %v2412
    %v3353 = vpack.c.b16 %v2417, %v2413
    %v3354 = vpack.c.b16 %v2422, %v2418
    %v3355 = vpack.c.b16 %v2423, %v2419
    %v3356 = vpack.c.b16 %v2424, %v2420
    %v3357 = vpack.c.b16 %v2425, %v2421
    %v3358 = vpack.c.b16 %v2430, %v2426
    %v3359 = vpack.c.b16 %v2431, %v2427
    %v3360 = vpack.c.b16 %v2432, %v2428
    %v3361 = vpack.c.b16 %v2433, %v2429
    %v3362 = vpack.c.b16 %v2438, %v2434
    %v3363 = vpack.c.b16 %v2439, %v2435
    %v3364 = vpack.c.b16 %v2440, %v2436
    %v3365 = vpack.c.b16 %v2441, %v2437
    %v3366 = vpack.c.b16 %v2446, %v2442
    %v3367 = vpack.c.b16 %v2447, %v2443
    %v3368 = vpack.c.b16 %v2448, %v2444
    %v3369 = vpack.c.b16 %v2449, %v2445
    %v3370 = vpack.c.b16 %v2454, %v2450
    %v3371 = vpack.c.b16 %v2455, %v2451
    %v3372 = vpack.c.b16 %v2456, %v2452
    %v3373 = vpack.c.b16 %v2457, %v2453
    %v3374 = vpack.c.b16 %v2462, %v2458
    %v3375 = vpack.c.b16 %v2463, %v2459
    %v3376 = vpack.c.b16 %v2464, %v2460
    %v3377 = vpack.c.b16 %v2465, %v2461
    %v3378 = vpack.c.b16 %v2470, %v2466
    %v3379 = vpack.c.b16 %v2471, %v2467
    %v3380 = vpack.c.b16 %v2472, %v2468
    %v3381 = vpack.c.b16 %v2473, %v2469
    %v3382 = vpack.c.b16 %v2478, %v2474
    %v3383 = vpack.c.b16 %v2479, %v2475
    %v3384 = vpack.c.b16 %v2480, %v2476
    %v3385 = vpack.c.b16 %v2481, %v2477
    %v3386 = vpack.c.b16 %v2486, %v2482
    %v3387 = vpack.c.b16 %v2487, %v2483
    %v3388 = vpack.c.b16 %v2488, %v2484
    %v3389 = vpack.c.b16 %v2489, %v2485
    %v3390 = vpack.c.b16 %v2494, %v2490
    %v3391 = vpack.c.b16 %v2495, %v2491
    %v3392 = vpack.c.b16 %v2496, %v2492
    %v3393 = vpack.c.b16 %v2497, %v2493
    %v3394 = vpack.c.b16 %v2502, %v2498
    %v3395 = vpack.c.b16 %v2503, %v2499
    %v3396 = vpack.c.b16 %v2504, %v2500
    %v3397 = vpack.c.b16 %v2505, %v2501
    %v3398 = vpack.c.b16 %v2510, %v2506
    %v3399 = vpack.c.b16 %v2511, %v2507
    %v3400 = vpack.c.b16 %v2512, %v2508
    %v3401 = vpack.c.b16 %v2513, %v2509
    %v3402 = vpack.c.b16 %v2518, %v2514
    %v3403 = vpack.c.b16 %v2519, %v2515
    %v3404 = vpack.c.b16 %v2520, %v2516
    %v3405 = vpack.c.b16 %v2521, %v2517
    %v3406 = vpack.c.b16 %v2526, %v2522
    %v3407 = vpack.c.b16 %v2527, %v2523
    %v3408 = vpack.c.b16 %v2528, %v2524
    %v3409 = vpack.c.b16 %v2529, %v2525
    %v3410 = vpack.c.b16 %v2534, %v2530
    %v3411 = vpack.c.b16 %v2535, %v2531
    %v3412 = vpack.c.b16 %v2536, %v2532
    %v3413 = vpack.c.b16 %v2537, %v2533
    %v3414 = vpack.c.b16 %v2542, %v2538
    %v3415 = vpack.c.b16 %v2543, %v2539
    %v3416 = vpack.c.b16 %v2544, %v2540
    %v3417 = vpack.c.b16 %v2545, %v2541
    %v3418 = vpack.c.b16 %v2550, %v2546
    %v3419 = vpack.c.b16 %v2551, %v2547
    %v3420 = vpack.c.b16 %v2552, %v2548
    %v3421 = vpack.c.b16 %v2553, %v2549
    %v3422 = vpack.c.b16 %v2558, %v2554
    %v3423 = vpack.c.b16 %v2559, %v2555
    %v3424 = vpack.c.b16 %v2560, %v2556
    %v3425 = vpack.c.b16 %v2561, %v2557
    %v3426 = vpack.c.b16 %v2566, %v2562
    %v3427 = vpack.c.b16 %v2567, %v2563
    %v3428 = vpack.c.b16 %v2568, %v2564
    %v3429 = vpack.c.b16 %v2569, %v2565
    %v3430 = vpack.c.b16 %v2574, %v2570
    %v3431 = vpack.c.b16 %v2575, %v2571
    %v3432 = vpack.c.b16 %v2576, %v2572
    %v3433 = vpack.c.b16 %v2577, %v2573
    %v3434 = vpack.c.b16 %v2582, %v2578
    %v3435 = vpack.c.b16 %v2583, %v2579
    %v3436 = vpack.c.b16 %v2584, %v2580
    %v3437 = vpack.c.b16 %v2585, %v2581
    %v3438 = vpack.c.b16 %v2590, %v2586
    %v3439 = vpack.c.b16 %v2591, %v2587
    %v3440 = vpack.c.b16 %v2592, %v2588
    %v3441 = vpack.c.b16 %v2593, %v2589
    %v3442 = vpack.c.b16 %v2598, %v2594
    %v3443 = vpack.c.b16 %v2599, %v2595
    %v3444 = vpack.c.b16 %v2600, %v2596
    %v3445 = vpack.c.b16 %v2601, %v2597
    %v3446 = vpack.c.b16 %v2606, %v2602
    %v3447 = vpack.c.b16 %v2607, %v2603
    %v3448 = vpack.c.b16 %v2608, %v2604
    %v3449 = vpack.c.b16 %v2609, %v2605
    %v3450 = vpack.c.b16 %v2614, %v2610
    %v3451 = vpack.c.b16 %v2615, %v2611
    %v3452 = vpack.c.b16 %v2616, %v2612
    %v3453 = vpack.c.b16 %v2617, %v2613
    %v3454 = vpack.c.b16 %v2622, %v2618
    %v3455 = vpack.c.b16 %v2623, %v2619
    %v3456 = vpack.c.b16 %v2624, %v2620
    %v3457 = vpack.c.b16 %v2625, %v2621
    %v3458 = vpack.c.b16 %v2630, %v2626
    %v3459 = vpack.c.b16 %v2631, %v2627
    %v3460 = vpack.c.b16 %v2632, %v2628
    %v3461 = vpack.c.b16 %v2633, %v2629
    %v3462 = vpack.c.b16 %v2638, %v2634
    %v3463 = vpack.c.b16 %v2639, %v2635
    %v3464 = vpack.c.b16 %v2640, %v2636
    %v3465 = vpack.c.b16 %v2641, %v2637
    %v3466 = vpack.c.b16 %v2646, %v2642
    %v3467 = vpack.c.b16 %v2647, %v2643
    %v3468 = vpack.c.b16 %v2648, %v2644
    %v3469 = vpack.c.b16 %v2649, %v2645
    %v3470 = vpack.c.b16 %v2654, %v2650
    %v3471 = vpack.c.b16 %v2655, %v2651
    %v3472 = vpack.c.b16 %v2656, %v2652
    %v3473 = vpack.c.b16 %v2657, %v2653
    %v3474 = vpack.c.b16 %v2662, %v2658
    %v3475 = vpack.c.b16 %v2663, %v2659
    %v3476 = vpack.c.b16 %v2664, %v2660
    %v3477 = vpack.c.b16 %v2665, %v2661
    %v3478 = vpack.c.b16 %v2670, %v2666
    %v3479 = vpack.c.b16 %v2671, %v2667
    %v3480 = vpack.c.b16 %v2672, %v2668
    %v3481 = vpack.c.b16 %v2673, %v2669
    %v3482 = vpack.c.b16 %v2678, %v2674
    %v3483 = vpack.c.b16 %v2679, %v2675
    %v3484 = vpack.c.b16 %v2680, %v2676
    %v3485 = vpack.c.b16 %v2681, %v2677
    %v3486 = vpack.c.b16 %v2686, %v2682
    %v3487 = vpack.c.b16 %v2687, %v2683
    %v3488 = vpack.c.b16 %v2688, %v2684
    %v3489 = vpack.c.b16 %v2689, %v2685
    %v3490 = vpack.c.b16 %v2694, %v2690
    %v3491 = vpack.c.b16 %v2695, %v2691
    %v3492 = vpack.c.b16 %v2696, %v2692
    %v3493 = vpack.c.b16 %v2697, %v2693
    %v3494 = vpack.c.b16 %v2702, %v2698
    %v3495 = vpack.c.b16 %v2703, %v2699
    %v3496 = vpack.c.b16 %v2704, %v2700
    %v3497 = vpack.c.b16 %v2705, %v2701
    %v3498 = vpack.c.b16 %v2710, %v2706
    %v3499 = vpack.c.b16 %v2711, %v2707
    %v3500 = vpack.c.b16 %v2712, %v2708
    %v3501 = vpack.c.b16 %v2713, %v2709
    %v3502 = vpack.c.b16 %v2718, %v2714
    %v3503 = vpack.c.b16 %v2719, %v2715
    %v3504 = vpack.c.b16 %v2720, %v2716
    %v3505 = vpack.c.b16 %v2721, %v2717
    %v3506 = vpack.c.b16 %v2726, %v2722
    %v3507 = vpack.c.b16 %v2727, %v2723
    %v3508 = vpack.c.b16 %v2728, %v2724
    %v3509 = vpack.c.b16 %v2729, %v2725
    %v3510 = vpack.c.b16 %v2734, %v2730
    %v3511 = vpack.c.b16 %v2735, %v2731
    %v3512 = vpack.c.b16 %v2736, %v2732
    %v3513 = vpack.c.b16 %v2737, %v2733
    %v3514 = vpack.c.b16 %v2742, %v2738
    %v3515 = vpack.c.b16 %v2743, %v2739
    %v3516 = vpack.c.b16 %v2744, %v2740
    %v3517 = vpack.c.b16 %v2745, %v2741
    %v3518 = vpack.c.b16 %v2750, %v2746
    %v3519 = vpack.c.b16 %v2751, %v2747
    %v3520 = vpack.c.b16 %v2752, %v2748
    %v3521 = vpack.c.b16 %v2753, %v2749
    %v3522 = vpack.c.b16 %v2758, %v2754
    %v3523 = vpack.c.b16 %v2759, %v2755
    %v3524 = vpack.c.b16 %v2760, %v2756
    %v3525 = vpack.c.b16 %v2761, %v2757
    %v3526 = vpack.c.b16 %v2766, %v2762
    %v3527 = vpack.c.b16 %v2767, %v2763
    %v3528 = vpack.c.b16 %v2768, %v2764
    %v3529 = vpack.c.b16 %v2769, %v2765
    %v3530 = vpack.c.b16 %v2774, %v2770
    %v3531 = vpack.c.b16 %v2775, %v2771
    %v3532 = vpack.c.b16 %v2776, %v2772
    %v3533 = vpack.c.b16 %v2777, %v2773
    %v3534 = vpack.c.b16 %v2782, %v2778
    %v3535 = vpack.c.b16 %v2783, %v2779
    %v3536 = vpack.c.b16 %v2784, %v2780
    %v3537 = vpack.c.b16 %v2785, %v2781
    %v3538 = vpack.c.b16 %v2790, %v2786
    %v3539 = vpack.c.b16 %v2791, %v2787
    %v3540 = vpack.c.b16 %v2792, %v2788
    %v3541 = vpack.c.b16 %v2793, %v2789
    %v3542 = vpack.c.b16 %v2798, %v2794
    %v3543 = vpack.c.b16 %v2799, %v2795
    %v3544 = vpack.c.b16 %v2800, %v2796
    %v3545 = vpack.c.b16 %v2801, %v2797
    %v3546 = vpack.c.b16 %v2806, %v2802
    %v3547 = vpack.c.b16 %v2807, %v2803
    %v3548 = vpack.c.b16 %v2808, %v2804
    %v3549 = vpack.c.b16 %v2809, %v2805
    %v3550 = vpack.c.b16 %v2814, %v2810
    %v3551 = vpack.c.b16 %v2815, %v2811
    %v3552 = vpack.c.b16 %v2816, %v2812
    %v3553 = vpack.c.b16 %v2817, %v2813
    %v3554 = vpack.c.b16 %v2822, %v2818
    %v3555 = vpack.c.b16 %v2823, %v2819
    %v3556 = vpack.c.b16 %v2824, %v2820
    %v3557 = vpack.c.b16 %v2825, %v2821
    %v3558 = vpack.c.b16 %v2830, %v2826
    %v3559 = vpack.c.b16 %v2831, %v2827
    %v3560 = vpack.c.b16 %v2832, %v2828
    %v3561 = vpack.c.b16 %v2833, %v2829
    %v3562 = vpack.c.b16 %v2838, %v2834
    %v3563 = vpack.c.b16 %v2839, %v2835
    %v3564 = vpack.c.b16 %v2840, %v2836
    %v3565 = vpack.c.b16 %v2841, %v2837
    %v3566 = vpack.c.b16 %v2846, %v2842
    %v3567 = vpack.c.b16 %v2847, %v2843
    %v3568 = vpack.c.b16 %v2848, %v2844
    %v3569 = vpack.c.b16 %v2849, %v2845
    %v3570 = vpack.c.b16 %v2854, %v2850
    %v3571 = vpack.c.b16 %v2855, %v2851
    %v3572 = vpack.c.b16 %v2856, %v2852
    %v3573 = vpack.c.b16 %v2857, %v2853
    %v3574 = vpack.c.b16 %v2862, %v2858
    %v3575 = vpack.c.b16 %v2863, %v2859
    %v3576 = vpack.c.b16 %v2864, %v2860
    %v3577 = vpack.c.b16 %v2865, %v2861
    %v3578 = vpack.c.b16 %v2870, %v2866
    %v3579 = vpack.c.b16 %v2871, %v2867
    %v3580 = vpack.c.b16 %v2872, %v2868
    %v3581 = vpack.c.b16 %v2873, %v2869
    %v3582 = vpack.c.b16 %v2878, %v2874
    %v3583 = vpack.c.b16 %v2879, %v2875
    %v3584 = vpack.c.b16 %v2880, %v2876
    %v3585 = vpack.c.b16 %v2881, %v2877
    %v3586 = vpack.c.b16 %v2886, %v2882
    %v3587 = vpack.c.b16 %v2887, %v2883
    %v3588 = vpack.c.b16 %v2888, %v2884
    %v3589 = vpack.c.b16 %v2889, %v2885
    %v3590 = vpack.c.b16 %v2894, %v2890
    %v3591 = vpack.c.b16 %v2895, %v2891
    %v3592 = vpack.c.b16 %v2896, %v2892
    %v3593 = vpack.c.b16 %v2897, %v2893
    %v3594 = vpack.c.b16 %v2902, %v2898
    %v3595 = vpack.c.b16 %v2903, %v2899
    %v3596 = vpack.c.b16 %v2904, %v2900
    %v3597 = vpack.c.b16 %v2905, %v2901
    %v3598 = vpack.c.b16 %v2910, %v2906
    %v3599 = vpack.c.b16 %v2911, %v2907
    %v3600 = vpack.c.b16 %v2912, %v2908
    %v3601 = vpack.c.b16 %v2913, %v2909
    %v3602 = vpack.c.b16 %v2918, %v2914
    %v3603 = vpack.c.b16 %v2919, %v2915
    %v3604 = vpack.c.b16 %v2920, %v2916
    %v3605 = vpack.c.b16 %v2921, %v2917
    %v3606 = vpack.c.b16 %v2926, %v2922
    %v3607 = vpack.c.b16 %v2927, %v2923
    %v3608 = vpack.c.b16 %v2928, %v2924
    %v3609 = vpack.c.b16 %v2929, %v2925
    %v3610 = vpack.c.b16 %v2934, %v2930
    %v3611 = vpack.c.b16 %v2935, %v2931
    %v3612 = vpack.c.b16 %v2936, %v2932
    %v3613 = vpack.c.b16 %v2937, %v2933
    %v3614 = vpack.c.b16 %v2942, %v2938
    %v3615 = vpack.c.b16 %v2943, %v2939
    %v3616 = vpack.c.b16 %v2944, %v2940
    %v3617 = vpack.c.b16 %v2945, %v2941
    %v3618 = vpack.c.b16 %v2950, %v2946
    %v3619 = vpack.c.b16 %v2951, %v2947
    %v3620 = vpack.c.b16 %v2952, %v2948
    %v3621 = vpack.c.b16 %v2953, %v2949
    %v3622 = vpack.c.b16 %v2958, %v2954
    %v3623 = vpack.c.b16 %v2959, %v2955
    %v3624 = vpack.c.b16 %v2960, %v2956
    %v3625 = vpack.c.b16 %v2961, %v2957
    %v3626 = vpack.c.b16 %v2966, %v2962
    %v3627 = vpack.c.b16 %v2967, %v2963
    %v3628 = vpack.c.b16 %v2968, %v2964
    %v3629 = vpack.c.b16 %v2969, %v2965
    %v3630 = vpack.c.b16 %v2974, %v2970
    %v3631 = vpack.c.b16 %v2975, %v2971
    %v3632 = vpack.c.b16 %v2976, %v2972
    %v3633 = vpack.c.b16 %v2977, %v2973
    %v3634 = vpack.c.b16 %v2982, %v2978
    %v3635 = vpack.c.b16 %v2983, %v2979
    %v3636 = vpack.c.b16 %v2984, %v2980
    %v3637 = vpack.c.b16 %v2985, %v2981
    %v3638 = vpack.c.b16 %v2990, %v2986
    %v3639 = vpack.c.b16 %v2991, %v2987
    %v3640 = vpack.c.b16 %v2992, %v2988
    %v3641 = vpack.c.b16 %v2993, %v2989
    %v3642 = vpack.c.b16 %v2998, %v2994
    %v3643 = vpack.c.b16 %v2999, %v2995
    %v3644 = vpack.c.b16 %v3000, %v2996
    %v3645 = vpack.c.b16 %v3001, %v2997
    %v3646 = vpack.c.b16 %v3006, %v3002
    %v3647 = vpack.c.b16 %v3007, %v3003
    %v3648 = vpack.c.b16 %v3008, %v3004
    %v3649 = vpack.c.b16 %v3009, %v3005
    %v3650 = vpack.c.b16 %v3014, %v3010
    %v3651 = vpack.c.b16 %v3015, %v3011
    %v3652 = vpack.c.b16 %v3016, %v3012
    %v3653 = vpack.c.b16 %v3017, %v3013
    %v3654 = vpack.c.b16 %v3022, %v3018
    %v3655 = vpack.c.b16 %v3023, %v3019
    %v3656 = vpack.c.b16 %v3024, %v3020
    %v3657 = vpack.c.b16 %v3025, %v3021
    %v3658 = vpack.c.b16 %v3030, %v3026
    %v3659 = vpack.c.b16 %v3031, %v3027
    %v3660 = vpack.c.b16 %v3032, %v3028
    %v3661 = vpack.c.b16 %v3033, %v3029
    %v3662 = vpack.c.b16 %v3038, %v3034
    %v3663 = vpack.c.b16 %v3039, %v3035
    %v3664 = vpack.c.b16 %v3040, %v3036
    %v3665 = vpack.c.b16 %v3041, %v3037
    %v3666 = vpack.c.b16 %v3046, %v3042
    %v3667 = vpack.c.b16 %v3047, %v3043
    %v3668 = vpack.c.b16 %v3048, %v3044
    %v3669 = vpack.c.b16 %v3049, %v3045
    %v3670 = vpack.c.b16 %v3054, %v3050
    %v3671 = vpack.c.b16 %v3055, %v3051
    %v3672 = vpack.c.b16 %v3056, %v3052
    %v3673 = vpack.c.b16 %v3057, %v3053
    %v3674 = vpack.c.b16 %v3062, %v3058
    %v3675 = vpack.c.b16 %v3063, %v3059
    %v3676 = vpack.c.b16 %v3064, %v3060
    %v3677 = vpack.c.b16 %v3065, %v3061
    %v3678 = vpack.c.b16 %v3070, %v3066
    %v3679 = vpack.c.b16 %v3071, %v3067
    %v3680 = vpack.c.b16 %v3072, %v3068
    %v3681 = vpack.c.b16 %v3073, %v3069
    %v3682 = vpack.c.b16 %v3078, %v3074
    %v3683 = vpack.c.b16 %v3079, %v3075
    %v3684 = vpack.c.b16 %v3080, %v3076
    %v3685 = vpack.c.b16 %v3081, %v3077
    %v3686 = vpack.c.b16 %v3086, %v3082
    %v3687 = vpack.c.b16 %v3087, %v3083
    %v3688 = vpack.c.b16 %v3088, %v3084
    %v3689 = vpack.c.b16 %v3089, %v3085
    %v3690 = vpack.c.b16 %v3094, %v3090
    %v3691 = vpack.c.b16 %v3095, %v3091
    %v3692 = vpack.c.b16 %v3096, %v3092
    %v3693 = vpack.c.b16 %v3097, %v3093
    %v3694 = vpack.c.b16 %v3102, %v3098
    %v3695 = vpack.c.b16 %v3103, %v3099
    %v3696 = vpack.c.b16 %v3104, %v3100
    %v3697 = vpack.c.b16 %v3105, %v3101
    %v3698 = vpack.c.b16 %v3110, %v3106
    %v3699 = vpack.c.b16 %v3111, %v3107
    %v3700 = vpack.c.b16 %v3112, %v3108
    %v3701 = vpack.c.b16 %v3113, %v3109
    %v3702 = vpack.c.b16 %v3118, %v3114
    %v3703 = vpack.c.b16 %v3119, %v3115
    %v3704 = vpack.c.b16 %v3120, %v3116
    %v3705 = vpack.c.b16 %v3121, %v3117
    %v3706 = vpack.c.b16 %v3126, %v3122
    %v3707 = vpack.c.b16 %v3127, %v3123
    %v3708 = vpack.c.b16 %v3128, %v3124
    %v3709 = vpack.c.b16 %v3129, %v3125
    %v3710 = vpack.c.b16 %v3134, %v3130
    %v3711 = vpack.c.b16 %v3135, %v3131
    %v3712 = vpack.c.b16 %v3136, %v3132
    %v3713 = vpack.c.b16 %v3137, %v3133
    %v3714 = vpack.c.b16 %v3142, %v3138
    %v3715 = vpack.c.b16 %v3143, %v3139
    %v3716 = vpack.c.b16 %v3144, %v3140
    %v3717 = vpack.c.b16 %v3145, %v3141
    %v3718 = vpack.c.b16 %v3150, %v3146
    %v3719 = vpack.c.b16 %v3151, %v3147
    %v3720 = vpack.c.b16 %v3152, %v3148
    %v3721 = vpack.c.b16 %v3153, %v3149
    %v3722 = vpack.c.b16 %v3158, %v3154
    %v3723 = vpack.c.b16 %v3159, %v3155
    %v3724 = vpack.c.b16 %v3160, %v3156
    %v3725 = vpack.c.b16 %v3161, %v3157
    %v3726 = vpack.c.b16 %v3166, %v3162
    %v3727 = vpack.c.b16 %v3167, %v3163
    %v3728 = vpack.c.b16 %v3168, %v3164
    %v3729 = vpack.c.b16 %v3169, %v3165
    %v3730 = vpack.c.b16 %v3174, %v3170
    %v3731 = vpack.c.b16 %v3175, %v3171
    %v3732 = vpack.c.b16 %v3176, %v3172
    %v3733 = vpack.c.b16 %v3177, %v3173
    %v3734 = vpack.c.b16 %v3182, %v3178
    %v3735 = vpack.c.b16 %v3183, %v3179
    %v3736 = vpack.c.b16 %v3184, %v3180
    %v3737 = vpack.c.b16 %v3185, %v3181
    %v3738 = vpack.c.b16 %v3190, %v3186
    %v3739 = vpack.c.b16 %v3191, %v3187
    %v3740 = vpack.c.b16 %v3192, %v3188
    %v3741 = vpack.c.b16 %v3193, %v3189
    %v3742 = vpack.c.b16 %v3198, %v3194
    %v3743 = vpack.c.b16 %v3199, %v3195
    %v3744 = vpack.c.b16 %v3200, %v3196
    %v3745 = vpack.c.b16 %v3201, %v3197
    %v3746 = vpack.c.b16 %v3206, %v3202
    %v3747 = vpack.c.b16 %v3207, %v3203
    %v3748 = vpack.c.b16 %v3208, %v3204
    %v3749 = vpack.c.b16 %v3209, %v3205
    %v3750 = vpack.c.b16 %v3214, %v3210
    %v3751 = vpack.c.b16 %v3215, %v3211
    %v3752 = vpack.c.b16 %v3216, %v3212
    %v3753 = vpack.c.b16 %v3217, %v3213
    %v3754 = vpack.c.b16 %v3222, %v3218
    %v3755 = vpack.c.b16 %v3223, %v3219
    %v3756 = vpack.c.b16 %v3224, %v3220
    %v3757 = vpack.c.b16 %v3225, %v3221
    %v3758 = vpack.c.b16 %v3230, %v3226
    %v3759 = vpack.c.b16 %v3231, %v3227
    %v3760 = vpack.c.b16 %v3232, %v3228
    %v3761 = vpack.c.b16 %v3233, %v3229
    %v3762 = vpack.c.b16 %v3238, %v3234
    %v3763 = vpack.c.b16 %v3239, %v3235
    %v3764 = vpack.c.b16 %v3240, %v3236
    %v3765 = vpack.c.b16 %v3241, %v3237
    %v3766 = vpack.c.b16 %v3246, %v3242
    %v3767 = vpack.c.b16 %v3247, %v3243
    %v3768 = vpack.c.b16 %v3248, %v3244
    %v3769 = vpack.c.b16 %v3249, %v3245
    %v3770 = vpack.c.b16 %v3254, %v3250
    %v3771 = vpack.c.b16 %v3255, %v3251
    %v3772 = vpack.c.b16 %v3256, %v3252
    %v3773 = vpack.c.b16 %v3257, %v3253
    %v3774 = vpack.c.b16 %v3262, %v3258
    %v3775 = vpack.c.b16 %v3263, %v3259
    %v3776 = vpack.c.b16 %v3264, %v3260
    %v3777 = vpack.c.b16 %v3265, %v3261
    %4290 = vmatpush.bf16.msra.mxu0 %v3294
    %4291 = vmatpush.bf16.msra.mxu0 %v3290
    %4292 = vmatpush.bf16.msra.mxu0 %v3286
    %4293 = vmatpush.bf16.msra.mxu0 %v3282
    %4294 = vmatpush.bf16.msra.mxu0 %v3278
    %4295 = vmatpush.bf16.msra.mxu0 %v3274
    %4296 = vmatpush.bf16.msra.mxu0 %v3270
    %4297 = vmatpush.bf16.msra.mxu0 %v3266
    %4298 = vmatmul.bf16.gmra.mxu0 %v1192
    %v4299 = vpop.f32.mrf.mxu0
    %v4300 = vadd.f32 %v1722, %v4299
    %v4301 = vpop.f32.mrf.mxu0
    %4302 = vdwg.mxu0
    %4303 = vmatpush.bf16.msra.mxu0 %v3326
    %4304 = vmatpush.bf16.msra.mxu0 %v3322
    %4305 = vmatpush.bf16.msra.mxu0 %v3318
    %4306 = vmatpush.bf16.msra.mxu0 %v3314
    %4307 = vmatpush.bf16.msra.mxu0 %v3310
    %4308 = vmatpush.bf16.msra.mxu0 %v3306
    %4309 = vmatpush.bf16.msra.mxu0 %v3302
    %4310 = vmatpush.bf16.msra.mxu0 %v3298
    %4311 = vmatmul.bf16.gmra.mxu0 %v1193
    %v4312 = vpop.f32.mrf.mxu0
    %v4313 = vadd.f32 %v4300, %v4312
    %v4314 = vpop.f32.mrf.mxu0
    %4315 = vdwg.mxu0
    %4316 = vmatpush.bf16.msra.mxu0 %v3358
    %4317 = vmatpush.bf16.msra.mxu0 %v3354
    %4318 = vmatpush.bf16.msra.mxu0 %v3350
    %4319 = vmatpush.bf16.msra.mxu0 %v3346
    %4320 = vmatpush.bf16.msra.mxu0 %v3342
    %4321 = vmatpush.bf16.msra.mxu0 %v3338
    %4322 = vmatpush.bf16.msra.mxu0 %v3334
    %4323 = vmatpush.bf16.msra.mxu0 %v3330
    %4324 = vmatmul.bf16.gmra.mxu0 %v1194
    %v4325 = vpop.f32.mrf.mxu0
    %v4326 = vadd.f32 %v4313, %v4325
    %v4327 = vpop.f32.mrf.mxu0
    %4328 = vdwg.mxu0
    %4329 = vmatpush.bf16.msra.mxu0 %v3390
    %4330 = vmatpush.bf16.msra.mxu0 %v3386
    %4331 = vmatpush.bf16.msra.mxu0 %v3382
    %4332 = vmatpush.bf16.msra.mxu0 %v3378
    %4333 = vmatpush.bf16.msra.mxu0 %v3374
    %4334 = vmatpush.bf16.msra.mxu0 %v3370
    %4335 = vmatpush.bf16.msra.mxu0 %v3366
    %4336 = vmatpush.bf16.msra.mxu0 %v3362
    %4337 = vmatmul.bf16.gmra.mxu0 %v1195
    %v4338 = vpop.f32.mrf.mxu0
    %v4339 = vadd.f32 %v4326, %v4338
    %v4340 = vpop.f32.mrf.mxu0
    %4341 = vdwg.mxu0
    %4342 = vmatpush.bf16.msra.mxu0 %v3422
    %4343 = vmatpush.bf16.msra.mxu0 %v3418
    %4344 = vmatpush.bf16.msra.mxu0 %v3414
    %4345 = vmatpush.bf16.msra.mxu0 %v3410
    %4346 = vmatpush.bf16.msra.mxu0 %v3406
    %4347 = vmatpush.bf16.msra.mxu0 %v3402
    %4348 = vmatpush.bf16.msra.mxu0 %v3398
    %4349 = vmatpush.bf16.msra.mxu0 %v3394
    %4350 = vmatmul.bf16.gmra.mxu0 %v1196
    %v4351 = vpop.f32.mrf.mxu0
    %v4352 = vadd.f32 %v4339, %v4351
    %v4353 = vpop.f32.mrf.mxu0
    %4354 = vdwg.mxu0
    %4355 = vmatpush.bf16.msra.mxu0 %v3454
    %4356 = vmatpush.bf16.msra.mxu0 %v3450
    %4357 = vmatpush.bf16.msra.mxu0 %v3446
    %4358 = vmatpush.bf16.msra.mxu0 %v3442
    %4359 = vmatpush.bf16.msra.mxu0 %v3438
    %4360 = vmatpush.bf16.msra.mxu0 %v3434
    %4361 = vmatpush.bf16.msra.mxu0 %v3430
    %4362 = vmatpush.bf16.msra.mxu0 %v3426
    %4363 = vmatmul.bf16.gmra.mxu0 %v1197
    %v4364 = vpop.f32.mrf.mxu0
    %v4365 = vadd.f32 %v4352, %v4364
    %v4366 = vpop.f32.mrf.mxu0
    %4367 = vdwg.mxu0
    %4368 = vmatpush.bf16.msra.mxu0 %v3486
    %4369 = vmatpush.bf16.msra.mxu0 %v3482
    %4370 = vmatpush.bf16.msra.mxu0 %v3478
    %4371 = vmatpush.bf16.msra.mxu0 %v3474
    %4372 = vmatpush.bf16.msra.mxu0 %v3470
    %4373 = vmatpush.bf16.msra.mxu0 %v3466
    %4374 = vmatpush.bf16.msra.mxu0 %v3462
    %4375 = vmatpush.bf16.msra.mxu0 %v3458
    %4376 = vmatmul.bf16.gmra.mxu0 %v1198
    %v4377 = vpop.f32.mrf.mxu0
    %v4378 = vadd.f32 %v4365, %v4377
    %v4379 = vpop.f32.mrf.mxu0
    %4380 = vdwg.mxu0
    %4381 = vmatpush.bf16.msra.mxu0 %v3518
    %4382 = vmatpush.bf16.msra.mxu0 %v3514
    %4383 = vmatpush.bf16.msra.mxu0 %v3510
    %4384 = vmatpush.bf16.msra.mxu0 %v3506
    %4385 = vmatpush.bf16.msra.mxu0 %v3502
    %4386 = vmatpush.bf16.msra.mxu0 %v3498
    %4387 = vmatpush.bf16.msra.mxu0 %v3494
    %4388 = vmatpush.bf16.msra.mxu0 %v3490
    %4389 = vmatmul.bf16.gmra.mxu0 %v1199
    %v4390 = vpop.f32.mrf.mxu0
    %v4391 = vadd.f32 %v4378, %v4390
    %v4392 = vpop.f32.mrf.mxu0
    %4393 = vdwg.mxu0
    %4394 = vmatpush.bf16.msra.mxu0 %v3550
    %4395 = vmatpush.bf16.msra.mxu0 %v3546
    %4396 = vmatpush.bf16.msra.mxu0 %v3542
    %4397 = vmatpush.bf16.msra.mxu0 %v3538
    %4398 = vmatpush.bf16.msra.mxu0 %v3534
    %4399 = vmatpush.bf16.msra.mxu0 %v3530
    %4400 = vmatpush.bf16.msra.mxu0 %v3526
    %4401 = vmatpush.bf16.msra.mxu0 %v3522
    %4402 = vmatmul.bf16.gmra.mxu0 %v1200
    %v4403 = vpop.f32.mrf.mxu0
    %v4404 = vadd.f32 %v4391, %v4403
    %v4405 = vpop.f32.mrf.mxu0
    %4406 = vdwg.mxu0
    %4407 = vmatpush.bf16.msra.mxu0 %v3582
    %4408 = vmatpush.bf16.msra.mxu0 %v3578
    %4409 = vmatpush.bf16.msra.mxu0 %v3574
    %4410 = vmatpush.bf16.msra.mxu0 %v3570
    %4411 = vmatpush.bf16.msra.mxu0 %v3566
    %4412 = vmatpush.bf16.msra.mxu0 %v3562
    %4413 = vmatpush.bf16.msra.mxu0 %v3558
    %4414 = vmatpush.bf16.msra.mxu0 %v3554
    %4415 = vmatmul.bf16.gmra.mxu0 %v1201
    %v4416 = vpop.f32.mrf.mxu0
    %v4417 = vadd.f32 %v4404, %v4416
    %v4418 = vpop.f32.mrf.mxu0
    %4419 = vdwg.mxu0
    %4420 = vmatpush.bf16.msra.mxu0 %v3614
    %4421 = vmatpush.bf16.msra.mxu0 %v3610
    %4422 = vmatpush.bf16.msra.mxu0 %v3606
    %4423 = vmatpush.bf16.msra.mxu0 %v3602
    %4424 = vmatpush.bf16.msra.mxu0 %v3598
    %4425 = vmatpush.bf16.msra.mxu0 %v3594
    %4426 = vmatpush.bf16.msra.mxu0 %v3590
    %4427 = vmatpush.bf16.msra.mxu0 %v3586
    %4428 = vmatmul.bf16.gmra.mxu0 %v1202
    %v4429 = vpop.f32.mrf.mxu0
    %v4430 = vadd.f32 %v4417, %v4429
    %v4431 = vpop.f32.mrf.mxu0
    %4432 = vdwg.mxu0
    %4433 = vmatpush.bf16.msra.mxu0 %v3646
    %4434 = vmatpush.bf16.msra.mxu0 %v3642
    %4435 = vmatpush.bf16.msra.mxu0 %v3638
    %4436 = vmatpush.bf16.msra.mxu0 %v3634
    %4437 = vmatpush.bf16.msra.mxu0 %v3630
    %4438 = vmatpush.bf16.msra.mxu0 %v3626
    %4439 = vmatpush.bf16.msra.mxu0 %v3622
    %4440 = vmatpush.bf16.msra.mxu0 %v3618
    %4441 = vmatmul.bf16.gmra.mxu0 %v1203
    %v4442 = vpop.f32.mrf.mxu0
    %v4443 = vadd.f32 %v4430, %v4442
    %v4444 = vpop.f32.mrf.mxu0
    %4445 = vdwg.mxu0
    %4446 = vmatpush.bf16.msra.mxu0 %v3678
    %4447 = vmatpush.bf16.msra.mxu0 %v3674
    %4448 = vmatpush.bf16.msra.mxu0 %v3670
    %4449 = vmatpush.bf16.msra.mxu0 %v3666
    %4450 = vmatpush.bf16.msra.mxu0 %v3662
    %4451 = vmatpush.bf16.msra.mxu0 %v3658
    %4452 = vmatpush.bf16.msra.mxu0 %v3654
    %4453 = vmatpush.bf16.msra.mxu0 %v3650
    %4454 = vmatmul.bf16.gmra.mxu0 %v1204
    %v4455 = vpop.f32.mrf.mxu0
    %v4456 = vadd.f32 %v4443, %v4455
    %v4457 = vpop.f32.mrf.mxu0
    %4458 = vdwg.mxu0
    %4459 = vmatpush.bf16.msra.mxu0 %v3710
    %4460 = vmatpush.bf16.msra.mxu0 %v3706
    %4461 = vmatpush.bf16.msra.mxu0 %v3702
    %4462 = vmatpush.bf16.msra.mxu0 %v3698
    %4463 = vmatpush.bf16.msra.mxu0 %v3694
    %4464 = vmatpush.bf16.msra.mxu0 %v3690
    %4465 = vmatpush.bf16.msra.mxu0 %v3686
    %4466 = vmatpush.bf16.msra.mxu0 %v3682
    %4467 = vmatmul.bf16.gmra.mxu0 %v1205
    %v4468 = vpop.f32.mrf.mxu0
    %v4469 = vadd.f32 %v4456, %v4468
    %v4470 = vpop.f32.mrf.mxu0
    %4471 = vdwg.mxu0
    %4472 = vmatpush.bf16.msra.mxu0 %v3742
    %4473 = vmatpush.bf16.msra.mxu0 %v3738
    %4474 = vmatpush.bf16.msra.mxu0 %v3734
    %4475 = vmatpush.bf16.msra.mxu0 %v3730
    %4476 = vmatpush.bf16.msra.mxu0 %v3726
    %4477 = vmatpush.bf16.msra.mxu0 %v3722
    %4478 = vmatpush.bf16.msra.mxu0 %v3718
    %4479 = vmatpush.bf16.msra.mxu0 %v3714
    %4480 = vmatmul.bf16.gmra.mxu0 %v1206
    %v4481 = vpop.f32.mrf.mxu0
    %v4482 = vadd.f32 %v4469, %v4481
    %v4483 = vpop.f32.mrf.mxu0
    %4484 = vdwg.mxu0
    %4485 = vmatpush.bf16.msra.mxu0 %v3774
    %4486 = vmatpush.bf16.msra.mxu0 %v3770
    %4487 = vmatpush.bf16.msra.mxu0 %v3766
    %4488 = vmatpush.bf16.msra.mxu0 %v3762
    %4489 = vmatpush.bf16.msra.mxu0 %v3758
    %4490 = vmatpush.bf16.msra.mxu0 %v3754
    %4491 = vmatpush.bf16.msra.mxu0 %v3750
    %4492 = vmatpush.bf16.msra.mxu0 %v3746
    %4493 = vmatmul.bf16.gmra.mxu0 %v1207
    %v4494 = vpop.f32.mrf.mxu0
    %v4495 = vadd.f32 %v4482, %v4494
    %v4496 = vpop.f32.mrf.mxu0
    %4497 = vdwg.mxu0
    %4498 = vmatpush.bf16.msra.mxu0 %v3295
    %4499 = vmatpush.bf16.msra.mxu0 %v3291
    %4500 = vmatpush.bf16.msra.mxu0 %v3287
    %4501 = vmatpush.bf16.msra.mxu0 %v3283
    %4502 = vmatpush.bf16.msra.mxu0 %v3279
    %4503 = vmatpush.bf16.msra.mxu0 %v3275
    %4504 = vmatpush.bf16.msra.mxu0 %v3271
    %4505 = vmatpush.bf16.msra.mxu0 %v3267
    %4506 = vmatmul.bf16.gmra.mxu0 %v1192
    %v4507 = vpop.f32.mrf.mxu0
    %v4508 = vadd.f32 %v1723, %v4507
    %v4509 = vpop.f32.mrf.mxu0
    %4510 = vdwg.mxu0
    %4511 = vmatpush.bf16.msra.mxu0 %v3327
    %4512 = vmatpush.bf16.msra.mxu0 %v3323
    %4513 = vmatpush.bf16.msra.mxu0 %v3319
    %4514 = vmatpush.bf16.msra.mxu0 %v3315
    %4515 = vmatpush.bf16.msra.mxu0 %v3311
    %4516 = vmatpush.bf16.msra.mxu0 %v3307
    %4517 = vmatpush.bf16.msra.mxu0 %v3303
    %4518 = vmatpush.bf16.msra.mxu0 %v3299
    %4519 = vmatmul.bf16.gmra.mxu0 %v1193
    %v4520 = vpop.f32.mrf.mxu0
    %v4521 = vadd.f32 %v4508, %v4520
    %v4522 = vpop.f32.mrf.mxu0
    %4523 = vdwg.mxu0
    %4524 = vmatpush.bf16.msra.mxu0 %v3359
    %4525 = vmatpush.bf16.msra.mxu0 %v3355
    %4526 = vmatpush.bf16.msra.mxu0 %v3351
    %4527 = vmatpush.bf16.msra.mxu0 %v3347
    %4528 = vmatpush.bf16.msra.mxu0 %v3343
    %4529 = vmatpush.bf16.msra.mxu0 %v3339
    %4530 = vmatpush.bf16.msra.mxu0 %v3335
    %4531 = vmatpush.bf16.msra.mxu0 %v3331
    %4532 = vmatmul.bf16.gmra.mxu0 %v1194
    %v4533 = vpop.f32.mrf.mxu0
    %v4534 = vadd.f32 %v4521, %v4533
    %v4535 = vpop.f32.mrf.mxu0
    %4536 = vdwg.mxu0
    %4537 = vmatpush.bf16.msra.mxu0 %v3391
    %4538 = vmatpush.bf16.msra.mxu0 %v3387
    %4539 = vmatpush.bf16.msra.mxu0 %v3383
    %4540 = vmatpush.bf16.msra.mxu0 %v3379
    %4541 = vmatpush.bf16.msra.mxu0 %v3375
    %4542 = vmatpush.bf16.msra.mxu0 %v3371
    %4543 = vmatpush.bf16.msra.mxu0 %v3367
    %4544 = vmatpush.bf16.msra.mxu0 %v3363
    %4545 = vmatmul.bf16.gmra.mxu0 %v1195
    %v4546 = vpop.f32.mrf.mxu0
    %v4547 = vadd.f32 %v4534, %v4546
    %v4548 = vpop.f32.mrf.mxu0
    %4549 = vdwg.mxu0
    %4550 = vmatpush.bf16.msra.mxu0 %v3423
    %4551 = vmatpush.bf16.msra.mxu0 %v3419
    %4552 = vmatpush.bf16.msra.mxu0 %v3415
    %4553 = vmatpush.bf16.msra.mxu0 %v3411
    %4554 = vmatpush.bf16.msra.mxu0 %v3407
    %4555 = vmatpush.bf16.msra.mxu0 %v3403
    %4556 = vmatpush.bf16.msra.mxu0 %v3399
    %4557 = vmatpush.bf16.msra.mxu0 %v3395
    %4558 = vmatmul.bf16.gmra.mxu0 %v1196
    %v4559 = vpop.f32.mrf.mxu0
    %v4560 = vadd.f32 %v4547, %v4559
    %v4561 = vpop.f32.mrf.mxu0
    %4562 = vdwg.mxu0
    %4563 = vmatpush.bf16.msra.mxu0 %v3455
    %4564 = vmatpush.bf16.msra.mxu0 %v3451
    %4565 = vmatpush.bf16.msra.mxu0 %v3447
    %4566 = vmatpush.bf16.msra.mxu0 %v3443
    %4567 = vmatpush.bf16.msra.mxu0 %v3439
    %4568 = vmatpush.bf16.msra.mxu0 %v3435
    %4569 = vmatpush.bf16.msra.mxu0 %v3431
    %4570 = vmatpush.bf16.msra.mxu0 %v3427
    %4571 = vmatmul.bf16.gmra.mxu0 %v1197
    %v4572 = vpop.f32.mrf.mxu0
    %v4573 = vadd.f32 %v4560, %v4572
    %v4574 = vpop.f32.mrf.mxu0
    %4575 = vdwg.mxu0
    %4576 = vmatpush.bf16.msra.mxu0 %v3487
    %4577 = vmatpush.bf16.msra.mxu0 %v3483
    %4578 = vmatpush.bf16.msra.mxu0 %v3479
    %4579 = vmatpush.bf16.msra.mxu0 %v3475
    %4580 = vmatpush.bf16.msra.mxu0 %v3471
    %4581 = vmatpush.bf16.msra.mxu0 %v3467
    %4582 = vmatpush.bf16.msra.mxu0 %v3463
    %4583 = vmatpush.bf16.msra.mxu0 %v3459
    %4584 = vmatmul.bf16.gmra.mxu0 %v1198
    %v4585 = vpop.f32.mrf.mxu0
    %v4586 = vadd.f32 %v4573, %v4585
    %v4587 = vpop.f32.mrf.mxu0
    %4588 = vdwg.mxu0
    %4589 = vmatpush.bf16.msra.mxu0 %v3519
    %4590 = vmatpush.bf16.msra.mxu0 %v3515
    %4591 = vmatpush.bf16.msra.mxu0 %v3511
    %4592 = vmatpush.bf16.msra.mxu0 %v3507
    %4593 = vmatpush.bf16.msra.mxu0 %v3503
    %4594 = vmatpush.bf16.msra.mxu0 %v3499
    %4595 = vmatpush.bf16.msra.mxu0 %v3495
    %4596 = vmatpush.bf16.msra.mxu0 %v3491
    %4597 = vmatmul.bf16.gmra.mxu0 %v1199
    %v4598 = vpop.f32.mrf.mxu0
    %v4599 = vadd.f32 %v4586, %v4598
    %v4600 = vpop.f32.mrf.mxu0
    %4601 = vdwg.mxu0
    %4602 = vmatpush.bf16.msra.mxu0 %v3551
    %4603 = vmatpush.bf16.msra.mxu0 %v3547
    %4604 = vmatpush.bf16.msra.mxu0 %v3543
    %4605 = vmatpush.bf16.msra.mxu0 %v3539
    %4606 = vmatpush.bf16.msra.mxu0 %v3535
    %4607 = vmatpush.bf16.msra.mxu0 %v3531
    %4608 = vmatpush.bf16.msra.mxu0 %v3527
    %4609 = vmatpush.bf16.msra.mxu0 %v3523
    %4610 = vmatmul.bf16.gmra.mxu0 %v1200
    %v4611 = vpop.f32.mrf.mxu0
    %v4612 = vadd.f32 %v4599, %v4611
    %v4613 = vpop.f32.mrf.mxu0
    %4614 = vdwg.mxu0
    %4615 = vmatpush.bf16.msra.mxu0 %v3583
    %4616 = vmatpush.bf16.msra.mxu0 %v3579
    %4617 = vmatpush.bf16.msra.mxu0 %v3575
    %4618 = vmatpush.bf16.msra.mxu0 %v3571
    %4619 = vmatpush.bf16.msra.mxu0 %v3567
    %4620 = vmatpush.bf16.msra.mxu0 %v3563
    %4621 = vmatpush.bf16.msra.mxu0 %v3559
    %4622 = vmatpush.bf16.msra.mxu0 %v3555
    %4623 = vmatmul.bf16.gmra.mxu0 %v1201
    %v4624 = vpop.f32.mrf.mxu0
    %v4625 = vadd.f32 %v4612, %v4624
    %v4626 = vpop.f32.mrf.mxu0
    %4627 = vdwg.mxu0
    %4628 = vmatpush.bf16.msra.mxu0 %v3615
    %4629 = vmatpush.bf16.msra.mxu0 %v3611
    %4630 = vmatpush.bf16.msra.mxu0 %v3607
    %4631 = vmatpush.bf16.msra.mxu0 %v3603
    %4632 = vmatpush.bf16.msra.mxu0 %v3599
    %4633 = vmatpush.bf16.msra.mxu0 %v3595
    %4634 = vmatpush.bf16.msra.mxu0 %v3591
    %4635 = vmatpush.bf16.msra.mxu0 %v3587
    %4636 = vmatmul.bf16.gmra.mxu0 %v1202
    %v4637 = vpop.f32.mrf.mxu0
    %v4638 = vadd.f32 %v4625, %v4637
    %v4639 = vpop.f32.mrf.mxu0
    %4640 = vdwg.mxu0
    %4641 = vmatpush.bf16.msra.mxu0 %v3647
    %4642 = vmatpush.bf16.msra.mxu0 %v3643
    %4643 = vmatpush.bf16.msra.mxu0 %v3639
    %4644 = vmatpush.bf16.msra.mxu0 %v3635
    %4645 = vmatpush.bf16.msra.mxu0 %v3631
    %4646 = vmatpush.bf16.msra.mxu0 %v3627
    %4647 = vmatpush.bf16.msra.mxu0 %v3623
    %4648 = vmatpush.bf16.msra.mxu0 %v3619
    %4649 = vmatmul.bf16.gmra.mxu0 %v1203
    %v4650 = vpop.f32.mrf.mxu0
    %v4651 = vadd.f32 %v4638, %v4650
    %v4652 = vpop.f32.mrf.mxu0
    %4653 = vdwg.mxu0
    %4654 = vmatpush.bf16.msra.mxu0 %v3679
    %4655 = vmatpush.bf16.msra.mxu0 %v3675
    %4656 = vmatpush.bf16.msra.mxu0 %v3671
    %4657 = vmatpush.bf16.msra.mxu0 %v3667
    %4658 = vmatpush.bf16.msra.mxu0 %v3663
    %4659 = vmatpush.bf16.msra.mxu0 %v3659
    %4660 = vmatpush.bf16.msra.mxu0 %v3655
    %4661 = vmatpush.bf16.msra.mxu0 %v3651
    %4662 = vmatmul.bf16.gmra.mxu0 %v1204
    %v4663 = vpop.f32.mrf.mxu0
    %v4664 = vadd.f32 %v4651, %v4663
    %v4665 = vpop.f32.mrf.mxu0
    %4666 = vdwg.mxu0
    %4667 = vmatpush.bf16.msra.mxu0 %v3711
    %4668 = vmatpush.bf16.msra.mxu0 %v3707
    %4669 = vmatpush.bf16.msra.mxu0 %v3703
    %4670 = vmatpush.bf16.msra.mxu0 %v3699
    %4671 = vmatpush.bf16.msra.mxu0 %v3695
    %4672 = vmatpush.bf16.msra.mxu0 %v3691
    %4673 = vmatpush.bf16.msra.mxu0 %v3687
    %4674 = vmatpush.bf16.msra.mxu0 %v3683
    %4675 = vmatmul.bf16.gmra.mxu0 %v1205
    %v4676 = vpop.f32.mrf.mxu0
    %v4677 = vadd.f32 %v4664, %v4676
    %v4678 = vpop.f32.mrf.mxu0
    %4679 = vdwg.mxu0
    %4680 = vmatpush.bf16.msra.mxu0 %v3743
    %4681 = vmatpush.bf16.msra.mxu0 %v3739
    %4682 = vmatpush.bf16.msra.mxu0 %v3735
    %4683 = vmatpush.bf16.msra.mxu0 %v3731
    %4684 = vmatpush.bf16.msra.mxu0 %v3727
    %4685 = vmatpush.bf16.msra.mxu0 %v3723
    %4686 = vmatpush.bf16.msra.mxu0 %v3719
    %4687 = vmatpush.bf16.msra.mxu0 %v3715
    %4688 = vmatmul.bf16.gmra.mxu0 %v1206
    %v4689 = vpop.f32.mrf.mxu0
    %v4690 = vadd.f32 %v4677, %v4689
    %v4691 = vpop.f32.mrf.mxu0
    %4692 = vdwg.mxu0
    %4693 = vmatpush.bf16.msra.mxu0 %v3775
    %4694 = vmatpush.bf16.msra.mxu0 %v3771
    %4695 = vmatpush.bf16.msra.mxu0 %v3767
    %4696 = vmatpush.bf16.msra.mxu0 %v3763
    %4697 = vmatpush.bf16.msra.mxu0 %v3759
    %4698 = vmatpush.bf16.msra.mxu0 %v3755
    %4699 = vmatpush.bf16.msra.mxu0 %v3751
    %4700 = vmatpush.bf16.msra.mxu0 %v3747
    %4701 = vmatmul.bf16.gmra.mxu0 %v1207
    %v4702 = vpop.f32.mrf.mxu0
    %v4703 = vadd.f32 %v4690, %v4702
    %v4704 = vpop.f32.mrf.mxu0
    %4705 = vdwg.mxu0
    %4706 = vmatpush.bf16.msra.mxu0 %v3296
    %4707 = vmatpush.bf16.msra.mxu0 %v3292
    %4708 = vmatpush.bf16.msra.mxu0 %v3288
    %4709 = vmatpush.bf16.msra.mxu0 %v3284
    %4710 = vmatpush.bf16.msra.mxu0 %v3280
    %4711 = vmatpush.bf16.msra.mxu0 %v3276
    %4712 = vmatpush.bf16.msra.mxu0 %v3272
    %4713 = vmatpush.bf16.msra.mxu0 %v3268
    %4714 = vmatmul.bf16.gmra.mxu0 %v1192
    %v4715 = vpop.f32.mrf.mxu0
    %v4716 = vadd.f32 %v1724, %v4715
    %v4717 = vpop.f32.mrf.mxu0
    %4718 = vdwg.mxu0
    %4719 = vmatpush.bf16.msra.mxu0 %v3328
    %4720 = vmatpush.bf16.msra.mxu0 %v3324
    %4721 = vmatpush.bf16.msra.mxu0 %v3320
    %4722 = vmatpush.bf16.msra.mxu0 %v3316
    %4723 = vmatpush.bf16.msra.mxu0 %v3312
    %4724 = vmatpush.bf16.msra.mxu0 %v3308
    %4725 = vmatpush.bf16.msra.mxu0 %v3304
    %4726 = vmatpush.bf16.msra.mxu0 %v3300
    %4727 = vmatmul.bf16.gmra.mxu0 %v1193
    %v4728 = vpop.f32.mrf.mxu0
    %v4729 = vadd.f32 %v4716, %v4728
    %v4730 = vpop.f32.mrf.mxu0
    %4731 = vdwg.mxu0
    %4732 = vmatpush.bf16.msra.mxu0 %v3360
    %4733 = vmatpush.bf16.msra.mxu0 %v3356
    %4734 = vmatpush.bf16.msra.mxu0 %v3352
    %4735 = vmatpush.bf16.msra.mxu0 %v3348
    %4736 = vmatpush.bf16.msra.mxu0 %v3344
    %4737 = vmatpush.bf16.msra.mxu0 %v3340
    %4738 = vmatpush.bf16.msra.mxu0 %v3336
    %4739 = vmatpush.bf16.msra.mxu0 %v3332
    %4740 = vmatmul.bf16.gmra.mxu0 %v1194
    %v4741 = vpop.f32.mrf.mxu0
    %v4742 = vadd.f32 %v4729, %v4741
    %v4743 = vpop.f32.mrf.mxu0
    %4744 = vdwg.mxu0
    %4745 = vmatpush.bf16.msra.mxu0 %v3392
    %4746 = vmatpush.bf16.msra.mxu0 %v3388
    %4747 = vmatpush.bf16.msra.mxu0 %v3384
    %4748 = vmatpush.bf16.msra.mxu0 %v3380
    %4749 = vmatpush.bf16.msra.mxu0 %v3376
    %4750 = vmatpush.bf16.msra.mxu0 %v3372
    %4751 = vmatpush.bf16.msra.mxu0 %v3368
    %4752 = vmatpush.bf16.msra.mxu0 %v3364
    %4753 = vmatmul.bf16.gmra.mxu0 %v1195
    %v4754 = vpop.f32.mrf.mxu0
    %v4755 = vadd.f32 %v4742, %v4754
    %v4756 = vpop.f32.mrf.mxu0
    %4757 = vdwg.mxu0
    %4758 = vmatpush.bf16.msra.mxu0 %v3424
    %4759 = vmatpush.bf16.msra.mxu0 %v3420
    %4760 = vmatpush.bf16.msra.mxu0 %v3416
    %4761 = vmatpush.bf16.msra.mxu0 %v3412
    %4762 = vmatpush.bf16.msra.mxu0 %v3408
    %4763 = vmatpush.bf16.msra.mxu0 %v3404
    %4764 = vmatpush.bf16.msra.mxu0 %v3400
    %4765 = vmatpush.bf16.msra.mxu0 %v3396
    %4766 = vmatmul.bf16.gmra.mxu0 %v1196
    %v4767 = vpop.f32.mrf.mxu0
    %v4768 = vadd.f32 %v4755, %v4767
    %v4769 = vpop.f32.mrf.mxu0
    %4770 = vdwg.mxu0
    %4771 = vmatpush.bf16.msra.mxu0 %v3456
    %4772 = vmatpush.bf16.msra.mxu0 %v3452
    %4773 = vmatpush.bf16.msra.mxu0 %v3448
    %4774 = vmatpush.bf16.msra.mxu0 %v3444
    %4775 = vmatpush.bf16.msra.mxu0 %v3440
    %4776 = vmatpush.bf16.msra.mxu0 %v3436
    %4777 = vmatpush.bf16.msra.mxu0 %v3432
    %4778 = vmatpush.bf16.msra.mxu0 %v3428
    %4779 = vmatmul.bf16.gmra.mxu0 %v1197
    %v4780 = vpop.f32.mrf.mxu0
    %v4781 = vadd.f32 %v4768, %v4780
    %v4782 = vpop.f32.mrf.mxu0
    %4783 = vdwg.mxu0
    %4784 = vmatpush.bf16.msra.mxu0 %v3488
    %4785 = vmatpush.bf16.msra.mxu0 %v3484
    %4786 = vmatpush.bf16.msra.mxu0 %v3480
    %4787 = vmatpush.bf16.msra.mxu0 %v3476
    %4788 = vmatpush.bf16.msra.mxu0 %v3472
    %4789 = vmatpush.bf16.msra.mxu0 %v3468
    %4790 = vmatpush.bf16.msra.mxu0 %v3464
    %4791 = vmatpush.bf16.msra.mxu0 %v3460
    %4792 = vmatmul.bf16.gmra.mxu0 %v1198
    %v4793 = vpop.f32.mrf.mxu0
    %v4794 = vadd.f32 %v4781, %v4793
    %v4795 = vpop.f32.mrf.mxu0
    %4796 = vdwg.mxu0
    %4797 = vmatpush.bf16.msra.mxu0 %v3520
    %4798 = vmatpush.bf16.msra.mxu0 %v3516
    %4799 = vmatpush.bf16.msra.mxu0 %v3512
    %4800 = vmatpush.bf16.msra.mxu0 %v3508
    %4801 = vmatpush.bf16.msra.mxu0 %v3504
    %4802 = vmatpush.bf16.msra.mxu0 %v3500
    %4803 = vmatpush.bf16.msra.mxu0 %v3496
    %4804 = vmatpush.bf16.msra.mxu0 %v3492
    %4805 = vmatmul.bf16.gmra.mxu0 %v1199
    %v4806 = vpop.f32.mrf.mxu0
    %v4807 = vadd.f32 %v4794, %v4806
    %v4808 = vpop.f32.mrf.mxu0
    %4809 = vdwg.mxu0
    %4810 = vmatpush.bf16.msra.mxu0 %v3552
    %4811 = vmatpush.bf16.msra.mxu0 %v3548
    %4812 = vmatpush.bf16.msra.mxu0 %v3544
    %4813 = vmatpush.bf16.msra.mxu0 %v3540
    %4814 = vmatpush.bf16.msra.mxu0 %v3536
    %4815 = vmatpush.bf16.msra.mxu0 %v3532
    %4816 = vmatpush.bf16.msra.mxu0 %v3528
    %4817 = vmatpush.bf16.msra.mxu0 %v3524
    %4818 = vmatmul.bf16.gmra.mxu0 %v1200
    %v4819 = vpop.f32.mrf.mxu0
    %v4820 = vadd.f32 %v4807, %v4819
    %v4821 = vpop.f32.mrf.mxu0
    %4822 = vdwg.mxu0
    %4823 = vmatpush.bf16.msra.mxu0 %v3584
    %4824 = vmatpush.bf16.msra.mxu0 %v3580
    %4825 = vmatpush.bf16.msra.mxu0 %v3576
    %4826 = vmatpush.bf16.msra.mxu0 %v3572
    %4827 = vmatpush.bf16.msra.mxu0 %v3568
    %4828 = vmatpush.bf16.msra.mxu0 %v3564
    %4829 = vmatpush.bf16.msra.mxu0 %v3560
    %4830 = vmatpush.bf16.msra.mxu0 %v3556
    %4831 = vmatmul.bf16.gmra.mxu0 %v1201
    %v4832 = vpop.f32.mrf.mxu0
    %v4833 = vadd.f32 %v4820, %v4832
    %v4834 = vpop.f32.mrf.mxu0
    %4835 = vdwg.mxu0
    %4836 = vmatpush.bf16.msra.mxu0 %v3616
    %4837 = vmatpush.bf16.msra.mxu0 %v3612
    %4838 = vmatpush.bf16.msra.mxu0 %v3608
    %4839 = vmatpush.bf16.msra.mxu0 %v3604
    %4840 = vmatpush.bf16.msra.mxu0 %v3600
    %4841 = vmatpush.bf16.msra.mxu0 %v3596
    %4842 = vmatpush.bf16.msra.mxu0 %v3592
    %4843 = vmatpush.bf16.msra.mxu0 %v3588
    %4844 = vmatmul.bf16.gmra.mxu0 %v1202
    %v4845 = vpop.f32.mrf.mxu0
    %v4846 = vadd.f32 %v4833, %v4845
    %v4847 = vpop.f32.mrf.mxu0
    %4848 = vdwg.mxu0
    %4849 = vmatpush.bf16.msra.mxu0 %v3648
    %4850 = vmatpush.bf16.msra.mxu0 %v3644
    %4851 = vmatpush.bf16.msra.mxu0 %v3640
    %4852 = vmatpush.bf16.msra.mxu0 %v3636
    %4853 = vmatpush.bf16.msra.mxu0 %v3632
    %4854 = vmatpush.bf16.msra.mxu0 %v3628
    %4855 = vmatpush.bf16.msra.mxu0 %v3624
    %4856 = vmatpush.bf16.msra.mxu0 %v3620
    %4857 = vmatmul.bf16.gmra.mxu0 %v1203
    %v4858 = vpop.f32.mrf.mxu0
    %v4859 = vadd.f32 %v4846, %v4858
    %v4860 = vpop.f32.mrf.mxu0
    %4861 = vdwg.mxu0
    %4862 = vmatpush.bf16.msra.mxu0 %v3680
    %4863 = vmatpush.bf16.msra.mxu0 %v3676
    %4864 = vmatpush.bf16.msra.mxu0 %v3672
    %4865 = vmatpush.bf16.msra.mxu0 %v3668
    %4866 = vmatpush.bf16.msra.mxu0 %v3664
    %4867 = vmatpush.bf16.msra.mxu0 %v3660
    %4868 = vmatpush.bf16.msra.mxu0 %v3656
    %4869 = vmatpush.bf16.msra.mxu0 %v3652
    %4870 = vmatmul.bf16.gmra.mxu0 %v1204
    %v4871 = vpop.f32.mrf.mxu0
    %v4872 = vadd.f32 %v4859, %v4871
    %v4873 = vpop.f32.mrf.mxu0
    %4874 = vdwg.mxu0
    %4875 = vmatpush.bf16.msra.mxu0 %v3712
    %4876 = vmatpush.bf16.msra.mxu0 %v3708
    %4877 = vmatpush.bf16.msra.mxu0 %v3704
    %4878 = vmatpush.bf16.msra.mxu0 %v3700
    %4879 = vmatpush.bf16.msra.mxu0 %v3696
    %4880 = vmatpush.bf16.msra.mxu0 %v3692
    %4881 = vmatpush.bf16.msra.mxu0 %v3688
    %4882 = vmatpush.bf16.msra.mxu0 %v3684
    %4883 = vmatmul.bf16.gmra.mxu0 %v1205
    %v4884 = vpop.f32.mrf.mxu0
    %v4885 = vadd.f32 %v4872, %v4884
    %v4886 = vpop.f32.mrf.mxu0
    %4887 = vdwg.mxu0
    %4888 = vmatpush.bf16.msra.mxu0 %v3744
    %4889 = vmatpush.bf16.msra.mxu0 %v3740
    %4890 = vmatpush.bf16.msra.mxu0 %v3736
    %4891 = vmatpush.bf16.msra.mxu0 %v3732
    %4892 = vmatpush.bf16.msra.mxu0 %v3728
    %4893 = vmatpush.bf16.msra.mxu0 %v3724
    %4894 = vmatpush.bf16.msra.mxu0 %v3720
    %4895 = vmatpush.bf16.msra.mxu0 %v3716
    %4896 = vmatmul.bf16.gmra.mxu0 %v1206
    %v4897 = vpop.f32.mrf.mxu0
    %v4898 = vadd.f32 %v4885, %v4897
    %v4899 = vpop.f32.mrf.mxu0
    %4900 = vdwg.mxu0
    %4901 = vmatpush.bf16.msra.mxu0 %v3776
    %4902 = vmatpush.bf16.msra.mxu0 %v3772
    %4903 = vmatpush.bf16.msra.mxu0 %v3768
    %4904 = vmatpush.bf16.msra.mxu0 %v3764
    %4905 = vmatpush.bf16.msra.mxu0 %v3760
    %4906 = vmatpush.bf16.msra.mxu0 %v3756
    %4907 = vmatpush.bf16.msra.mxu0 %v3752
    %4908 = vmatpush.bf16.msra.mxu0 %v3748
    %4909 = vmatmul.bf16.gmra.mxu0 %v1207
    %v4910 = vpop.f32.mrf.mxu0
    %v4911 = vadd.f32 %v4898, %v4910
    %v4912 = vpop.f32.mrf.mxu0
    %4913 = vdwg.mxu0
    %4914 = vmatpush.bf16.msra.mxu0 %v3297
    %4915 = vmatpush.bf16.msra.mxu0 %v3293
    %4916 = vmatpush.bf16.msra.mxu0 %v3289
    %4917 = vmatpush.bf16.msra.mxu0 %v3285
    %4918 = vmatpush.bf16.msra.mxu0 %v3281
    %4919 = vmatpush.bf16.msra.mxu0 %v3277
    %4920 = vmatpush.bf16.msra.mxu0 %v3273
    %4921 = vmatpush.bf16.msra.mxu0 %v3269
    %4922 = vmatmul.bf16.gmra.mxu0 %v1192
    %v4923 = vpop.f32.mrf.mxu0
    %v4924 = vadd.f32 %v1725, %v4923
    %v4925 = vpop.f32.mrf.mxu0
    %4926 = vdwg.mxu0
    %4927 = vmatpush.bf16.msra.mxu0 %v3329
    %4928 = vmatpush.bf16.msra.mxu0 %v3325
    %4929 = vmatpush.bf16.msra.mxu0 %v3321
    %4930 = vmatpush.bf16.msra.mxu0 %v3317
    %4931 = vmatpush.bf16.msra.mxu0 %v3313
    %4932 = vmatpush.bf16.msra.mxu0 %v3309
    %4933 = vmatpush.bf16.msra.mxu0 %v3305
    %4934 = vmatpush.bf16.msra.mxu0 %v3301
    %4935 = vmatmul.bf16.gmra.mxu0 %v1193
    %v4936 = vpop.f32.mrf.mxu0
    %v4937 = vadd.f32 %v4924, %v4936
    %v4938 = vpop.f32.mrf.mxu0
    %4939 = vdwg.mxu0
    %4940 = vmatpush.bf16.msra.mxu0 %v3361
    %4941 = vmatpush.bf16.msra.mxu0 %v3357
    %4942 = vmatpush.bf16.msra.mxu0 %v3353
    %4943 = vmatpush.bf16.msra.mxu0 %v3349
    %4944 = vmatpush.bf16.msra.mxu0 %v3345
    %4945 = vmatpush.bf16.msra.mxu0 %v3341
    %4946 = vmatpush.bf16.msra.mxu0 %v3337
    %4947 = vmatpush.bf16.msra.mxu0 %v3333
    %4948 = vmatmul.bf16.gmra.mxu0 %v1194
    %v4949 = vpop.f32.mrf.mxu0
    %v4950 = vadd.f32 %v4937, %v4949
    %v4951 = vpop.f32.mrf.mxu0
    %4952 = vdwg.mxu0
    %4953 = vmatpush.bf16.msra.mxu0 %v3393
    %4954 = vmatpush.bf16.msra.mxu0 %v3389
    %4955 = vmatpush.bf16.msra.mxu0 %v3385
    %4956 = vmatpush.bf16.msra.mxu0 %v3381
    %4957 = vmatpush.bf16.msra.mxu0 %v3377
    %4958 = vmatpush.bf16.msra.mxu0 %v3373
    %4959 = vmatpush.bf16.msra.mxu0 %v3369
    %4960 = vmatpush.bf16.msra.mxu0 %v3365
    %4961 = vmatmul.bf16.gmra.mxu0 %v1195
    %v4962 = vpop.f32.mrf.mxu0
    %v4963 = vadd.f32 %v4950, %v4962
    %v4964 = vpop.f32.mrf.mxu0
    %4965 = vdwg.mxu0
    %4966 = vmatpush.bf16.msra.mxu0 %v3425
    %4967 = vmatpush.bf16.msra.mxu0 %v3421
    %4968 = vmatpush.bf16.msra.mxu0 %v3417
    %4969 = vmatpush.bf16.msra.mxu0 %v3413
    %4970 = vmatpush.bf16.msra.mxu0 %v3409
    %4971 = vmatpush.bf16.msra.mxu0 %v3405
    %4972 = vmatpush.bf16.msra.mxu0 %v3401
    %4973 = vmatpush.bf16.msra.mxu0 %v3397
    %4974 = vmatmul.bf16.gmra.mxu0 %v1196
    %v4975 = vpop.f32.mrf.mxu0
    %v4976 = vadd.f32 %v4963, %v4975
    %v4977 = vpop.f32.mrf.mxu0
    %4978 = vdwg.mxu0
    %4979 = vmatpush.bf16.msra.mxu0 %v3457
    %4980 = vmatpush.bf16.msra.mxu0 %v3453
    %4981 = vmatpush.bf16.msra.mxu0 %v3449
    %4982 = vmatpush.bf16.msra.mxu0 %v3445
    %4983 = vmatpush.bf16.msra.mxu0 %v3441
    %4984 = vmatpush.bf16.msra.mxu0 %v3437
    %4985 = vmatpush.bf16.msra.mxu0 %v3433
    %4986 = vmatpush.bf16.msra.mxu0 %v3429
    %4987 = vmatmul.bf16.gmra.mxu0 %v1197
    %v4988 = vpop.f32.mrf.mxu0
    %v4989 = vadd.f32 %v4976, %v4988
    %v4990 = vpop.f32.mrf.mxu0
    %4991 = vdwg.mxu0
    %4992 = vmatpush.bf16.msra.mxu0 %v3489
    %4993 = vmatpush.bf16.msra.mxu0 %v3485
    %4994 = vmatpush.bf16.msra.mxu0 %v3481
    %4995 = vmatpush.bf16.msra.mxu0 %v3477
    %4996 = vmatpush.bf16.msra.mxu0 %v3473
    %4997 = vmatpush.bf16.msra.mxu0 %v3469
    %4998 = vmatpush.bf16.msra.mxu0 %v3465
    %4999 = vmatpush.bf16.msra.mxu0 %v3461
    %5000 = vmatmul.bf16.gmra.mxu0 %v1198
    %v5001 = vpop.f32.mrf.mxu0
    %v5002 = vadd.f32 %v4989, %v5001
    %v5003 = vpop.f32.mrf.mxu0
    %5004 = vdwg.mxu0
    %5005 = vmatpush.bf16.msra.mxu0 %v3521
    %5006 = vmatpush.bf16.msra.mxu0 %v3517
    %5007 = vmatpush.bf16.msra.mxu0 %v3513
    %5008 = vmatpush.bf16.msra.mxu0 %v3509
    %5009 = vmatpush.bf16.msra.mxu0 %v3505
    %5010 = vmatpush.bf16.msra.mxu0 %v3501
    %5011 = vmatpush.bf16.msra.mxu0 %v3497
    %5012 = vmatpush.bf16.msra.mxu0 %v3493
    %5013 = vmatmul.bf16.gmra.mxu0 %v1199
    %v5014 = vpop.f32.mrf.mxu0
    %v5015 = vadd.f32 %v5002, %v5014
    %v5016 = vpop.f32.mrf.mxu0
    %5017 = vdwg.mxu0
    %5018 = vmatpush.bf16.msra.mxu0 %v3553
    %5019 = vmatpush.bf16.msra.mxu0 %v3549
    %5020 = vmatpush.bf16.msra.mxu0 %v3545
    %5021 = vmatpush.bf16.msra.mxu0 %v3541
    %5022 = vmatpush.bf16.msra.mxu0 %v3537
    %5023 = vmatpush.bf16.msra.mxu0 %v3533
    %5024 = vmatpush.bf16.msra.mxu0 %v3529
    %5025 = vmatpush.bf16.msra.mxu0 %v3525
    %5026 = vmatmul.bf16.gmra.mxu0 %v1200
    %v5027 = vpop.f32.mrf.mxu0
    %v5028 = vadd.f32 %v5015, %v5027
    %v5029 = vpop.f32.mrf.mxu0
    %5030 = vdwg.mxu0
    %5031 = vmatpush.bf16.msra.mxu0 %v3585
    %5032 = vmatpush.bf16.msra.mxu0 %v3581
    %5033 = vmatpush.bf16.msra.mxu0 %v3577
    %5034 = vmatpush.bf16.msra.mxu0 %v3573
    %5035 = vmatpush.bf16.msra.mxu0 %v3569
    %5036 = vmatpush.bf16.msra.mxu0 %v3565
    %5037 = vmatpush.bf16.msra.mxu0 %v3561
    %5038 = vmatpush.bf16.msra.mxu0 %v3557
    %5039 = vmatmul.bf16.gmra.mxu0 %v1201
    %v5040 = vpop.f32.mrf.mxu0
    %v5041 = vadd.f32 %v5028, %v5040
    %v5042 = vpop.f32.mrf.mxu0
    %5043 = vdwg.mxu0
    %5044 = vmatpush.bf16.msra.mxu0 %v3617
    %5045 = vmatpush.bf16.msra.mxu0 %v3613
    %5046 = vmatpush.bf16.msra.mxu0 %v3609
    %5047 = vmatpush.bf16.msra.mxu0 %v3605
    %5048 = vmatpush.bf16.msra.mxu0 %v3601
    %5049 = vmatpush.bf16.msra.mxu0 %v3597
    %5050 = vmatpush.bf16.msra.mxu0 %v3593
    %5051 = vmatpush.bf16.msra.mxu0 %v3589
    %5052 = vmatmul.bf16.gmra.mxu0 %v1202
    %v5053 = vpop.f32.mrf.mxu0
    %v5054 = vadd.f32 %v5041, %v5053
    %v5055 = vpop.f32.mrf.mxu0
    %5056 = vdwg.mxu0
    %5057 = vmatpush.bf16.msra.mxu0 %v3649
    %5058 = vmatpush.bf16.msra.mxu0 %v3645
    %5059 = vmatpush.bf16.msra.mxu0 %v3641
    %5060 = vmatpush.bf16.msra.mxu0 %v3637
    %5061 = vmatpush.bf16.msra.mxu0 %v3633
    %5062 = vmatpush.bf16.msra.mxu0 %v3629
    %5063 = vmatpush.bf16.msra.mxu0 %v3625
    %5064 = vmatpush.bf16.msra.mxu0 %v3621
    %5065 = vmatmul.bf16.gmra.mxu0 %v1203
    %v5066 = vpop.f32.mrf.mxu0
    %v5067 = vadd.f32 %v5054, %v5066
    %v5068 = vpop.f32.mrf.mxu0
    %5069 = vdwg.mxu0
    %5070 = vmatpush.bf16.msra.mxu0 %v3681
    %5071 = vmatpush.bf16.msra.mxu0 %v3677
    %5072 = vmatpush.bf16.msra.mxu0 %v3673
    %5073 = vmatpush.bf16.msra.mxu0 %v3669
    %5074 = vmatpush.bf16.msra.mxu0 %v3665
    %5075 = vmatpush.bf16.msra.mxu0 %v3661
    %5076 = vmatpush.bf16.msra.mxu0 %v3657
    %5077 = vmatpush.bf16.msra.mxu0 %v3653
    %5078 = vmatmul.bf16.gmra.mxu0 %v1204
    %v5079 = vpop.f32.mrf.mxu0
    %v5080 = vadd.f32 %v5067, %v5079
    %v5081 = vpop.f32.mrf.mxu0
    %5082 = vdwg.mxu0
    %5083 = vmatpush.bf16.msra.mxu0 %v3713
    %5084 = vmatpush.bf16.msra.mxu0 %v3709
    %5085 = vmatpush.bf16.msra.mxu0 %v3705
    %5086 = vmatpush.bf16.msra.mxu0 %v3701
    %5087 = vmatpush.bf16.msra.mxu0 %v3697
    %5088 = vmatpush.bf16.msra.mxu0 %v3693
    %5089 = vmatpush.bf16.msra.mxu0 %v3689
    %5090 = vmatpush.bf16.msra.mxu0 %v3685
    %5091 = vmatmul.bf16.gmra.mxu0 %v1205
    %v5092 = vpop.f32.mrf.mxu0
    %v5093 = vadd.f32 %v5080, %v5092
    %v5094 = vpop.f32.mrf.mxu0
    %5095 = vdwg.mxu0
    %5096 = vmatpush.bf16.msra.mxu0 %v3745
    %5097 = vmatpush.bf16.msra.mxu0 %v3741
    %5098 = vmatpush.bf16.msra.mxu0 %v3737
    %5099 = vmatpush.bf16.msra.mxu0 %v3733
    %5100 = vmatpush.bf16.msra.mxu0 %v3729
    %5101 = vmatpush.bf16.msra.mxu0 %v3725
    %5102 = vmatpush.bf16.msra.mxu0 %v3721
    %5103 = vmatpush.bf16.msra.mxu0 %v3717
    %5104 = vmatmul.bf16.gmra.mxu0 %v1206
    %v5105 = vpop.f32.mrf.mxu0
    %v5106 = vadd.f32 %v5093, %v5105
    %v5107 = vpop.f32.mrf.mxu0
    %5108 = vdwg.mxu0
    %5109 = vmatpush.bf16.msra.mxu0 %v3777
    %5110 = vmatpush.bf16.msra.mxu0 %v3773
    %5111 = vmatpush.bf16.msra.mxu0 %v3769
    %5112 = vmatpush.bf16.msra.mxu0 %v3765
    %5113 = vmatpush.bf16.msra.mxu0 %v3761
    %5114 = vmatpush.bf16.msra.mxu0 %v3757
    %5115 = vmatpush.bf16.msra.mxu0 %v3753
    %5116 = vmatpush.bf16.msra.mxu0 %v3749
    %5117 = vmatmul.bf16.gmra.mxu0 %v1207
    %v5118 = vpop.f32.mrf.mxu0
    %v5119 = vadd.f32 %v5106, %v5118
    %v5120 = vpop.f32.mrf.mxu0
    %5121 = vdwg.mxu0
    %v5122 = vmax.f32 %v4495, 0.0
    %v5123 = vmax.f32 %v4703, 0.0
    %v5124 = vmax.f32 %v4911, 0.0
    %v5125 = vmax.f32 %v5119, 0.0
    %v5126 = vpack.c.bf16 %v5122, %v5122
    %v5127 = vpack.c.bf16 %v5123, %v5123
    %v5128 = vpack.c.bf16 %v5124, %v5124
    %v5129 = vpack.c.bf16 %v5125, %v5125
    %v5130 = vld [vmem:[#allocation11] sm:$0xf]
    %v5131 = vld [vmem:[#allocation11 + $0x4] sm:$0xf]
    %v5132 = vld [vmem:[#allocation11 + $0x8] sm:$0xf]
    %v5133 = vld [vmem:[#allocation11 + $0xc] sm:$0xf]
    %v5134 = vld [vmem:[#allocation11 + $0x10] sm:$0xf]
    %v5135 = vld [vmem:[#allocation11 + $0x14] sm:$0xf]
    %v5136 = vld [vmem:[#allocation11 + $0x18] sm:$0xf]
    %v5137 = vld [vmem:[#allocation11 + $0x1c] sm:$0xf]
    %v5138 = vld [vmem:[#allocation11 + $0x20] sm:$0xf]
    %v5139 = vld [vmem:[#allocation11 + $0x24] sm:$0xf]
    %v5140 = vld [vmem:[#allocation11 + $0x28] sm:$0xf]
    %v5141 = vld [vmem:[#allocation11 + $0x2c] sm:$0xf]
    %v5142 = vld [vmem:[#allocation11 + $0x30] sm:$0xf]
    %v5143 = vld [vmem:[#allocation11 + $0x34] sm:$0xf]
    %v5144 = vld [vmem:[#allocation11 + $0x38] sm:$0xf]
    %v5145 = vld [vmem:[#allocation11 + $0x3c] sm:$0xf]
    %v5146 = vld [vmem:[#allocation11 + $0x40] sm:$0xf]
    %v5147 = vld [vmem:[#allocation11 + $0x44] sm:$0xf]
    %v5148 = vld [vmem:[#allocation11 + $0x48] sm:$0xf]
    %v5149 = vld [vmem:[#allocation11 + $0x4c] sm:$0xf]
    %v5150 = vld [vmem:[#allocation11 + $0x50] sm:$0xf]
    %v5151 = vld [vmem:[#allocation11 + $0x54] sm:$0xf]
    %v5152 = vld [vmem:[#allocation11 + $0x58] sm:$0xf]
    %v5153 = vld [vmem:[#allocation11 + $0x5c] sm:$0xf]
    %v5154 = vld [vmem:[#allocation11 + $0x60] sm:$0xf]
    %v5155 = vld [vmem:[#allocation11 + $0x64] sm:$0xf]
    %v5156 = vld [vmem:[#allocation11 + $0x68] sm:$0xf]
    %v5157 = vld [vmem:[#allocation11 + $0x6c] sm:$0xf]
    %v5158 = vld [vmem:[#allocation11 + $0x70] sm:$0xf]
    %v5159 = vld [vmem:[#allocation11 + $0x74] sm:$0xf]
    %v5160 = vld [vmem:[#allocation11 + $0x78] sm:$0xf]
    %v5161 = vld [vmem:[#allocation11 + $0x7c] sm:$0xf]
    %v5162 = vld [vmem:[#allocation11 + $0x80] sm:$0xf]
    %v5163 = vld [vmem:[#allocation11 + $0x84] sm:$0xf]
    %v5164 = vld [vmem:[#allocation11 + $0x88] sm:$0xf]
    %v5165 = vld [vmem:[#allocation11 + $0x8c] sm:$0xf]
    %v5166 = vld [vmem:[#allocation11 + $0x90] sm:$0xf]
    %v5167 = vld [vmem:[#allocation11 + $0x94] sm:$0xf]
    %v5168 = vld [vmem:[#allocation11 + $0x98] sm:$0xf]
    %v5169 = vld [vmem:[#allocation11 + $0x9c] sm:$0xf]
    %v5170 = vld [vmem:[#allocation11 + $0xa0] sm:$0xf]
    %v5171 = vld [vmem:[#allocation11 + $0xa4] sm:$0xf]
    %v5172 = vld [vmem:[#allocation11 + $0xa8] sm:$0xf]
    %v5173 = vld [vmem:[#allocation11 + $0xac] sm:$0xf]
    %v5174 = vld [vmem:[#allocation11 + $0xb0] sm:$0xf]
    %v5175 = vld [vmem:[#allocation11 + $0xb4] sm:$0xf]
    %v5176 = vld [vmem:[#allocation11 + $0xb8] sm:$0xf]
    %v5177 = vld [vmem:[#allocation11 + $0xbc] sm:$0xf]
    %v5178 = vld [vmem:[#allocation11 + $0xc0] sm:$0xf]
    %v5179 = vld [vmem:[#allocation11 + $0xc4] sm:$0xf]
    %v5180 = vld [vmem:[#allocation11 + $0xc8] sm:$0xf]
    %v5181 = vld [vmem:[#allocation11 + $0xcc] sm:$0xf]
    %v5182 = vld [vmem:[#allocation11 + $0xd0] sm:$0xf]
    %v5183 = vld [vmem:[#allocation11 + $0xd4] sm:$0xf]
    %v5184 = vld [vmem:[#allocation11 + $0xd8] sm:$0xf]
    %v5185 = vld [vmem:[#allocation11 + $0xdc] sm:$0xf]
    %v5186 = vld [vmem:[#allocation11 + $0xe0] sm:$0xf]
    %v5187 = vld [vmem:[#allocation11 + $0xe4] sm:$0xf]
    %v5188 = vld [vmem:[#allocation11 + $0xe8] sm:$0xf]
    %v5189 = vld [vmem:[#allocation11 + $0xec] sm:$0xf]
    %v5190 = vld [vmem:[#allocation11 + $0xf0] sm:$0xf]
    %v5191 = vld [vmem:[#allocation11 + $0xf4] sm:$0xf]
    %v5192 = vld [vmem:[#allocation11 + $0xf8] sm:$0xf]
    %v5193 = vld [vmem:[#allocation11 + $0xfc] sm:$0xf]
    %v5194 = vld [vmem:[#allocation13] sm:$0x1]
    %v5196 = vperm.slane %v5194, 0
    %v5262 = vunpack.c.l.b16 %v5130
    %v5263 = vunpack.c.l.b16 %v5131
    %v5264 = vunpack.c.l.b16 %v5132
    %v5265 = vunpack.c.l.b16 %v5133
    %v5266 = vunpack.c.l.b16 %v5134
    %v5267 = vunpack.c.l.b16 %v5135
    %v5268 = vunpack.c.l.b16 %v5136
    %v5269 = vunpack.c.l.b16 %v5137
    %v5270 = vunpack.c.l.b16 %v5138
    %v5271 = vunpack.c.l.b16 %v5139
    %v5272 = vunpack.c.l.b16 %v5140
    %v5273 = vunpack.c.l.b16 %v5141
    %v5274 = vunpack.c.l.b16 %v5142
    %v5275 = vunpack.c.l.b16 %v5143
    %v5276 = vunpack.c.l.b16 %v5144
    %v5277 = vunpack.c.l.b16 %v5145
    %v5278 = vunpack.c.l.b16 %v5146
    %v5279 = vunpack.c.l.b16 %v5147
    %v5280 = vunpack.c.l.b16 %v5148
    %v5281 = vunpack.c.l.b16 %v5149
    %v5282 = vunpack.c.l.b16 %v5150
    %v5283 = vunpack.c.l.b16 %v5151
    %v5284 = vunpack.c.l.b16 %v5152
    %v5285 = vunpack.c.l.b16 %v5153
    %v5286 = vunpack.c.l.b16 %v5154
    %v5287 = vunpack.c.l.b16 %v5155
    %v5288 = vunpack.c.l.b16 %v5156
    %v5289 = vunpack.c.l.b16 %v5157
    %v5290 = vunpack.c.l.b16 %v5158
    %v5291 = vunpack.c.l.b16 %v5159
    %v5292 = vunpack.c.l.b16 %v5160
    %v5293 = vunpack.c.l.b16 %v5161
    %v5294 = vunpack.c.l.b16 %v5162
    %v5295 = vunpack.c.l.b16 %v5163
    %v5296 = vunpack.c.l.b16 %v5164
    %v5297 = vunpack.c.l.b16 %v5165
    %v5298 = vunpack.c.l.b16 %v5166
    %v5299 = vunpack.c.l.b16 %v5167
    %v5300 = vunpack.c.l.b16 %v5168
    %v5301 = vunpack.c.l.b16 %v5169
    %v5302 = vunpack.c.l.b16 %v5170
    %v5303 = vunpack.c.l.b16 %v5171
    %v5304 = vunpack.c.l.b16 %v5172
    %v5305 = vunpack.c.l.b16 %v5173
    %v5306 = vunpack.c.l.b16 %v5174
    %v5307 = vunpack.c.l.b16 %v5175
    %v5308 = vunpack.c.l.b16 %v5176
    %v5309 = vunpack.c.l.b16 %v5177
    %v5310 = vunpack.c.l.b16 %v5178
    %v5311 = vunpack.c.l.b16 %v5179
    %v5312 = vunpack.c.l.b16 %v5180
    %v5313 = vunpack.c.l.b16 %v5181
    %v5314 = vunpack.c.l.b16 %v5182
    %v5315 = vunpack.c.l.b16 %v5183
    %v5316 = vunpack.c.l.b16 %v5184
    %v5317 = vunpack.c.l.b16 %v5185
    %v5318 = vunpack.c.l.b16 %v5186
    %v5319 = vunpack.c.l.b16 %v5187
    %v5320 = vunpack.c.l.b16 %v5188
    %v5321 = vunpack.c.l.b16 %v5189
    %v5322 = vunpack.c.l.b16 %v5190
    %v5323 = vunpack.c.l.b16 %v5191
    %v5324 = vunpack.c.l.b16 %v5192
    %v5325 = vunpack.c.l.b16 %v5193
    %v5326 = vpack.c.b16 %v5263, %v5262
    %v5327 = vpack.c.b16 %v5265, %v5264
    %v5328 = vpack.c.b16 %v5267, %v5266
    %v5329 = vpack.c.b16 %v5269, %v5268
    %v5330 = vpack.c.b16 %v5271, %v5270
    %v5331 = vpack.c.b16 %v5273, %v5272
    %v5332 = vpack.c.b16 %v5275, %v5274
    %v5333 = vpack.c.b16 %v5277, %v5276
    %v5334 = vpack.c.b16 %v5279, %v5278
    %v5335 = vpack.c.b16 %v5281, %v5280
    %v5336 = vpack.c.b16 %v5283, %v5282
    %v5337 = vpack.c.b16 %v5285, %v5284
    %v5338 = vpack.c.b16 %v5287, %v5286
    %v5339 = vpack.c.b16 %v5289, %v5288
    %v5340 = vpack.c.b16 %v5291, %v5290
    %v5341 = vpack.c.b16 %v5293, %v5292
    %v5342 = vpack.c.b16 %v5295, %v5294
    %v5343 = vpack.c.b16 %v5297, %v5296
    %v5344 = vpack.c.b16 %v5299, %v5298
    %v5345 = vpack.c.b16 %v5301, %v5300
    %v5346 = vpack.c.b16 %v5303, %v5302
    %v5347 = vpack.c.b16 %v5305, %v5304
    %v5348 = vpack.c.b16 %v5307, %v5306
    %v5349 = vpack.c.b16 %v5309, %v5308
    %v5350 = vpack.c.b16 %v5311, %v5310
    %v5351 = vpack.c.b16 %v5313, %v5312
    %v5352 = vpack.c.b16 %v5315, %v5314
    %v5353 = vpack.c.b16 %v5317, %v5316
    %v5354 = vpack.c.b16 %v5319, %v5318
    %v5355 = vpack.c.b16 %v5321, %v5320
    %v5356 = vpack.c.b16 %v5323, %v5322
    %v5357 = vpack.c.b16 %v5325, %v5324
    %5390 = vmatpush.bf16.msra.mxu0 %v5333
    %5391 = vmatpush.bf16.msra.mxu0 %v5332
    %5392 = vmatpush.bf16.msra.mxu0 %v5331
    %5393 = vmatpush.bf16.msra.mxu0 %v5330
    %5394 = vmatpush.bf16.msra.mxu0 %v5329
    %5395 = vmatpush.bf16.msra.mxu0 %v5328
    %5396 = vmatpush.bf16.msra.mxu0 %v5327
    %5397 = vmatpush.bf16.msra.mxu0 %v5326
    %5398 = vmatmul.bf16.gmra.mxu0 %v5126
    %v5399 = vpop.f32.mrf.mxu0
    %v5400 = vadd.f32 %v5196, %v5399
    %v5401 = vpop.f32.mrf.mxu0
    %5402 = vdwg.mxu0
    %5403 = vmatpush.bf16.msra.mxu0 %v5341
    %5404 = vmatpush.bf16.msra.mxu0 %v5340
    %5405 = vmatpush.bf16.msra.mxu0 %v5339
    %5406 = vmatpush.bf16.msra.mxu0 %v5338
    %5407 = vmatpush.bf16.msra.mxu0 %v5337
    %5408 = vmatpush.bf16.msra.mxu0 %v5336
    %5409 = vmatpush.bf16.msra.mxu0 %v5335
    %5410 = vmatpush.bf16.msra.mxu0 %v5334
    %5411 = vmatmul.bf16.gmra.mxu0 %v5127
    %v5412 = vpop.f32.mrf.mxu0
    %v5413 = vadd.f32 %v5400, %v5412
    %v5414 = vpop.f32.mrf.mxu0
    %5415 = vdwg.mxu0
    %5416 = vmatpush.bf16.msra.mxu0 %v5349
    %5417 = vmatpush.bf16.msra.mxu0 %v5348
    %5418 = vmatpush.bf16.msra.mxu0 %v5347
    %5419 = vmatpush.bf16.msra.mxu0 %v5346
    %5420 = vmatpush.bf16.msra.mxu0 %v5345
    %5421 = vmatpush.bf16.msra.mxu0 %v5344
    %5422 = vmatpush.bf16.msra.mxu0 %v5343
    %5423 = vmatpush.bf16.msra.mxu0 %v5342
    %5424 = vmatmul.bf16.gmra.mxu0 %v5128
    %v5425 = vpop.f32.mrf.mxu0
    %v5426 = vadd.f32 %v5413, %v5425
    %v5427 = vpop.f32.mrf.mxu0
    %5428 = vdwg.mxu0
    %5429 = vmatpush.bf16.msra.mxu0 %v5357
    %5430 = vmatpush.bf16.msra.mxu0 %v5356
    %5431 = vmatpush.bf16.msra.mxu0 %v5355
    %5432 = vmatpush.bf16.msra.mxu0 %v5354
    %5433 = vmatpush.bf16.msra.mxu0 %v5353
    %5434 = vmatpush.bf16.msra.mxu0 %v5352
    %5435 = vmatpush.bf16.msra.mxu0 %v5351
    %5436 = vmatpush.bf16.msra.mxu0 %v5350
    %5437 = vmatmul.bf16.gmra.mxu0 %v5129
    %v5438 = vpop.f32.mrf.mxu0
    %v5439 = vadd.f32 %v5426, %v5438
    %v5440 = vpop.f32.mrf.mxu0
    %5441 = vdwg.mxu0
    %v5442 = vmax.f32 %v5439, 0.0
    %v5443 = vpack.c.bf16 %v5442, %v5442
    %v5444 = vld [vmem:[#allocation14] sm:$0xf]
    %v5445 = vld [vmem:[#allocation14 + $0x4] sm:$0xf]
    %v5446 = vld [vmem:[#allocation14 + $0x8] sm:$0xf]
    %v5447 = vld [vmem:[#allocation14 + $0xc] sm:$0xf]
    %v5448 = vld [vmem:[#allocation14 + $0x10] sm:$0xf]
    %v5449 = vld [vmem:[#allocation14 + $0x14] sm:$0xf]
    %v5450 = vld [vmem:[#allocation14 + $0x18] sm:$0xf]
    %v5451 = vld [vmem:[#allocation14 + $0x1c] sm:$0xf]
    %v5452 = vld [vmem:[#allocation14 + $0x20] sm:$0xf]
    %v5453 = vld [vmem:[#allocation14 + $0x24] sm:$0xf]
    %v5454 = vld [vmem:[#allocation14 + $0x28] sm:$0xf]
    %v5455 = vld [vmem:[#allocation14 + $0x2c] sm:$0xf]
    %v5456 = vld [vmem:[#allocation14 + $0x30] sm:$0xf]
    %v5457 = vld [vmem:[#allocation14 + $0x34] sm:$0xf]
    %v5458 = vld [vmem:[#allocation14 + $0x38] sm:$0xf]
    %v5459 = vld [vmem:[#allocation14 + $0x3c] sm:$0xf]
    %v5460 = vld [vmem:[#allocation16] sm:$0x1]
    %v5462 = vperm.slane %v5460, 0
    %v5480 = vunpack.c.l.b16 %v5444
    %v5481 = vunpack.c.l.b16 %v5445
    %v5482 = vunpack.c.l.b16 %v5446
    %v5483 = vunpack.c.l.b16 %v5447
    %v5484 = vunpack.c.l.b16 %v5448
    %v5485 = vunpack.c.l.b16 %v5449
    %v5486 = vunpack.c.l.b16 %v5450
    %v5487 = vunpack.c.l.b16 %v5451
    %v5488 = vunpack.c.l.b16 %v5452
    %v5489 = vunpack.c.l.b16 %v5453
    %v5490 = vunpack.c.l.b16 %v5454
    %v5491 = vunpack.c.l.b16 %v5455
    %v5492 = vunpack.c.l.b16 %v5456
    %v5493 = vunpack.c.l.b16 %v5457
    %v5494 = vunpack.c.l.b16 %v5458
    %v5495 = vunpack.c.l.b16 %v5459
    %v5496 = vpack.c.b16 %v5481, %v5480
    %v5497 = vpack.c.b16 %v5483, %v5482
    %v5498 = vpack.c.b16 %v5485, %v5484
    %v5499 = vpack.c.b16 %v5487, %v5486
    %v5500 = vpack.c.b16 %v5489, %v5488
    %v5501 = vpack.c.b16 %v5491, %v5490
    %v5502 = vpack.c.b16 %v5493, %v5492
    %v5503 = vpack.c.b16 %v5495, %v5494
    %5512 = vmatpush.bf16.msra.mxu0 %v5503
    %5513 = vmatpush.bf16.msra.mxu0 %v5502
    %5514 = vmatpush.bf16.msra.mxu0 %v5501
    %5515 = vmatpush.bf16.msra.mxu0 %v5500
    %5516 = vmatpush.bf16.msra.mxu0 %v5499
    %5517 = vmatpush.bf16.msra.mxu0 %v5498
    %5518 = vmatpush.bf16.msra.mxu0 %v5497
    %5519 = vmatpush.bf16.msra.mxu0 %v5496
    %5520 = vmatmul.bf16.gmra.mxu0 %v5443
    %v5521 = vpop.f32.mrf.mxu0
    %v5522 = vadd.f32 %v5462, %v5521
    %v5523 = vpop.f32.mrf.mxu0
    %5524 = vdwg.mxu0
    %5525 = vst [vmem:[#allocation17] sm:$0xff] %v5522
    // Predicated region
    $region74: #{tpu_custom_call.1} parent=1 // pred_check
      _
    $region75: #{tpu_custom_call.1} parent=1 // pred_check_branch
      %5527 = sbr.rel (0) target = $region77
    $region76: #{tpu_custom_call.1} parent=1 // pred_region
      %5529 = vsyncadd [#allocation4], 0
      %s5531 = sshll.u32 [#allocation17], 4
      %s5532 = int_to_ptr.vmem [resolvable:$true] %s5531
      %s5533 = sshll.u32 %s9, 4
      %s5534 = int_to_ptr.hbm [resolvable:$true] %s5533
      %5536 = dma.vmem_to_hbm [thread:$0]  %s5532, 128, %s5534, [#allocation4]
    $region77: #{tpu_custom_call.1} parent=1 // pred_fallthru
      _
    // Predicated region
    $region78: #{tpu_custom_call.1} parent=1 // pred_check
      _
    $region79: #{tpu_custom_call.1} parent=1 // pred_check_branch
      %5538 = sbr.rel (0) target = $region81
    $region80: #{tpu_custom_call.1} parent=1 // pred_region
      %5540 = dma.done [#allocation4], 128
    $region81: #{tpu_custom_call.1} parent=1 // pred_fallthru
      _
    %5541 = vsyncpa [#allocation3], 1
    %5542 = vsyncpa [#allocation6], 1
    %5543 = vsyncpa [#allocation9], 1
    %5544 = vsyncpa [#allocation12], 1
    %5545 = vsyncpa [#allocation15], 1
    %5546 = vsyncpa [#allocation4], 1

</llo_original>
